<compile_context>
chip_gen: v6e
topology: v6e:2x2x1
jax: 0.10.0
libtpu: 0.0.40
codegen_flags: <defaults>
</compile_context>

<pallas_src>
import functools

import jax
import jax.numpy as jnp
from jax.experimental import pallas as pl
from jax.experimental.pallas import tpu as pltpu

IN_DIM = 4608
HID_DIM = 256
OUT_DIM = 9


def _round_up(n, m):
    return ((n + m - 1) // m) * m


def _vmem_limit_bytes(tm_eff):
    """Size the scoped-VMEM limit from the actual pipeline buffers (+headroom)."""
    x_buf = 2 * tm_eff * IN_DIM * 4            # double-buffered f32 activation tile
    w1_buf = 1 * IN_DIM * HID_DIM * 2          # single-buffered bf16 W1
    small = HID_DIM * 4 + HID_DIM * OUT_DIM * 2 + OUT_DIM * 4   # b1, W2, b2
    out_buf = 2 * tm_eff * OUT_DIM * 4         # double-buffered f32 output tile
    h_buf = tm_eff * HID_DIM * (4 + 2)         # f32 hidden + bf16 copy (scratch)
    total = x_buf + w1_buf + small + out_buf + h_buf + 4 * 1024 * 1024
    return int(min(max(total, 32 * 1024 * 1024), 96 * 1024 * 1024))


def dan_kernel(x_ref, w1_ref, b1_ref, w2_ref, b2_ref, o_ref):
    """Fused MLP for one batch tile: sigmoid(relu(x @ W1 + b1) @ W2 + b2)."""
    # TODO(synk): training-mode Dropout(0.5) omitted (eval-mode identity); add
    # with pltpu.prng_seed / pltpu.prng_random_bits if training parity is needed.
    # In-kernel cast of the f32 activation tile to bf16 (no separate HBM pass).
    x = x_ref[...].astype(jnp.bfloat16)
    # bf16 x bf16 matmul, f32 accumulation on the MXU.
    h = jnp.dot(x, w1_ref[...], preferred_element_type=jnp.float32)
    h = jnp.maximum(h + b1_ref[...], 0.0)                        # bias + ReLU
    logits = jnp.dot(h.astype(jnp.bfloat16), w2_ref[...],
                     preferred_element_type=jnp.float32) + b2_ref[...]
    # Sigmoid on the EUP (exp + approximate reciprocal); GRL is identity in fwd.
    # TODO(synk): GRL gradient reversal / schedule only affects backward.
    sig = pl.reciprocal(1.0 + jnp.exp(-logits), approx=True)
    o_ref[...] = sig.astype(o_ref.dtype)


@functools.partial(jax.jit, static_argnames=("tm",))
def domain_adaptation_forward(x, w1, b1, w2, b2, tm=512):
    """x: (B, 4608) f32; w1: (4608, 256) bf16; b1: (1, 256) f32;
    w2: (256, 9) bf16; b2: (1, 9) f32. Returns (B, 9) f32."""
    B, K = x.shape
    assert K == IN_DIM

    # Batch tile: multiple of 8 (sublane), capped at `tm`. No host-side padding:
    # the grid is ceil-divided and Pallas masks the ragged last block.
    tm_eff = min(tm, _round_up(B, 8))
    grid = (pl.cdiv(B, tm_eff),)

    # Constant-index operands: single-buffered (index_map never changes).
    def const_spec(shape):
        return pl.BlockSpec(shape, lambda m: (0, 0), pipeline_mode=pl.Buffered(1))

    out = pl.pallas_call(
        dan_kernel,
        out_shape=jax.ShapeDtypeStruct((B, OUT_DIM), jnp.float32),
        grid_spec=pltpu.PrefetchScalarGridSpec(
            num_scalar_prefetch=0,
            grid=grid,
            in_specs=[
                pl.BlockSpec((tm_eff, IN_DIM), lambda m: (m, 0)),  # x tile (f32)
                const_spec((IN_DIM, HID_DIM)),                     # W1 (bf16)
                const_spec((1, HID_DIM)),                          # b1 (f32)
                const_spec((HID_DIM, OUT_DIM)),                    # W2 (bf16)
                const_spec((1, OUT_DIM)),                          # b2 (f32)
            ],
            out_specs=pl.BlockSpec((tm_eff, OUT_DIM), lambda m: (m, 0)),
        ),
        compiler_params=pltpu.CompilerParams(
            # Batch axis is independent -> shards across v7x's 2 TensorCores.
            dimension_semantics=("parallel",),
            vmem_limit_bytes=_vmem_limit_bytes(tm_eff),
        ),
    )(x, w1, b1, w2, b2)
    return out


def init_params(key):
    """Deterministic init mirroring the PyTorch module:
    weights ~ N(0, 0.01), biases = 0. Weights stored pre-transposed as
    (in_features, out_features) and in bf16 (streamed to the MXU)."""
    k1, k2 = jax.random.split(key)
    w1 = (0.01 * jax.random.normal(k1, (IN_DIM, HID_DIM), dtype=jnp.float32)
          ).astype(jnp.bfloat16)
    b1 = jnp.zeros((1, HID_DIM), dtype=jnp.float32)
    w2 = (0.01 * jax.random.normal(k2, (HID_DIM, OUT_DIM), dtype=jnp.float32)
          ).astype(jnp.bfloat16)
    b2 = jnp.zeros((1, OUT_DIM), dtype=jnp.float32)
    return w1, b1, w2, b2


def reference_forward(x, w1, b1, w2, b2):
    """Pure-JAX reference mirroring the kernel's precision choices."""
    h = jnp.dot(x.astype(jnp.bfloat16), w1,
                preferred_element_type=jnp.float32) + b1
    h = jnp.maximum(h, 0.0)
    logits = jnp.dot(h.astype(jnp.bfloat16), w2,
                     preferred_element_type=jnp.float32) + b2
    return 1.0 / (1.0 + jnp.exp(-logits))


if __name__ == "__main__":
    key = jax.random.PRNGKey(0)
    k_params, k_x1, k_x2 = jax.random.split(key, 3)

    w1, b1, w2, b2 = init_params(k_params)

    # Primary check: small batch, single tile.
    B = 8
    x = jax.random.normal(k_x1, (B, IN_DIM), dtype=jnp.float32)
    out = jax.block_until_ready(domain_adaptation_forward(x, w1, b1, w2, b2))
    ref = reference_forward(x, w1, b1, w2, b2)
    assert out.shape == (B, OUT_DIM)
    assert jnp.allclose(out, ref, atol=2e-3, rtol=2e-3), "mismatch vs reference (B=8)"

    # Ragged-grid check: batch not a multiple of the tile, no host-side padding.
    B2 = 13
    x2 = jax.random.normal(k_x2, (B2, IN_DIM), dtype=jnp.float32)
    out2 = jax.block_until_ready(
        domain_adaptation_forward(x2, w1, b1, w2, b2, tm=8))
    ref2 = reference_forward(x2, w1, b1, w2, b2)
    assert out2.shape == (B2, OUT_DIM)
    assert jnp.allclose(out2, ref2, atol=2e-3, rtol=2e-3), "mismatch vs reference (B=13)"

    print("KERNEL_OK")
</pallas_src>

<mosaic_0001>
module attributes {stable_mosaic.version = 11 : i64} {
  func.func @dan_kernel(%arg0: i32, %arg1: memref<8x4608xf32, #tpu.memory_space<vmem>>, %arg2: memref<4608x256xbf16, #tpu.memory_space<vmem>>, %arg3: memref<1x256xf32, #tpu.memory_space<vmem>>, %arg4: memref<256x9xbf16, #tpu.memory_space<vmem>>, %arg5: memref<1x9xf32, #tpu.memory_space<vmem>>, %arg6: memref<8x9xf32, #tpu.memory_space<vmem>>) attributes {dimension_semantics = [#tpu.dimension_semantics<parallel>], iteration_bounds = array<i64: 1>, scalar_prefetch = 0 : i64, scratch_operands = 0 : i64, tpu.core_type = #tpu.core_type<tc>, window_params = [{transform_indices = @transform_0, window_bounds = array<i64: 8, 4608>}, {pipeline_mode = #tpu.pipeline_mode<synchronous>, transform_indices = @transform_1, window_bounds = array<i64: 4608, 256>}, {pipeline_mode = #tpu.pipeline_mode<synchronous>, transform_indices = @transform_2, window_bounds = array<i64: 1, 256>}, {pipeline_mode = #tpu.pipeline_mode<synchronous>, transform_indices = @transform_3, window_bounds = array<i64: 256, 9>}, {pipeline_mode = #tpu.pipeline_mode<synchronous>, transform_indices = @transform_4, window_bounds = array<i64: 1, 9>}, {transform_indices = @transform_5, window_bounds = array<i64: 8, 9>}]} {
    %c0 = arith.constant 0 : index
    %c0_0 = arith.constant 0 : index
    %0 = vector.load %arg1[%c0, %c0_0] : memref<8x4608xf32, #tpu.memory_space<vmem>>, vector<8x4608xf32>
    %1 = arith.truncf %0 : vector<8x4608xf32> to vector<8x4608xbf16>
    %c0_1 = arith.constant 0 : index
    %c0_2 = arith.constant 0 : index
    %2 = vector.load %arg2[%c0_1, %c0_2] : memref<4608x256xbf16, #tpu.memory_space<vmem>>, vector<4608x256xbf16>
    %cst = arith.constant dense<0.000000e+00> : vector<8x256xf32>
    %3 = tpu.matmul %1, %2, %cst {dimension_numbers = #tpu.dot_dimension_numbers<[1], [0], [0], [1], [0, 0, 1, 1], [], []>} : vector<8x4608xbf16>, vector<4608x256xbf16>, vector<8x256xf32> -> vector<8x256xf32>
    %c0_3 = arith.constant 0 : index
    %c0_4 = arith.constant 0 : index
    %4 = vector.load %arg3[%c0_3, %c0_4] : memref<1x256xf32, #tpu.memory_space<vmem>>, vector<1x256xf32>
    %5 = vector.broadcast %4 : vector<1x256xf32> to vector<8x256xf32>
    %6 = arith.addf %3, %5 : vector<8x256xf32>
    %cst_5 = arith.constant 0.000000e+00 : f32
    %7 = vector.broadcast %cst_5 : f32 to vector<8x256xf32>
    %8 = arith.maximumf %6, %7 : vector<8x256xf32>
    %9 = arith.truncf %8 : vector<8x256xf32> to vector<8x256xbf16>
    %c0_6 = arith.constant 0 : index
    %c0_7 = arith.constant 0 : index
    %10 = vector.load %arg4[%c0_6, %c0_7] : memref<256x9xbf16, #tpu.memory_space<vmem>>, vector<256x9xbf16>
    %cst_8 = arith.constant dense<0.000000e+00> : vector<8x9xf32>
    %11 = tpu.matmul %9, %10, %cst_8 {dimension_numbers = #tpu.dot_dimension_numbers<[1], [0], [0], [1], [0, 0, 1, 1], [], []>} : vector<8x256xbf16>, vector<256x9xbf16>, vector<8x9xf32> -> vector<8x9xf32>
    %c0_9 = arith.constant 0 : index
    %c0_10 = arith.constant 0 : index
    %12 = vector.load %arg5[%c0_9, %c0_10] : memref<1x9xf32, #tpu.memory_space<vmem>>, vector<1x9xf32>
    %13 = vector.broadcast %12 : vector<1x9xf32> to vector<8x9xf32>
    %14 = arith.addf %11, %13 : vector<8x9xf32>
    %cst_11 = arith.constant 0.000000e+00 : f32
    %15 = vector.broadcast %cst_11 : f32 to vector<8x9xf32>
    %16 = arith.subf %15, %14 : vector<8x9xf32>
    %17 = math.exp %16 : vector<8x9xf32>
    %cst_12 = arith.constant 1.000000e+00 : f32
    %18 = vector.broadcast %cst_12 : f32 to vector<8x9xf32>
    %19 = arith.addf %18, %17 : vector<8x9xf32>
    %20 = tpu.reciprocal %19 {approx = true} : vector<8x9xf32> -> vector<8x9xf32>
    %c0_13 = arith.constant 0 : index
    %c0_14 = arith.constant 0 : index
    %21 = vector.load %arg6[%c0_13, %c0_14] : memref<8x9xf32, #tpu.memory_space<vmem>>, vector<8x9xf32>
    tpu.vector_store %arg6[%c0_13, %c0_14], %20 {strides = array<i32>} : memref<8x9xf32, #tpu.memory_space<vmem>>, vector<8x9xf32>,
    return
  }
  func.func @transform_0(%arg0: i32) -> (i32, i32) {
    %c0_i32 = arith.constant 0 : i32
    %c0_i32_0 = arith.constant 0 : i32
    return %arg0, %c0_i32 : i32, i32
  }
  func.func @transform_1(%arg0: i32) -> (i32, i32) {
    %c0_i32 = arith.constant 0 : i32
    %c0_i32_0 = arith.constant 0 : i32
    %c0_i32_1 = arith.constant 0 : i32
    return %c0_i32, %c0_i32_0 : i32, i32
  }
  func.func @transform_2(%arg0: i32) -> (i32, i32) {
    %c0_i32 = arith.constant 0 : i32
    %c0_i32_0 = arith.constant 0 : i32
    %c0_i32_1 = arith.constant 0 : i32
    return %c0_i32, %c0_i32_0 : i32, i32
  }
  func.func @transform_3(%arg0: i32) -> (i32, i32) {
    %c0_i32 = arith.constant 0 : i32
    %c0_i32_0 = arith.constant 0 : i32
    %c0_i32_1 = arith.constant 0 : i32
    return %c0_i32, %c0_i32_0 : i32, i32
  }
  func.func @transform_4(%arg0: i32) -> (i32, i32) {
    %c0_i32 = arith.constant 0 : i32
    %c0_i32_0 = arith.constant 0 : i32
    %c0_i32_1 = arith.constant 0 : i32
    return %c0_i32, %c0_i32_0 : i32, i32
  }
  func.func @transform_5(%arg0: i32) -> (i32, i32) {
    %c0_i32 = arith.constant 0 : i32
    %c0_i32_0 = arith.constant 0 : i32
    return %arg0, %c0_i32 : i32, i32
  }
}

</mosaic_0001>

<llo_original>
// kernel: domain_adaptation_forward.1
$region0: #{domain_adaptation_forward.1}
  #allocation0 [shape = 'u32[]', space=smem, size = 0x4, offset = 0x4, fixed_abs, tag = 'smem constant byte address 0x4 - core index']
  #allocation1 [shape = 'u32[144,128]{1,0:T(1,128)}', space=vmem, size = 0x12000, scoped, tag = 'internal scratch']
  %s0 = inlined_call_operand.hbm [shape: f32[8,4608], index: 0, kind: input, shape index: {}]
  %s1 = inlined_call_operand.hbm [shape: bf16[4608,256], index: 1, kind: input, shape index: {}]
  %s2 = inlined_call_operand.hbm [shape: f32[1,256], index: 2, kind: input, shape index: {}]
  %s3 = inlined_call_operand.vmem [shape: bf16[256,9], index: 3, kind: input, shape index: {}]
  %s4 = inlined_call_operand.hbm [shape: f32[1,9], index: 4, kind: input, shape index: {}]
  %s5 = inlined_call_operand.hbm [shape: f32[8,9], index: 5, kind: output, shape index: {}]
  %s6 = sld [smem:[#allocation0]]
  $region46: #{domain_adaptation_forward.1} parent=0
    _
  %s8 = ssub.s32 1, %s6
  %s9 = scalar_select 0, %s8, %s6
  $region1: #{domain_adaptation_forward.1} parent=0
    #allocation2 [shape = 'u8[147456]{0}', space=vmem, size = 0x24000, scoped, tag = 'input window, operand 0, single buffered']
    #allocation3 [shape = 's32[1]{0}', space=sflag, size = 0x4, scoped, tag = 'scoped memory for domain_adaptation_forward.1']
    #allocation4 [shape = 's32[1]{0}', space=sflag, size = 0x4, scoped, tag = 'scoped memory for domain_adaptation_forward.1']
    #allocation5 [shape = 'u8[2359296]{0}', space=vmem, size = 0x240000, scoped, tag = 'input window, operand 1, single buffered']
    #allocation6 [shape = 's32[1]{0}', space=sflag, size = 0x4, scoped, tag = 'scoped memory for domain_adaptation_forward.1']
    #allocation7 [shape = 'u8[1024]{0}', space=vmem, size = 0x400, scoped, tag = 'input window, operand 2, single buffered']
    #allocation8 [shape = 'u8[512]{0}', space=vmem, size = 0x400, scoped, tag = 'input window, operand 4, single buffered']
    #allocation9 [shape = 's32[1]{0}', space=sflag, size = 0x4, scoped, tag = 'scoped memory for domain_adaptation_forward.1']
    #allocation10 [shape = 'u8[4096]{0}', space=vmem, size = 0x1000, scoped, tag = 'output window, operand 0, single buffered']
    %10 = vsyncpa [#allocation3], 0
    %11 = vsyncpa [#allocation6], 0
    %12 = vsyncpa [#allocation9], 0
    %13 = vsyncpa [#allocation4], 0
    // Predicated region
    $region2: #{domain_adaptation_forward.1} parent=1 // pred_check
      _
    $region3: #{domain_adaptation_forward.1} parent=1 // pred_check_branch
      %15 = sbr.rel (0) target = $region5
    $region4: #{domain_adaptation_forward.1} parent=1 // pred_region
      %s17 = ssub.s32 4608, 4608
      %18 = vsyncadd [#allocation3], %s17
      %s20 = sshll.u32 [#allocation2], 4
      %s21 = int_to_ptr.vmem [resolvable:$true] %s20
      %23 = dma.hbm_to_vmem [thread:$0]  %s0, 4608, %s21, [#allocation3]
    $region5: #{domain_adaptation_forward.1} parent=1 // pred_fallthru
      _
    // Predicated region
    $region6: #{domain_adaptation_forward.1} parent=1 // pred_check
      _
    $region7: #{domain_adaptation_forward.1} parent=1 // pred_check_branch
      %25 = sbr.rel (0) target = $region9
    $region8: #{domain_adaptation_forward.1} parent=1 // pred_region
      %s27 = ssub.s32 73728, 73728
      %28 = vsyncadd [#allocation6], %s27
      %s29 = sshll.u32 [#allocation5], 4
      %s30 = int_to_ptr.vmem [resolvable:$true] %s29
      %35 = dma.hbm_to_vmem [thread:$0]  %s1, 73728, %s30, [#allocation6], 128, 128, 8
    $region9: #{domain_adaptation_forward.1} parent=1 // pred_fallthru
      _
    // Predicated region
    $region10: #{domain_adaptation_forward.1} parent=1 // pred_check
      _
    $region11: #{domain_adaptation_forward.1} parent=1 // pred_check_branch
      %37 = sbr.rel (0) target = $region13
    $region12: #{domain_adaptation_forward.1} parent=1 // pred_region
      %s39 = ssub.s32 32, 32
      %40 = vsyncadd [#allocation6], %s39
      %s42 = sshll.u32 [#allocation7], 4
      %s43 = int_to_ptr.vmem [resolvable:$true] %s42
      %45 = dma.hbm_to_vmem [thread:$0]  %s2, 32, %s43, [#allocation6]
    $region13: #{domain_adaptation_forward.1} parent=1 // pred_fallthru
      _
    // Predicated region
    $region14: #{domain_adaptation_forward.1} parent=1 // pred_check
      _
    $region15: #{domain_adaptation_forward.1} parent=1 // pred_check_branch
      %47 = sbr.rel (0) target = $region17
    $region16: #{domain_adaptation_forward.1} parent=1 // pred_region
      _
    $region17: #{domain_adaptation_forward.1} parent=1 // pred_fallthru
      _
    // Predicated region
    $region18: #{domain_adaptation_forward.1} parent=1 // pred_check
      _
    $region19: #{domain_adaptation_forward.1} parent=1 // pred_check_branch
      %49 = sbr.rel (0) target = $region21
    $region20: #{domain_adaptation_forward.1} parent=1 // pred_region
      %s51 = ssub.s32 16, 16
      %52 = vsyncadd [#allocation9], %s51
      %s54 = sshll.u32 [#allocation8], 4
      %s55 = int_to_ptr.vmem [resolvable:$true] %s54
      %57 = dma.hbm_to_vmem [thread:$0]  %s4, 16, %s55, [#allocation9]
    $region21: #{domain_adaptation_forward.1} parent=1 // pred_fallthru
      _
    // Predicated region
    $region22: #{domain_adaptation_forward.1} parent=1 // pred_check
      _
    $region23: #{domain_adaptation_forward.1} parent=1 // pred_check_branch
      %59 = sbr.rel (0) target = $region25
    $region24: #{domain_adaptation_forward.1} parent=1 // pred_region
      %60 = dma.done [#allocation3], 4608
    $region25: #{domain_adaptation_forward.1} parent=1 // pred_fallthru
      _
    // Predicated region
    $region26: #{domain_adaptation_forward.1} parent=1 // pred_check
      _
    $region27: #{domain_adaptation_forward.1} parent=1 // pred_check_branch
      %62 = sbr.rel (0) target = $region29
    $region28: #{domain_adaptation_forward.1} parent=1 // pred_region
      %63 = dma.done [#allocation6], 73728
    $region29: #{domain_adaptation_forward.1} parent=1 // pred_fallthru
      _
    // Predicated region
    $region30: #{domain_adaptation_forward.1} parent=1 // pred_check
      _
    $region31: #{domain_adaptation_forward.1} parent=1 // pred_check_branch
      %65 = sbr.rel (0) target = $region33
    $region32: #{domain_adaptation_forward.1} parent=1 // pred_region
      %66 = dma.done [#allocation6], 32
    $region33: #{domain_adaptation_forward.1} parent=1 // pred_fallthru
      _
    // Predicated region
    $region34: #{domain_adaptation_forward.1} parent=1 // pred_check
      _
    $region35: #{domain_adaptation_forward.1} parent=1 // pred_check_branch
      %68 = sbr.rel (0) target = $region37
    $region36: #{domain_adaptation_forward.1} parent=1 // pred_region
      %69 = dma.done [#allocation9], 16
    $region37: #{domain_adaptation_forward.1} parent=1 // pred_fallthru
      _
    %v71 = vld [vmem:[#allocation2] sm:$0xff]
    %v72 = vld [vmem:[#allocation2 + $0x8] sm:$0xff]
    %v73 = vld [vmem:[#allocation2 + $0x10] sm:$0xff]
    %v74 = vld [vmem:[#allocation2 + $0x18] sm:$0xff]
    %v75 = vld [vmem:[#allocation2 + $0x20] sm:$0xff]
    %v76 = vld [vmem:[#allocation2 + $0x28] sm:$0xff]
    %v77 = vld [vmem:[#allocation2 + $0x30] sm:$0xff]
    %v78 = vld [vmem:[#allocation2 + $0x38] sm:$0xff]
    %v79 = vld [vmem:[#allocation2 + $0x40] sm:$0xff]
    %v80 = vld [vmem:[#allocation2 + $0x48] sm:$0xff]
    %v81 = vld [vmem:[#allocation2 + $0x50] sm:$0xff]
    %v82 = vld [vmem:[#allocation2 + $0x58] sm:$0xff]
    %v83 = vld [vmem:[#allocation2 + $0x60] sm:$0xff]
    %v84 = vld [vmem:[#allocation2 + $0x68] sm:$0xff]
    %v85 = vld [vmem:[#allocation2 + $0x70] sm:$0xff]
    %v86 = vld [vmem:[#allocation2 + $0x78] sm:$0xff]
    %v87 = vld [vmem:[#allocation2 + $0x80] sm:$0xff]
    %v88 = vld [vmem:[#allocation2 + $0x88] sm:$0xff]
    %v89 = vld [vmem:[#allocation2 + $0x90] sm:$0xff]
    %v90 = vld [vmem:[#allocation2 + $0x98] sm:$0xff]
    %v91 = vld [vmem:[#allocation2 + $0xa0] sm:$0xff]
    %v92 = vld [vmem:[#allocation2 + $0xa8] sm:$0xff]
    %v93 = vld [vmem:[#allocation2 + $0xb0] sm:$0xff]
    %v94 = vld [vmem:[#allocation2 + $0xb8] sm:$0xff]
    %v95 = vld [vmem:[#allocation2 + $0xc0] sm:$0xff]
    %v96 = vld [vmem:[#allocation2 + $0xc8] sm:$0xff]
    %v97 = vld [vmem:[#allocation2 + $0xd0] sm:$0xff]
    %v98 = vld [vmem:[#allocation2 + $0xd8] sm:$0xff]
    %v99 = vld [vmem:[#allocation2 + $0xe0] sm:$0xff]
    %v100 = vld [vmem:[#allocation2 + $0xe8] sm:$0xff]
    %v101 = vld [vmem:[#allocation2 + $0xf0] sm:$0xff]
    %v102 = vld [vmem:[#allocation2 + $0xf8] sm:$0xff]
    %v103 = vld [vmem:[#allocation2 + $0x100] sm:$0xff]
    %v104 = vld [vmem:[#allocation2 + $0x108] sm:$0xff]
    %v105 = vld [vmem:[#allocation2 + $0x110] sm:$0xff]
    %v106 = vld [vmem:[#allocation2 + $0x118] sm:$0xff]
    %v107 = vpack.c.bf16 %v71, %v71
    %v108 = vpack.c.bf16 %v72, %v72
    %v109 = vpack.c.bf16 %v73, %v73
    %v110 = vpack.c.bf16 %v74, %v74
    %v111 = vpack.c.bf16 %v75, %v75
    %v112 = vpack.c.bf16 %v76, %v76
    %v113 = vpack.c.bf16 %v77, %v77
    %v114 = vpack.c.bf16 %v78, %v78
    %v115 = vpack.c.bf16 %v79, %v79
    %v116 = vpack.c.bf16 %v80, %v80
    %v117 = vpack.c.bf16 %v81, %v81
    %v118 = vpack.c.bf16 %v82, %v82
    %v119 = vpack.c.bf16 %v83, %v83
    %v120 = vpack.c.bf16 %v84, %v84
    %v121 = vpack.c.bf16 %v85, %v85
    %v122 = vpack.c.bf16 %v86, %v86
    %v123 = vpack.c.bf16 %v87, %v87
    %v124 = vpack.c.bf16 %v88, %v88
    %v125 = vpack.c.bf16 %v89, %v89
    %v126 = vpack.c.bf16 %v90, %v90
    %v127 = vpack.c.bf16 %v91, %v91
    %v128 = vpack.c.bf16 %v92, %v92
    %v129 = vpack.c.bf16 %v93, %v93
    %v130 = vpack.c.bf16 %v94, %v94
    %v131 = vpack.c.bf16 %v95, %v95
    %v132 = vpack.c.bf16 %v96, %v96
    %v133 = vpack.c.bf16 %v97, %v97
    %v134 = vpack.c.bf16 %v98, %v98
    %v135 = vpack.c.bf16 %v99, %v99
    %v136 = vpack.c.bf16 %v100, %v100
    %v137 = vpack.c.bf16 %v101, %v101
    %v138 = vpack.c.bf16 %v102, %v102
    %v139 = vpack.c.bf16 %v103, %v103
    %v140 = vpack.c.bf16 %v104, %v104
    %v141 = vpack.c.bf16 %v105, %v105
    %v142 = vpack.c.bf16 %v106, %v106
    %v143 = vld [vmem:[#allocation5] sm:$0xff]
    %v144 = vld [vmem:[#allocation5 + $0x8] sm:$0xff]
    %v145 = vld [vmem:[#allocation5 + $0x10] sm:$0xff]
    %v146 = vld [vmem:[#allocation5 + $0x18] sm:$0xff]
    %v147 = vld [vmem:[#allocation5 + $0x20] sm:$0xff]
    %v148 = vld [vmem:[#allocation5 + $0x28] sm:$0xff]
    %v149 = vld [vmem:[#allocation5 + $0x30] sm:$0xff]
    %v150 = vld [vmem:[#allocation5 + $0x38] sm:$0xff]
    %v151 = vld [vmem:[#allocation5 + $0x40] sm:$0xff]
    %v152 = vld [vmem:[#allocation5 + $0x48] sm:$0xff]
    %v153 = vld [vmem:[#allocation5 + $0x50] sm:$0xff]
    %v154 = vld [vmem:[#allocation5 + $0x58] sm:$0xff]
    %v155 = vld [vmem:[#allocation5 + $0x60] sm:$0xff]
    %v156 = vld [vmem:[#allocation5 + $0x68] sm:$0xff]
    %v157 = vld [vmem:[#allocation5 + $0x70] sm:$0xff]
    %v158 = vld [vmem:[#allocation5 + $0x78] sm:$0xff]
    %v159 = vld [vmem:[#allocation5 + $0x80] sm:$0xff]
    %v160 = vld [vmem:[#allocation5 + $0x88] sm:$0xff]
    %v161 = vld [vmem:[#allocation5 + $0x90] sm:$0xff]
    %v162 = vld [vmem:[#allocation5 + $0x98] sm:$0xff]
    %v163 = vld [vmem:[#allocation5 + $0xa0] sm:$0xff]
    %v164 = vld [vmem:[#allocation5 + $0xa8] sm:$0xff]
    %v165 = vld [vmem:[#allocation5 + $0xb0] sm:$0xff]
    %v166 = vld [vmem:[#allocation5 + $0xb8] sm:$0xff]
    %v167 = vld [vmem:[#allocation5 + $0xc0] sm:$0xff]
    %v168 = vld [vmem:[#allocation5 + $0xc8] sm:$0xff]
    %v169 = vld [vmem:[#allocation5 + $0xd0] sm:$0xff]
    %v170 = vld [vmem:[#allocation5 + $0xd8] sm:$0xff]
    %v171 = vld [vmem:[#allocation5 + $0xe0] sm:$0xff]
    %v172 = vld [vmem:[#allocation5 + $0xe8] sm:$0xff]
    %v173 = vld [vmem:[#allocation5 + $0xf0] sm:$0xff]
    %v174 = vld [vmem:[#allocation5 + $0xf8] sm:$0xff]
    %v175 = vld [vmem:[#allocation5 + $0x100] sm:$0xff]
    %v176 = vld [vmem:[#allocation5 + $0x108] sm:$0xff]
    %v177 = vld [vmem:[#allocation5 + $0x110] sm:$0xff]
    %v178 = vld [vmem:[#allocation5 + $0x118] sm:$0xff]
    %v179 = vld [vmem:[#allocation5 + $0x120] sm:$0xff]
    %v180 = vld [vmem:[#allocation5 + $0x128] sm:$0xff]
    %v181 = vld [vmem:[#allocation5 + $0x130] sm:$0xff]
    %v182 = vld [vmem:[#allocation5 + $0x138] sm:$0xff]
    %v183 = vld [vmem:[#allocation5 + $0x140] sm:$0xff]
    %v184 = vld [vmem:[#allocation5 + $0x148] sm:$0xff]
    %v185 = vld [vmem:[#allocation5 + $0x150] sm:$0xff]
    %v186 = vld [vmem:[#allocation5 + $0x158] sm:$0xff]
    %v187 = vld [vmem:[#allocation5 + $0x160] sm:$0xff]
    %v188 = vld [vmem:[#allocation5 + $0x168] sm:$0xff]
    %v189 = vld [vmem:[#allocation5 + $0x170] sm:$0xff]
    %v190 = vld [vmem:[#allocation5 + $0x178] sm:$0xff]
    %v191 = vld [vmem:[#allocation5 + $0x180] sm:$0xff]
    %v192 = vld [vmem:[#allocation5 + $0x188] sm:$0xff]
    %v193 = vld [vmem:[#allocation5 + $0x190] sm:$0xff]
    %v194 = vld [vmem:[#allocation5 + $0x198] sm:$0xff]
    %v195 = vld [vmem:[#allocation5 + $0x1a0] sm:$0xff]
    %v196 = vld [vmem:[#allocation5 + $0x1a8] sm:$0xff]
    %v197 = vld [vmem:[#allocation5 + $0x1b0] sm:$0xff]
    %v198 = vld [vmem:[#allocation5 + $0x1b8] sm:$0xff]
    %v199 = vld [vmem:[#allocation5 + $0x1c0] sm:$0xff]
    %v200 = vld [vmem:[#allocation5 + $0x1c8] sm:$0xff]
    %v201 = vld [vmem:[#allocation5 + $0x1d0] sm:$0xff]
    %v202 = vld [vmem:[#allocation5 + $0x1d8] sm:$0xff]
    %v203 = vld [vmem:[#allocation5 + $0x1e0] sm:$0xff]
    %v204 = vld [vmem:[#allocation5 + $0x1e8] sm:$0xff]
    %v205 = vld [vmem:[#allocation5 + $0x1f0] sm:$0xff]
    %v206 = vld [vmem:[#allocation5 + $0x1f8] sm:$0xff]
    %v207 = vld [vmem:[#allocation5 + $0x200] sm:$0xff]
    %v208 = vld [vmem:[#allocation5 + $0x208] sm:$0xff]
    %v209 = vld [vmem:[#allocation5 + $0x210] sm:$0xff]
    %v210 = vld [vmem:[#allocation5 + $0x218] sm:$0xff]
    %v211 = vld [vmem:[#allocation5 + $0x220] sm:$0xff]
    %v212 = vld [vmem:[#allocation5 + $0x228] sm:$0xff]
    %v213 = vld [vmem:[#allocation5 + $0x230] sm:$0xff]
    %v214 = vld [vmem:[#allocation5 + $0x238] sm:$0xff]
    %v215 = vld [vmem:[#allocation5 + $0x240] sm:$0xff]
    %v216 = vld [vmem:[#allocation5 + $0x248] sm:$0xff]
    %v217 = vld [vmem:[#allocation5 + $0x250] sm:$0xff]
    %v218 = vld [vmem:[#allocation5 + $0x258] sm:$0xff]
    %v219 = vld [vmem:[#allocation5 + $0x260] sm:$0xff]
    %v220 = vld [vmem:[#allocation5 + $0x268] sm:$0xff]
    %v221 = vld [vmem:[#allocation5 + $0x270] sm:$0xff]
    %v222 = vld [vmem:[#allocation5 + $0x278] sm:$0xff]
    %v223 = vld [vmem:[#allocation5 + $0x280] sm:$0xff]
    %v224 = vld [vmem:[#allocation5 + $0x288] sm:$0xff]
    %v225 = vld [vmem:[#allocation5 + $0x290] sm:$0xff]
    %v226 = vld [vmem:[#allocation5 + $0x298] sm:$0xff]
    %v227 = vld [vmem:[#allocation5 + $0x2a0] sm:$0xff]
    %v228 = vld [vmem:[#allocation5 + $0x2a8] sm:$0xff]
    %v229 = vld [vmem:[#allocation5 + $0x2b0] sm:$0xff]
    %v230 = vld [vmem:[#allocation5 + $0x2b8] sm:$0xff]
    %v231 = vld [vmem:[#allocation5 + $0x2c0] sm:$0xff]
    %v232 = vld [vmem:[#allocation5 + $0x2c8] sm:$0xff]
    %v233 = vld [vmem:[#allocation5 + $0x2d0] sm:$0xff]
    %v234 = vld [vmem:[#allocation5 + $0x2d8] sm:$0xff]
    %v235 = vld [vmem:[#allocation5 + $0x2e0] sm:$0xff]
    %v236 = vld [vmem:[#allocation5 + $0x2e8] sm:$0xff]
    %v237 = vld [vmem:[#allocation5 + $0x2f0] sm:$0xff]
    %v238 = vld [vmem:[#allocation5 + $0x2f8] sm:$0xff]
    %v239 = vld [vmem:[#allocation5 + $0x300] sm:$0xff]
    %v240 = vld [vmem:[#allocation5 + $0x308] sm:$0xff]
    %v241 = vld [vmem:[#allocation5 + $0x310] sm:$0xff]
    %v242 = vld [vmem:[#allocation5 + $0x318] sm:$0xff]
    %v243 = vld [vmem:[#allocation5 + $0x320] sm:$0xff]
    %v244 = vld [vmem:[#allocation5 + $0x328] sm:$0xff]
    %v245 = vld [vmem:[#allocation5 + $0x330] sm:$0xff]
    %v246 = vld [vmem:[#allocation5 + $0x338] sm:$0xff]
    %v247 = vld [vmem:[#allocation5 + $0x340] sm:$0xff]
    %v248 = vld [vmem:[#allocation5 + $0x348] sm:$0xff]
    %v249 = vld [vmem:[#allocation5 + $0x350] sm:$0xff]
    %v250 = vld [vmem:[#allocation5 + $0x358] sm:$0xff]
    %v251 = vld [vmem:[#allocation5 + $0x360] sm:$0xff]
    %v252 = vld [vmem:[#allocation5 + $0x368] sm:$0xff]
    %v253 = vld [vmem:[#allocation5 + $0x370] sm:$0xff]
    %v254 = vld [vmem:[#allocation5 + $0x378] sm:$0xff]
    %v255 = vld [vmem:[#allocation5 + $0x380] sm:$0xff]
    %v256 = vld [vmem:[#allocation5 + $0x388] sm:$0xff]
    %v257 = vld [vmem:[#allocation5 + $0x390] sm:$0xff]
    %v258 = vld [vmem:[#allocation5 + $0x398] sm:$0xff]
    %v259 = vld [vmem:[#allocation5 + $0x3a0] sm:$0xff]
    %v260 = vld [vmem:[#allocation5 + $0x3a8] sm:$0xff]
    %v261 = vld [vmem:[#allocation5 + $0x3b0] sm:$0xff]
    %v262 = vld [vmem:[#allocation5 + $0x3b8] sm:$0xff]
    %v263 = vld [vmem:[#allocation5 + $0x3c0] sm:$0xff]
    %v264 = vld [vmem:[#allocation5 + $0x3c8] sm:$0xff]
    %v265 = vld [vmem:[#allocation5 + $0x3d0] sm:$0xff]
    %v266 = vld [vmem:[#allocation5 + $0x3d8] sm:$0xff]
    %v267 = vld [vmem:[#allocation5 + $0x3e0] sm:$0xff]
    %v268 = vld [vmem:[#allocation5 + $0x3e8] sm:$0xff]
    %v269 = vld [vmem:[#allocation5 + $0x3f0] sm:$0xff]
    %v270 = vld [vmem:[#allocation5 + $0x3f8] sm:$0xff]
    %v271 = vld [vmem:[#allocation5 + $0x400] sm:$0xff]
    %v272 = vld [vmem:[#allocation5 + $0x408] sm:$0xff]
    %v273 = vld [vmem:[#allocation5 + $0x410] sm:$0xff]
    %v274 = vld [vmem:[#allocation5 + $0x418] sm:$0xff]
    %v275 = vld [vmem:[#allocation5 + $0x420] sm:$0xff]
    %v276 = vld [vmem:[#allocation5 + $0x428] sm:$0xff]
    %v277 = vld [vmem:[#allocation5 + $0x430] sm:$0xff]
    %v278 = vld [vmem:[#allocation5 + $0x438] sm:$0xff]
    %v279 = vld [vmem:[#allocation5 + $0x440] sm:$0xff]
    %v280 = vld [vmem:[#allocation5 + $0x448] sm:$0xff]
    %v281 = vld [vmem:[#allocation5 + $0x450] sm:$0xff]
    %v282 = vld [vmem:[#allocation5 + $0x458] sm:$0xff]
    %v283 = vld [vmem:[#allocation5 + $0x460] sm:$0xff]
    %v284 = vld [vmem:[#allocation5 + $0x468] sm:$0xff]
    %v285 = vld [vmem:[#allocation5 + $0x470] sm:$0xff]
    %v286 = vld [vmem:[#allocation5 + $0x478] sm:$0xff]
    %v287 = vld [vmem:[#allocation5 + $0x480] sm:$0xff]
    %v288 = vld [vmem:[#allocation5 + $0x488] sm:$0xff]
    %v289 = vld [vmem:[#allocation5 + $0x490] sm:$0xff]
    %v290 = vld [vmem:[#allocation5 + $0x498] sm:$0xff]
    %v291 = vld [vmem:[#allocation5 + $0x4a0] sm:$0xff]
    %v292 = vld [vmem:[#allocation5 + $0x4a8] sm:$0xff]
    %v293 = vld [vmem:[#allocation5 + $0x4b0] sm:$0xff]
    %v294 = vld [vmem:[#allocation5 + $0x4b8] sm:$0xff]
    %v295 = vld [vmem:[#allocation5 + $0x4c0] sm:$0xff]
    %v296 = vld [vmem:[#allocation5 + $0x4c8] sm:$0xff]
    %v297 = vld [vmem:[#allocation5 + $0x4d0] sm:$0xff]
    %v298 = vld [vmem:[#allocation5 + $0x4d8] sm:$0xff]
    %v299 = vld [vmem:[#allocation5 + $0x4e0] sm:$0xff]
    %v300 = vld [vmem:[#allocation5 + $0x4e8] sm:$0xff]
    %v301 = vld [vmem:[#allocation5 + $0x4f0] sm:$0xff]
    %v302 = vld [vmem:[#allocation5 + $0x4f8] sm:$0xff]
    %v303 = vld [vmem:[#allocation5 + $0x500] sm:$0xff]
    %v304 = vld [vmem:[#allocation5 + $0x508] sm:$0xff]
    %v305 = vld [vmem:[#allocation5 + $0x510] sm:$0xff]
    %v306 = vld [vmem:[#allocation5 + $0x518] sm:$0xff]
    %v307 = vld [vmem:[#allocation5 + $0x520] sm:$0xff]
    %v308 = vld [vmem:[#allocation5 + $0x528] sm:$0xff]
    %v309 = vld [vmem:[#allocation5 + $0x530] sm:$0xff]
    %v310 = vld [vmem:[#allocation5 + $0x538] sm:$0xff]
    %v311 = vld [vmem:[#allocation5 + $0x540] sm:$0xff]
    %v312 = vld [vmem:[#allocation5 + $0x548] sm:$0xff]
    %v313 = vld [vmem:[#allocation5 + $0x550] sm:$0xff]
    %v314 = vld [vmem:[#allocation5 + $0x558] sm:$0xff]
    %v315 = vld [vmem:[#allocation5 + $0x560] sm:$0xff]
    %v316 = vld [vmem:[#allocation5 + $0x568] sm:$0xff]
    %v317 = vld [vmem:[#allocation5 + $0x570] sm:$0xff]
    %v318 = vld [vmem:[#allocation5 + $0x578] sm:$0xff]
    %v319 = vld [vmem:[#allocation5 + $0x580] sm:$0xff]
    %v320 = vld [vmem:[#allocation5 + $0x588] sm:$0xff]
    %v321 = vld [vmem:[#allocation5 + $0x590] sm:$0xff]
    %v322 = vld [vmem:[#allocation5 + $0x598] sm:$0xff]
    %v323 = vld [vmem:[#allocation5 + $0x5a0] sm:$0xff]
    %v324 = vld [vmem:[#allocation5 + $0x5a8] sm:$0xff]
    %v325 = vld [vmem:[#allocation5 + $0x5b0] sm:$0xff]
    %v326 = vld [vmem:[#allocation5 + $0x5b8] sm:$0xff]
    %v327 = vld [vmem:[#allocation5 + $0x5c0] sm:$0xff]
    %v328 = vld [vmem:[#allocation5 + $0x5c8] sm:$0xff]
    %v329 = vld [vmem:[#allocation5 + $0x5d0] sm:$0xff]
    %v330 = vld [vmem:[#allocation5 + $0x5d8] sm:$0xff]
    %v331 = vld [vmem:[#allocation5 + $0x5e0] sm:$0xff]
    %v332 = vld [vmem:[#allocation5 + $0x5e8] sm:$0xff]
    %v333 = vld [vmem:[#allocation5 + $0x5f0] sm:$0xff]
    %v334 = vld [vmem:[#allocation5 + $0x5f8] sm:$0xff]
    %v335 = vld [vmem:[#allocation5 + $0x600] sm:$0xff]
    %v336 = vld [vmem:[#allocation5 + $0x608] sm:$0xff]
    %v337 = vld [vmem:[#allocation5 + $0x610] sm:$0xff]
    %v338 = vld [vmem:[#allocation5 + $0x618] sm:$0xff]
    %v339 = vld [vmem:[#allocation5 + $0x620] sm:$0xff]
    %v340 = vld [vmem:[#allocation5 + $0x628] sm:$0xff]
    %v341 = vld [vmem:[#allocation5 + $0x630] sm:$0xff]
    %v342 = vld [vmem:[#allocation5 + $0x638] sm:$0xff]
    %v343 = vld [vmem:[#allocation5 + $0x640] sm:$0xff]
    %v344 = vld [vmem:[#allocation5 + $0x648] sm:$0xff]
    %v345 = vld [vmem:[#allocation5 + $0x650] sm:$0xff]
    %v346 = vld [vmem:[#allocation5 + $0x658] sm:$0xff]
    %v347 = vld [vmem:[#allocation5 + $0x660] sm:$0xff]
    %v348 = vld [vmem:[#allocation5 + $0x668] sm:$0xff]
    %v349 = vld [vmem:[#allocation5 + $0x670] sm:$0xff]
    %v350 = vld [vmem:[#allocation5 + $0x678] sm:$0xff]
    %v351 = vld [vmem:[#allocation5 + $0x680] sm:$0xff]
    %v352 = vld [vmem:[#allocation5 + $0x688] sm:$0xff]
    %v353 = vld [vmem:[#allocation5 + $0x690] sm:$0xff]
    %v354 = vld [vmem:[#allocation5 + $0x698] sm:$0xff]
    %v355 = vld [vmem:[#allocation5 + $0x6a0] sm:$0xff]
    %v356 = vld [vmem:[#allocation5 + $0x6a8] sm:$0xff]
    %v357 = vld [vmem:[#allocation5 + $0x6b0] sm:$0xff]
    %v358 = vld [vmem:[#allocation5 + $0x6b8] sm:$0xff]
    %v359 = vld [vmem:[#allocation5 + $0x6c0] sm:$0xff]
    %v360 = vld [vmem:[#allocation5 + $0x6c8] sm:$0xff]
    %v361 = vld [vmem:[#allocation5 + $0x6d0] sm:$0xff]
    %v362 = vld [vmem:[#allocation5 + $0x6d8] sm:$0xff]
    %v363 = vld [vmem:[#allocation5 + $0x6e0] sm:$0xff]
    %v364 = vld [vmem:[#allocation5 + $0x6e8] sm:$0xff]
    %v365 = vld [vmem:[#allocation5 + $0x6f0] sm:$0xff]
    %v366 = vld [vmem:[#allocation5 + $0x6f8] sm:$0xff]
    %v367 = vld [vmem:[#allocation5 + $0x700] sm:$0xff]
    %v368 = vld [vmem:[#allocation5 + $0x708] sm:$0xff]
    %v369 = vld [vmem:[#allocation5 + $0x710] sm:$0xff]
    %v370 = vld [vmem:[#allocation5 + $0x718] sm:$0xff]
    %v371 = vld [vmem:[#allocation5 + $0x720] sm:$0xff]
    %v372 = vld [vmem:[#allocation5 + $0x728] sm:$0xff]
    %v373 = vld [vmem:[#allocation5 + $0x730] sm:$0xff]
    %v374 = vld [vmem:[#allocation5 + $0x738] sm:$0xff]
    %v375 = vld [vmem:[#allocation5 + $0x740] sm:$0xff]
    %v376 = vld [vmem:[#allocation5 + $0x748] sm:$0xff]
    %v377 = vld [vmem:[#allocation5 + $0x750] sm:$0xff]
    %v378 = vld [vmem:[#allocation5 + $0x758] sm:$0xff]
    %v379 = vld [vmem:[#allocation5 + $0x760] sm:$0xff]
    %v380 = vld [vmem:[#allocation5 + $0x768] sm:$0xff]
    %v381 = vld [vmem:[#allocation5 + $0x770] sm:$0xff]
    %v382 = vld [vmem:[#allocation5 + $0x778] sm:$0xff]
    %v383 = vld [vmem:[#allocation5 + $0x780] sm:$0xff]
    %v384 = vld [vmem:[#allocation5 + $0x788] sm:$0xff]
    %v385 = vld [vmem:[#allocation5 + $0x790] sm:$0xff]
    %v386 = vld [vmem:[#allocation5 + $0x798] sm:$0xff]
    %v387 = vld [vmem:[#allocation5 + $0x7a0] sm:$0xff]
    %v388 = vld [vmem:[#allocation5 + $0x7a8] sm:$0xff]
    %v389 = vld [vmem:[#allocation5 + $0x7b0] sm:$0xff]
    %v390 = vld [vmem:[#allocation5 + $0x7b8] sm:$0xff]
    %v391 = vld [vmem:[#allocation5 + $0x7c0] sm:$0xff]
    %v392 = vld [vmem:[#allocation5 + $0x7c8] sm:$0xff]
    %v393 = vld [vmem:[#allocation5 + $0x7d0] sm:$0xff]
    %v394 = vld [vmem:[#allocation5 + $0x7d8] sm:$0xff]
    %v395 = vld [vmem:[#allocation5 + $0x7e0] sm:$0xff]
    %v396 = vld [vmem:[#allocation5 + $0x7e8] sm:$0xff]
    %v397 = vld [vmem:[#allocation5 + $0x7f0] sm:$0xff]
    %v398 = vld [vmem:[#allocation5 + $0x7f8] sm:$0xff]
    %v399 = vld [vmem:[#allocation5 + $0x800] sm:$0xff]
    %v400 = vld [vmem:[#allocation5 + $0x808] sm:$0xff]
    %v401 = vld [vmem:[#allocation5 + $0x810] sm:$0xff]
    %v402 = vld [vmem:[#allocation5 + $0x818] sm:$0xff]
    %v403 = vld [vmem:[#allocation5 + $0x820] sm:$0xff]
    %v404 = vld [vmem:[#allocation5 + $0x828] sm:$0xff]
    %v405 = vld [vmem:[#allocation5 + $0x830] sm:$0xff]
    %v406 = vld [vmem:[#allocation5 + $0x838] sm:$0xff]
    %v407 = vld [vmem:[#allocation5 + $0x840] sm:$0xff]
    %v408 = vld [vmem:[#allocation5 + $0x848] sm:$0xff]
    %v409 = vld [vmem:[#allocation5 + $0x850] sm:$0xff]
    %v410 = vld [vmem:[#allocation5 + $0x858] sm:$0xff]
    %v411 = vld [vmem:[#allocation5 + $0x860] sm:$0xff]
    %v412 = vld [vmem:[#allocation5 + $0x868] sm:$0xff]
    %v413 = vld [vmem:[#allocation5 + $0x870] sm:$0xff]
    %v414 = vld [vmem:[#allocation5 + $0x878] sm:$0xff]
    %v415 = vld [vmem:[#allocation5 + $0x880] sm:$0xff]
    %v416 = vld [vmem:[#allocation5 + $0x888] sm:$0xff]
    %v417 = vld [vmem:[#allocation5 + $0x890] sm:$0xff]
    %v418 = vld [vmem:[#allocation5 + $0x898] sm:$0xff]
    %v419 = vld [vmem:[#allocation5 + $0x8a0] sm:$0xff]
    %v420 = vld [vmem:[#allocation5 + $0x8a8] sm:$0xff]
    %v421 = vld [vmem:[#allocation5 + $0x8b0] sm:$0xff]
    %v422 = vld [vmem:[#allocation5 + $0x8b8] sm:$0xff]
    %v423 = vld [vmem:[#allocation5 + $0x8c0] sm:$0xff]
    %v424 = vld [vmem:[#allocation5 + $0x8c8] sm:$0xff]
    %v425 = vld [vmem:[#allocation5 + $0x8d0] sm:$0xff]
    %v426 = vld [vmem:[#allocation5 + $0x8d8] sm:$0xff]
    %v427 = vld [vmem:[#allocation5 + $0x8e0] sm:$0xff]
    %v428 = vld [vmem:[#allocation5 + $0x8e8] sm:$0xff]
    %v429 = vld [vmem:[#allocation5 + $0x8f0] sm:$0xff]
    %v430 = vld [vmem:[#allocation5 + $0x8f8] sm:$0xff]
    %v431 = vld [vmem:[#allocation5 + $0x900] sm:$0xff]
    %v432 = vld [vmem:[#allocation5 + $0x908] sm:$0xff]
    %v433 = vld [vmem:[#allocation5 + $0x910] sm:$0xff]
    %v434 = vld [vmem:[#allocation5 + $0x918] sm:$0xff]
    %v435 = vld [vmem:[#allocation5 + $0x920] sm:$0xff]
    %v436 = vld [vmem:[#allocation5 + $0x928] sm:$0xff]
    %v437 = vld [vmem:[#allocation5 + $0x930] sm:$0xff]
    %v438 = vld [vmem:[#allocation5 + $0x938] sm:$0xff]
    %v439 = vld [vmem:[#allocation5 + $0x940] sm:$0xff]
    %v440 = vld [vmem:[#allocation5 + $0x948] sm:$0xff]
    %v441 = vld [vmem:[#allocation5 + $0x950] sm:$0xff]
    %v442 = vld [vmem:[#allocation5 + $0x958] sm:$0xff]
    %v443 = vld [vmem:[#allocation5 + $0x960] sm:$0xff]
    %v444 = vld [vmem:[#allocation5 + $0x968] sm:$0xff]
    %v445 = vld [vmem:[#allocation5 + $0x970] sm:$0xff]
    %v446 = vld [vmem:[#allocation5 + $0x978] sm:$0xff]
    %v447 = vld [vmem:[#allocation5 + $0x980] sm:$0xff]
    %v448 = vld [vmem:[#allocation5 + $0x988] sm:$0xff]
    %v449 = vld [vmem:[#allocation5 + $0x990] sm:$0xff]
    %v450 = vld [vmem:[#allocation5 + $0x998] sm:$0xff]
    %v451 = vld [vmem:[#allocation5 + $0x9a0] sm:$0xff]
    %v452 = vld [vmem:[#allocation5 + $0x9a8] sm:$0xff]
    %v453 = vld [vmem:[#allocation5 + $0x9b0] sm:$0xff]
    %v454 = vld [vmem:[#allocation5 + $0x9b8] sm:$0xff]
    %v455 = vld [vmem:[#allocation5 + $0x9c0] sm:$0xff]
    %v456 = vld [vmem:[#allocation5 + $0x9c8] sm:$0xff]
    %v457 = vld [vmem:[#allocation5 + $0x9d0] sm:$0xff]
    %v458 = vld [vmem:[#allocation5 + $0x9d8] sm:$0xff]
    %v459 = vld [vmem:[#allocation5 + $0x9e0] sm:$0xff]
    %v460 = vld [vmem:[#allocation5 + $0x9e8] sm:$0xff]
    %v461 = vld [vmem:[#allocation5 + $0x9f0] sm:$0xff]
    %v462 = vld [vmem:[#allocation5 + $0x9f8] sm:$0xff]
    %v463 = vld [vmem:[#allocation5 + $0xa00] sm:$0xff]
    %v464 = vld [vmem:[#allocation5 + $0xa08] sm:$0xff]
    %v465 = vld [vmem:[#allocation5 + $0xa10] sm:$0xff]
    %v466 = vld [vmem:[#allocation5 + $0xa18] sm:$0xff]
    %v467 = vld [vmem:[#allocation5 + $0xa20] sm:$0xff]
    %v468 = vld [vmem:[#allocation5 + $0xa28] sm:$0xff]
    %v469 = vld [vmem:[#allocation5 + $0xa30] sm:$0xff]
    %v470 = vld [vmem:[#allocation5 + $0xa38] sm:$0xff]
    %v471 = vld [vmem:[#allocation5 + $0xa40] sm:$0xff]
    %v472 = vld [vmem:[#allocation5 + $0xa48] sm:$0xff]
    %v473 = vld [vmem:[#allocation5 + $0xa50] sm:$0xff]
    %v474 = vld [vmem:[#allocation5 + $0xa58] sm:$0xff]
    %v475 = vld [vmem:[#allocation5 + $0xa60] sm:$0xff]
    %v476 = vld [vmem:[#allocation5 + $0xa68] sm:$0xff]
    %v477 = vld [vmem:[#allocation5 + $0xa70] sm:$0xff]
    %v478 = vld [vmem:[#allocation5 + $0xa78] sm:$0xff]
    %v479 = vld [vmem:[#allocation5 + $0xa80] sm:$0xff]
    %v480 = vld [vmem:[#allocation5 + $0xa88] sm:$0xff]
    %v481 = vld [vmem:[#allocation5 + $0xa90] sm:$0xff]
    %v482 = vld [vmem:[#allocation5 + $0xa98] sm:$0xff]
    %v483 = vld [vmem:[#allocation5 + $0xaa0] sm:$0xff]
    %v484 = vld [vmem:[#allocation5 + $0xaa8] sm:$0xff]
    %v485 = vld [vmem:[#allocation5 + $0xab0] sm:$0xff]
    %v486 = vld [vmem:[#allocation5 + $0xab8] sm:$0xff]
    %v487 = vld [vmem:[#allocation5 + $0xac0] sm:$0xff]
    %v488 = vld [vmem:[#allocation5 + $0xac8] sm:$0xff]
    %v489 = vld [vmem:[#allocation5 + $0xad0] sm:$0xff]
    %v490 = vld [vmem:[#allocation5 + $0xad8] sm:$0xff]
    %v491 = vld [vmem:[#allocation5 + $0xae0] sm:$0xff]
    %v492 = vld [vmem:[#allocation5 + $0xae8] sm:$0xff]
    %v493 = vld [vmem:[#allocation5 + $0xaf0] sm:$0xff]
    %v494 = vld [vmem:[#allocation5 + $0xaf8] sm:$0xff]
    %v495 = vld [vmem:[#allocation5 + $0xb00] sm:$0xff]
    %v496 = vld [vmem:[#allocation5 + $0xb08] sm:$0xff]
    %v497 = vld [vmem:[#allocation5 + $0xb10] sm:$0xff]
    %v498 = vld [vmem:[#allocation5 + $0xb18] sm:$0xff]
    %v499 = vld [vmem:[#allocation5 + $0xb20] sm:$0xff]
    %v500 = vld [vmem:[#allocation5 + $0xb28] sm:$0xff]
    %v501 = vld [vmem:[#allocation5 + $0xb30] sm:$0xff]
    %v502 = vld [vmem:[#allocation5 + $0xb38] sm:$0xff]
    %v503 = vld [vmem:[#allocation5 + $0xb40] sm:$0xff]
    %v504 = vld [vmem:[#allocation5 + $0xb48] sm:$0xff]
    %v505 = vld [vmem:[#allocation5 + $0xb50] sm:$0xff]
    %v506 = vld [vmem:[#allocation5 + $0xb58] sm:$0xff]
    %v507 = vld [vmem:[#allocation5 + $0xb60] sm:$0xff]
    %v508 = vld [vmem:[#allocation5 + $0xb68] sm:$0xff]
    %v509 = vld [vmem:[#allocation5 + $0xb70] sm:$0xff]
    %v510 = vld [vmem:[#allocation5 + $0xb78] sm:$0xff]
    %v511 = vld [vmem:[#allocation5 + $0xb80] sm:$0xff]
    %v512 = vld [vmem:[#allocation5 + $0xb88] sm:$0xff]
    %v513 = vld [vmem:[#allocation5 + $0xb90] sm:$0xff]
    %v514 = vld [vmem:[#allocation5 + $0xb98] sm:$0xff]
    %v515 = vld [vmem:[#allocation5 + $0xba0] sm:$0xff]
    %v516 = vld [vmem:[#allocation5 + $0xba8] sm:$0xff]
    %v517 = vld [vmem:[#allocation5 + $0xbb0] sm:$0xff]
    %v518 = vld [vmem:[#allocation5 + $0xbb8] sm:$0xff]
    %v519 = vld [vmem:[#allocation5 + $0xbc0] sm:$0xff]
    %v520 = vld [vmem:[#allocation5 + $0xbc8] sm:$0xff]
    %v521 = vld [vmem:[#allocation5 + $0xbd0] sm:$0xff]
    %v522 = vld [vmem:[#allocation5 + $0xbd8] sm:$0xff]
    %v523 = vld [vmem:[#allocation5 + $0xbe0] sm:$0xff]
    %v524 = vld [vmem:[#allocation5 + $0xbe8] sm:$0xff]
    %v525 = vld [vmem:[#allocation5 + $0xbf0] sm:$0xff]
    %v526 = vld [vmem:[#allocation5 + $0xbf8] sm:$0xff]
    %v527 = vld [vmem:[#allocation5 + $0xc00] sm:$0xff]
    %v528 = vld [vmem:[#allocation5 + $0xc08] sm:$0xff]
    %v529 = vld [vmem:[#allocation5 + $0xc10] sm:$0xff]
    %v530 = vld [vmem:[#allocation5 + $0xc18] sm:$0xff]
    %v531 = vld [vmem:[#allocation5 + $0xc20] sm:$0xff]
    %v532 = vld [vmem:[#allocation5 + $0xc28] sm:$0xff]
    %v533 = vld [vmem:[#allocation5 + $0xc30] sm:$0xff]
    %v534 = vld [vmem:[#allocation5 + $0xc38] sm:$0xff]
    %v535 = vld [vmem:[#allocation5 + $0xc40] sm:$0xff]
    %v536 = vld [vmem:[#allocation5 + $0xc48] sm:$0xff]
    %v537 = vld [vmem:[#allocation5 + $0xc50] sm:$0xff]
    %v538 = vld [vmem:[#allocation5 + $0xc58] sm:$0xff]
    %v539 = vld [vmem:[#allocation5 + $0xc60] sm:$0xff]
    %v540 = vld [vmem:[#allocation5 + $0xc68] sm:$0xff]
    %v541 = vld [vmem:[#allocation5 + $0xc70] sm:$0xff]
    %v542 = vld [vmem:[#allocation5 + $0xc78] sm:$0xff]
    %v543 = vld [vmem:[#allocation5 + $0xc80] sm:$0xff]
    %v544 = vld [vmem:[#allocation5 + $0xc88] sm:$0xff]
    %v545 = vld [vmem:[#allocation5 + $0xc90] sm:$0xff]
    %v546 = vld [vmem:[#allocation5 + $0xc98] sm:$0xff]
    %v547 = vld [vmem:[#allocation5 + $0xca0] sm:$0xff]
    %v548 = vld [vmem:[#allocation5 + $0xca8] sm:$0xff]
    %v549 = vld [vmem:[#allocation5 + $0xcb0] sm:$0xff]
    %v550 = vld [vmem:[#allocation5 + $0xcb8] sm:$0xff]
    %v551 = vld [vmem:[#allocation5 + $0xcc0] sm:$0xff]
    %v552 = vld [vmem:[#allocation5 + $0xcc8] sm:$0xff]
    %v553 = vld [vmem:[#allocation5 + $0xcd0] sm:$0xff]
    %v554 = vld [vmem:[#allocation5 + $0xcd8] sm:$0xff]
    %v555 = vld [vmem:[#allocation5 + $0xce0] sm:$0xff]
    %v556 = vld [vmem:[#allocation5 + $0xce8] sm:$0xff]
    %v557 = vld [vmem:[#allocation5 + $0xcf0] sm:$0xff]
    %v558 = vld [vmem:[#allocation5 + $0xcf8] sm:$0xff]
    %v559 = vld [vmem:[#allocation5 + $0xd00] sm:$0xff]
    %v560 = vld [vmem:[#allocation5 + $0xd08] sm:$0xff]
    %v561 = vld [vmem:[#allocation5 + $0xd10] sm:$0xff]
    %v562 = vld [vmem:[#allocation5 + $0xd18] sm:$0xff]
    %v563 = vld [vmem:[#allocation5 + $0xd20] sm:$0xff]
    %v564 = vld [vmem:[#allocation5 + $0xd28] sm:$0xff]
    %v565 = vld [vmem:[#allocation5 + $0xd30] sm:$0xff]
    %v566 = vld [vmem:[#allocation5 + $0xd38] sm:$0xff]
    %v567 = vld [vmem:[#allocation5 + $0xd40] sm:$0xff]
    %v568 = vld [vmem:[#allocation5 + $0xd48] sm:$0xff]
    %v569 = vld [vmem:[#allocation5 + $0xd50] sm:$0xff]
    %v570 = vld [vmem:[#allocation5 + $0xd58] sm:$0xff]
    %v571 = vld [vmem:[#allocation5 + $0xd60] sm:$0xff]
    %v572 = vld [vmem:[#allocation5 + $0xd68] sm:$0xff]
    %v573 = vld [vmem:[#allocation5 + $0xd70] sm:$0xff]
    %v574 = vld [vmem:[#allocation5 + $0xd78] sm:$0xff]
    %v575 = vld [vmem:[#allocation5 + $0xd80] sm:$0xff]
    %v576 = vld [vmem:[#allocation5 + $0xd88] sm:$0xff]
    %v577 = vld [vmem:[#allocation5 + $0xd90] sm:$0xff]
    %v578 = vld [vmem:[#allocation5 + $0xd98] sm:$0xff]
    %v579 = vld [vmem:[#allocation5 + $0xda0] sm:$0xff]
    %v580 = vld [vmem:[#allocation5 + $0xda8] sm:$0xff]
    %v581 = vld [vmem:[#allocation5 + $0xdb0] sm:$0xff]
    %v582 = vld [vmem:[#allocation5 + $0xdb8] sm:$0xff]
    %v583 = vld [vmem:[#allocation5 + $0xdc0] sm:$0xff]
    %v584 = vld [vmem:[#allocation5 + $0xdc8] sm:$0xff]
    %v585 = vld [vmem:[#allocation5 + $0xdd0] sm:$0xff]
    %v586 = vld [vmem:[#allocation5 + $0xdd8] sm:$0xff]
    %v587 = vld [vmem:[#allocation5 + $0xde0] sm:$0xff]
    %v588 = vld [vmem:[#allocation5 + $0xde8] sm:$0xff]
    %v589 = vld [vmem:[#allocation5 + $0xdf0] sm:$0xff]
    %v590 = vld [vmem:[#allocation5 + $0xdf8] sm:$0xff]
    %v591 = vld [vmem:[#allocation5 + $0xe00] sm:$0xff]
    %v592 = vld [vmem:[#allocation5 + $0xe08] sm:$0xff]
    %v593 = vld [vmem:[#allocation5 + $0xe10] sm:$0xff]
    %v594 = vld [vmem:[#allocation5 + $0xe18] sm:$0xff]
    %v595 = vld [vmem:[#allocation5 + $0xe20] sm:$0xff]
    %v596 = vld [vmem:[#allocation5 + $0xe28] sm:$0xff]
    %v597 = vld [vmem:[#allocation5 + $0xe30] sm:$0xff]
    %v598 = vld [vmem:[#allocation5 + $0xe38] sm:$0xff]
    %v599 = vld [vmem:[#allocation5 + $0xe40] sm:$0xff]
    %v600 = vld [vmem:[#allocation5 + $0xe48] sm:$0xff]
    %v601 = vld [vmem:[#allocation5 + $0xe50] sm:$0xff]
    %v602 = vld [vmem:[#allocation5 + $0xe58] sm:$0xff]
    %v603 = vld [vmem:[#allocation5 + $0xe60] sm:$0xff]
    %v604 = vld [vmem:[#allocation5 + $0xe68] sm:$0xff]
    %v605 = vld [vmem:[#allocation5 + $0xe70] sm:$0xff]
    %v606 = vld [vmem:[#allocation5 + $0xe78] sm:$0xff]
    %v607 = vld [vmem:[#allocation5 + $0xe80] sm:$0xff]
    %v608 = vld [vmem:[#allocation5 + $0xe88] sm:$0xff]
    %v609 = vld [vmem:[#allocation5 + $0xe90] sm:$0xff]
    %v610 = vld [vmem:[#allocation5 + $0xe98] sm:$0xff]
    %v611 = vld [vmem:[#allocation5 + $0xea0] sm:$0xff]
    %v612 = vld [vmem:[#allocation5 + $0xea8] sm:$0xff]
    %v613 = vld [vmem:[#allocation5 + $0xeb0] sm:$0xff]
    %v614 = vld [vmem:[#allocation5 + $0xeb8] sm:$0xff]
    %v615 = vld [vmem:[#allocation5 + $0xec0] sm:$0xff]
    %v616 = vld [vmem:[#allocation5 + $0xec8] sm:$0xff]
    %v617 = vld [vmem:[#allocation5 + $0xed0] sm:$0xff]
    %v618 = vld [vmem:[#allocation5 + $0xed8] sm:$0xff]
    %v619 = vld [vmem:[#allocation5 + $0xee0] sm:$0xff]
    %v620 = vld [vmem:[#allocation5 + $0xee8] sm:$0xff]
    %v621 = vld [vmem:[#allocation5 + $0xef0] sm:$0xff]
    %v622 = vld [vmem:[#allocation5 + $0xef8] sm:$0xff]
    %v623 = vld [vmem:[#allocation5 + $0xf00] sm:$0xff]
    %v624 = vld [vmem:[#allocation5 + $0xf08] sm:$0xff]
    %v625 = vld [vmem:[#allocation5 + $0xf10] sm:$0xff]
    %v626 = vld [vmem:[#allocation5 + $0xf18] sm:$0xff]
    %v627 = vld [vmem:[#allocation5 + $0xf20] sm:$0xff]
    %v628 = vld [vmem:[#allocation5 + $0xf28] sm:$0xff]
    %v629 = vld [vmem:[#allocation5 + $0xf30] sm:$0xff]
    %v630 = vld [vmem:[#allocation5 + $0xf38] sm:$0xff]
    %v631 = vld [vmem:[#allocation5 + $0xf40] sm:$0xff]
    %v632 = vld [vmem:[#allocation5 + $0xf48] sm:$0xff]
    %v633 = vld [vmem:[#allocation5 + $0xf50] sm:$0xff]
    %v634 = vld [vmem:[#allocation5 + $0xf58] sm:$0xff]
    %v635 = vld [vmem:[#allocation5 + $0xf60] sm:$0xff]
    %v636 = vld [vmem:[#allocation5 + $0xf68] sm:$0xff]
    %v637 = vld [vmem:[#allocation5 + $0xf70] sm:$0xff]
    %v638 = vld [vmem:[#allocation5 + $0xf78] sm:$0xff]
    %v639 = vld [vmem:[#allocation5 + $0xf80] sm:$0xff]
    %v640 = vld [vmem:[#allocation5 + $0xf88] sm:$0xff]
    %v641 = vld [vmem:[#allocation5 + $0xf90] sm:$0xff]
    %v642 = vld [vmem:[#allocation5 + $0xf98] sm:$0xff]
    %v643 = vld [vmem:[#allocation5 + $0xfa0] sm:$0xff]
    %v644 = vld [vmem:[#allocation5 + $0xfa8] sm:$0xff]
    %v645 = vld [vmem:[#allocation5 + $0xfb0] sm:$0xff]
    %v646 = vld [vmem:[#allocation5 + $0xfb8] sm:$0xff]
    %v647 = vld [vmem:[#allocation5 + $0xfc0] sm:$0xff]
    %v648 = vld [vmem:[#allocation5 + $0xfc8] sm:$0xff]
    %v649 = vld [vmem:[#allocation5 + $0xfd0] sm:$0xff]
    %v650 = vld [vmem:[#allocation5 + $0xfd8] sm:$0xff]
    %v651 = vld [vmem:[#allocation5 + $0xfe0] sm:$0xff]
    %v652 = vld [vmem:[#allocation5 + $0xfe8] sm:$0xff]
    %v653 = vld [vmem:[#allocation5 + $0xff0] sm:$0xff]
    %v654 = vld [vmem:[#allocation5 + $0xff8] sm:$0xff]
    %v655 = vld [vmem:[#allocation5 + $0x1000] sm:$0xff]
    %v656 = vld [vmem:[#allocation5 + $0x1008] sm:$0xff]
    %v657 = vld [vmem:[#allocation5 + $0x1010] sm:$0xff]
    %v658 = vld [vmem:[#allocation5 + $0x1018] sm:$0xff]
    %v659 = vld [vmem:[#allocation5 + $0x1020] sm:$0xff]
    %v660 = vld [vmem:[#allocation5 + $0x1028] sm:$0xff]
    %v661 = vld [vmem:[#allocation5 + $0x1030] sm:$0xff]
    %v662 = vld [vmem:[#allocation5 + $0x1038] sm:$0xff]
    %v663 = vld [vmem:[#allocation5 + $0x1040] sm:$0xff]
    %v664 = vld [vmem:[#allocation5 + $0x1048] sm:$0xff]
    %v665 = vld [vmem:[#allocation5 + $0x1050] sm:$0xff]
    %v666 = vld [vmem:[#allocation5 + $0x1058] sm:$0xff]
    %v667 = vld [vmem:[#allocation5 + $0x1060] sm:$0xff]
    %v668 = vld [vmem:[#allocation5 + $0x1068] sm:$0xff]
    %v669 = vld [vmem:[#allocation5 + $0x1070] sm:$0xff]
    %v670 = vld [vmem:[#allocation5 + $0x1078] sm:$0xff]
    %v671 = vld [vmem:[#allocation5 + $0x1080] sm:$0xff]
    %v672 = vld [vmem:[#allocation5 + $0x1088] sm:$0xff]
    %v673 = vld [vmem:[#allocation5 + $0x1090] sm:$0xff]
    %v674 = vld [vmem:[#allocation5 + $0x1098] sm:$0xff]
    %v675 = vld [vmem:[#allocation5 + $0x10a0] sm:$0xff]
    %v676 = vld [vmem:[#allocation5 + $0x10a8] sm:$0xff]
    %v677 = vld [vmem:[#allocation5 + $0x10b0] sm:$0xff]
    %v678 = vld [vmem:[#allocation5 + $0x10b8] sm:$0xff]
    %v679 = vld [vmem:[#allocation5 + $0x10c0] sm:$0xff]
    %v680 = vld [vmem:[#allocation5 + $0x10c8] sm:$0xff]
    %v681 = vld [vmem:[#allocation5 + $0x10d0] sm:$0xff]
    %v682 = vld [vmem:[#allocation5 + $0x10d8] sm:$0xff]
    %v683 = vld [vmem:[#allocation5 + $0x10e0] sm:$0xff]
    %v684 = vld [vmem:[#allocation5 + $0x10e8] sm:$0xff]
    %v685 = vld [vmem:[#allocation5 + $0x10f0] sm:$0xff]
    %v686 = vld [vmem:[#allocation5 + $0x10f8] sm:$0xff]
    %v687 = vld [vmem:[#allocation5 + $0x1100] sm:$0xff]
    %v688 = vld [vmem:[#allocation5 + $0x1108] sm:$0xff]
    %v689 = vld [vmem:[#allocation5 + $0x1110] sm:$0xff]
    %v690 = vld [vmem:[#allocation5 + $0x1118] sm:$0xff]
    %v691 = vld [vmem:[#allocation5 + $0x1120] sm:$0xff]
    %v692 = vld [vmem:[#allocation5 + $0x1128] sm:$0xff]
    %v693 = vld [vmem:[#allocation5 + $0x1130] sm:$0xff]
    %v694 = vld [vmem:[#allocation5 + $0x1138] sm:$0xff]
    %v695 = vld [vmem:[#allocation5 + $0x1140] sm:$0xff]
    %v696 = vld [vmem:[#allocation5 + $0x1148] sm:$0xff]
    %v697 = vld [vmem:[#allocation5 + $0x1150] sm:$0xff]
    %v698 = vld [vmem:[#allocation5 + $0x1158] sm:$0xff]
    %v699 = vld [vmem:[#allocation5 + $0x1160] sm:$0xff]
    %v700 = vld [vmem:[#allocation5 + $0x1168] sm:$0xff]
    %v701 = vld [vmem:[#allocation5 + $0x1170] sm:$0xff]
    %v702 = vld [vmem:[#allocation5 + $0x1178] sm:$0xff]
    %v703 = vld [vmem:[#allocation5 + $0x1180] sm:$0xff]
    %v704 = vld [vmem:[#allocation5 + $0x1188] sm:$0xff]
    %v705 = vld [vmem:[#allocation5 + $0x1190] sm:$0xff]
    %v706 = vld [vmem:[#allocation5 + $0x1198] sm:$0xff]
    %v707 = vld [vmem:[#allocation5 + $0x11a0] sm:$0xff]
    %v708 = vld [vmem:[#allocation5 + $0x11a8] sm:$0xff]
    %v709 = vld [vmem:[#allocation5 + $0x11b0] sm:$0xff]
    %v710 = vld [vmem:[#allocation5 + $0x11b8] sm:$0xff]
    %v711 = vld [vmem:[#allocation5 + $0x11c0] sm:$0xff]
    %v712 = vld [vmem:[#allocation5 + $0x11c8] sm:$0xff]
    %v713 = vld [vmem:[#allocation5 + $0x11d0] sm:$0xff]
    %v714 = vld [vmem:[#allocation5 + $0x11d8] sm:$0xff]
    %v715 = vld [vmem:[#allocation5 + $0x11e0] sm:$0xff]
    %v716 = vld [vmem:[#allocation5 + $0x11e8] sm:$0xff]
    %v717 = vld [vmem:[#allocation5 + $0x11f0] sm:$0xff]
    %v718 = vld [vmem:[#allocation5 + $0x11f8] sm:$0xff]
    %v719 = vld [vmem:[#allocation7] sm:$0x3]
    %v721 = vlaneseq
    %v722 = vshrl.u32 %v721, 7
    %v723 = vsub.s32 0, %v722
    %v724 = vrot.slane %v719, %v723
    %v725 = vlaneseq
    %v726 = vshrl.u32 %v725, 7
    %v727 = vsub.s32 1, %v726
    %v728 = vrot.slane %v719, %v727
    %v1307 = vunpack.c.l.b16 %v143
    %v1308 = vunpack.c.h.b16 %v143
    %v1309 = vunpack.c.l.b16 %v144
    %v1310 = vunpack.c.h.b16 %v144
    %v1311 = vunpack.c.l.b16 %v145
    %v1312 = vunpack.c.h.b16 %v145
    %v1313 = vunpack.c.l.b16 %v146
    %v1314 = vunpack.c.h.b16 %v146
    %v1315 = vunpack.c.l.b16 %v147
    %v1316 = vunpack.c.h.b16 %v147
    %v1317 = vunpack.c.l.b16 %v148
    %v1318 = vunpack.c.h.b16 %v148
    %v1319 = vunpack.c.l.b16 %v149
    %v1320 = vunpack.c.h.b16 %v149
    %v1321 = vunpack.c.l.b16 %v150
    %v1322 = vunpack.c.h.b16 %v150
    %v1323 = vunpack.c.l.b16 %v151
    %v1324 = vunpack.c.h.b16 %v151
    %v1325 = vunpack.c.l.b16 %v152
    %v1326 = vunpack.c.h.b16 %v152
    %v1327 = vunpack.c.l.b16 %v153
    %v1328 = vunpack.c.h.b16 %v153
    %v1329 = vunpack.c.l.b16 %v154
    %v1330 = vunpack.c.h.b16 %v154
    %v1331 = vunpack.c.l.b16 %v155
    %v1332 = vunpack.c.h.b16 %v155
    %v1333 = vunpack.c.l.b16 %v156
    %v1334 = vunpack.c.h.b16 %v156
    %v1335 = vunpack.c.l.b16 %v157
    %v1336 = vunpack.c.h.b16 %v157
    %v1337 = vunpack.c.l.b16 %v158
    %v1338 = vunpack.c.h.b16 %v158
    %v1339 = vunpack.c.l.b16 %v159
    %v1340 = vunpack.c.h.b16 %v159
    %v1341 = vunpack.c.l.b16 %v160
    %v1342 = vunpack.c.h.b16 %v160
    %v1343 = vunpack.c.l.b16 %v161
    %v1344 = vunpack.c.h.b16 %v161
    %v1345 = vunpack.c.l.b16 %v162
    %v1346 = vunpack.c.h.b16 %v162
    %v1347 = vunpack.c.l.b16 %v163
    %v1348 = vunpack.c.h.b16 %v163
    %v1349 = vunpack.c.l.b16 %v164
    %v1350 = vunpack.c.h.b16 %v164
    %v1351 = vunpack.c.l.b16 %v165
    %v1352 = vunpack.c.h.b16 %v165
    %v1353 = vunpack.c.l.b16 %v166
    %v1354 = vunpack.c.h.b16 %v166
    %v1355 = vunpack.c.l.b16 %v167
    %v1356 = vunpack.c.h.b16 %v167
    %v1357 = vunpack.c.l.b16 %v168
    %v1358 = vunpack.c.h.b16 %v168
    %v1359 = vunpack.c.l.b16 %v169
    %v1360 = vunpack.c.h.b16 %v169
    %v1361 = vunpack.c.l.b16 %v170
    %v1362 = vunpack.c.h.b16 %v170
    %v1363 = vunpack.c.l.b16 %v171
    %v1364 = vunpack.c.h.b16 %v171
    %v1365 = vunpack.c.l.b16 %v172
    %v1366 = vunpack.c.h.b16 %v172
    %v1367 = vunpack.c.l.b16 %v173
    %v1368 = vunpack.c.h.b16 %v173
    %v1369 = vunpack.c.l.b16 %v174
    %v1370 = vunpack.c.h.b16 %v174
    %v1371 = vunpack.c.l.b16 %v175
    %v1372 = vunpack.c.h.b16 %v175
    %v1373 = vunpack.c.l.b16 %v176
    %v1374 = vunpack.c.h.b16 %v176
    %v1375 = vunpack.c.l.b16 %v177
    %v1376 = vunpack.c.h.b16 %v177
    %v1377 = vunpack.c.l.b16 %v178
    %v1378 = vunpack.c.h.b16 %v178
    %v1379 = vunpack.c.l.b16 %v179
    %v1380 = vunpack.c.h.b16 %v179
    %v1381 = vunpack.c.l.b16 %v180
    %v1382 = vunpack.c.h.b16 %v180
    %v1383 = vunpack.c.l.b16 %v181
    %v1384 = vunpack.c.h.b16 %v181
    %v1385 = vunpack.c.l.b16 %v182
    %v1386 = vunpack.c.h.b16 %v182
    %v1387 = vunpack.c.l.b16 %v183
    %v1388 = vunpack.c.h.b16 %v183
    %v1389 = vunpack.c.l.b16 %v184
    %v1390 = vunpack.c.h.b16 %v184
    %v1391 = vunpack.c.l.b16 %v185
    %v1392 = vunpack.c.h.b16 %v185
    %v1393 = vunpack.c.l.b16 %v186
    %v1394 = vunpack.c.h.b16 %v186
    %v1395 = vunpack.c.l.b16 %v187
    %v1396 = vunpack.c.h.b16 %v187
    %v1397 = vunpack.c.l.b16 %v188
    %v1398 = vunpack.c.h.b16 %v188
    %v1399 = vunpack.c.l.b16 %v189
    %v1400 = vunpack.c.h.b16 %v189
    %v1401 = vunpack.c.l.b16 %v190
    %v1402 = vunpack.c.h.b16 %v190
    %v1403 = vunpack.c.l.b16 %v191
    %v1404 = vunpack.c.h.b16 %v191
    %v1405 = vunpack.c.l.b16 %v192
    %v1406 = vunpack.c.h.b16 %v192
    %v1407 = vunpack.c.l.b16 %v193
    %v1408 = vunpack.c.h.b16 %v193
    %v1409 = vunpack.c.l.b16 %v194
    %v1410 = vunpack.c.h.b16 %v194
    %v1411 = vunpack.c.l.b16 %v195
    %v1412 = vunpack.c.h.b16 %v195
    %v1413 = vunpack.c.l.b16 %v196
    %v1414 = vunpack.c.h.b16 %v196
    %v1415 = vunpack.c.l.b16 %v197
    %v1416 = vunpack.c.h.b16 %v197
    %v1417 = vunpack.c.l.b16 %v198
    %v1418 = vunpack.c.h.b16 %v198
    %v1419 = vunpack.c.l.b16 %v199
    %v1420 = vunpack.c.h.b16 %v199
    %v1421 = vunpack.c.l.b16 %v200
    %v1422 = vunpack.c.h.b16 %v200
    %v1423 = vunpack.c.l.b16 %v201
    %v1424 = vunpack.c.h.b16 %v201
    %v1425 = vunpack.c.l.b16 %v202
    %v1426 = vunpack.c.h.b16 %v202
    %v1427 = vunpack.c.l.b16 %v203
    %v1428 = vunpack.c.h.b16 %v203
    %v1429 = vunpack.c.l.b16 %v204
    %v1430 = vunpack.c.h.b16 %v204
    %v1431 = vunpack.c.l.b16 %v205
    %v1432 = vunpack.c.h.b16 %v205
    %v1433 = vunpack.c.l.b16 %v206
    %v1434 = vunpack.c.h.b16 %v206
    %v1435 = vunpack.c.l.b16 %v207
    %v1436 = vunpack.c.h.b16 %v207
    %v1437 = vunpack.c.l.b16 %v208
    %v1438 = vunpack.c.h.b16 %v208
    %v1439 = vunpack.c.l.b16 %v209
    %v1440 = vunpack.c.h.b16 %v209
    %v1441 = vunpack.c.l.b16 %v210
    %v1442 = vunpack.c.h.b16 %v210
    %v1443 = vunpack.c.l.b16 %v211
    %v1444 = vunpack.c.h.b16 %v211
    %v1445 = vunpack.c.l.b16 %v212
    %v1446 = vunpack.c.h.b16 %v212
    %v1447 = vunpack.c.l.b16 %v213
    %v1448 = vunpack.c.h.b16 %v213
    %v1449 = vunpack.c.l.b16 %v214
    %v1450 = vunpack.c.h.b16 %v214
    %v1451 = vunpack.c.l.b16 %v215
    %v1452 = vunpack.c.h.b16 %v215
    %v1453 = vunpack.c.l.b16 %v216
    %v1454 = vunpack.c.h.b16 %v216
    %v1455 = vunpack.c.l.b16 %v217
    %v1456 = vunpack.c.h.b16 %v217
    %v1457 = vunpack.c.l.b16 %v218
    %v1458 = vunpack.c.h.b16 %v218
    %v1459 = vunpack.c.l.b16 %v219
    %v1460 = vunpack.c.h.b16 %v219
    %v1461 = vunpack.c.l.b16 %v220
    %v1462 = vunpack.c.h.b16 %v220
    %v1463 = vunpack.c.l.b16 %v221
    %v1464 = vunpack.c.h.b16 %v221
    %v1465 = vunpack.c.l.b16 %v222
    %v1466 = vunpack.c.h.b16 %v222
    %v1467 = vunpack.c.l.b16 %v223
    %v1468 = vunpack.c.h.b16 %v223
    %v1469 = vunpack.c.l.b16 %v224
    %v1470 = vunpack.c.h.b16 %v224
    %v1471 = vunpack.c.l.b16 %v225
    %v1472 = vunpack.c.h.b16 %v225
    %v1473 = vunpack.c.l.b16 %v226
    %v1474 = vunpack.c.h.b16 %v226
    %v1475 = vunpack.c.l.b16 %v227
    %v1476 = vunpack.c.h.b16 %v227
    %v1477 = vunpack.c.l.b16 %v228
    %v1478 = vunpack.c.h.b16 %v228
    %v1479 = vunpack.c.l.b16 %v229
    %v1480 = vunpack.c.h.b16 %v229
    %v1481 = vunpack.c.l.b16 %v230
    %v1482 = vunpack.c.h.b16 %v230
    %v1483 = vunpack.c.l.b16 %v231
    %v1484 = vunpack.c.h.b16 %v231
    %v1485 = vunpack.c.l.b16 %v232
    %v1486 = vunpack.c.h.b16 %v232
    %v1487 = vunpack.c.l.b16 %v233
    %v1488 = vunpack.c.h.b16 %v233
    %v1489 = vunpack.c.l.b16 %v234
    %v1490 = vunpack.c.h.b16 %v234
    %v1491 = vunpack.c.l.b16 %v235
    %v1492 = vunpack.c.h.b16 %v235
    %v1493 = vunpack.c.l.b16 %v236
    %v1494 = vunpack.c.h.b16 %v236
    %v1495 = vunpack.c.l.b16 %v237
    %v1496 = vunpack.c.h.b16 %v237
    %v1497 = vunpack.c.l.b16 %v238
    %v1498 = vunpack.c.h.b16 %v238
    %v1499 = vunpack.c.l.b16 %v239
    %v1500 = vunpack.c.h.b16 %v239
    %v1501 = vunpack.c.l.b16 %v240
    %v1502 = vunpack.c.h.b16 %v240
    %v1503 = vunpack.c.l.b16 %v241
    %v1504 = vunpack.c.h.b16 %v241
    %v1505 = vunpack.c.l.b16 %v242
    %v1506 = vunpack.c.h.b16 %v242
    %v1507 = vunpack.c.l.b16 %v243
    %v1508 = vunpack.c.h.b16 %v243
    %v1509 = vunpack.c.l.b16 %v244
    %v1510 = vunpack.c.h.b16 %v244
    %v1511 = vunpack.c.l.b16 %v245
    %v1512 = vunpack.c.h.b16 %v245
    %v1513 = vunpack.c.l.b16 %v246
    %v1514 = vunpack.c.h.b16 %v246
    %v1515 = vunpack.c.l.b16 %v247
    %v1516 = vunpack.c.h.b16 %v247
    %v1517 = vunpack.c.l.b16 %v248
    %v1518 = vunpack.c.h.b16 %v248
    %v1519 = vunpack.c.l.b16 %v249
    %v1520 = vunpack.c.h.b16 %v249
    %v1521 = vunpack.c.l.b16 %v250
    %v1522 = vunpack.c.h.b16 %v250
    %v1523 = vunpack.c.l.b16 %v251
    %v1524 = vunpack.c.h.b16 %v251
    %v1525 = vunpack.c.l.b16 %v252
    %v1526 = vunpack.c.h.b16 %v252
    %v1527 = vunpack.c.l.b16 %v253
    %v1528 = vunpack.c.h.b16 %v253
    %v1529 = vunpack.c.l.b16 %v254
    %v1530 = vunpack.c.h.b16 %v254
    %v1531 = vunpack.c.l.b16 %v255
    %v1532 = vunpack.c.h.b16 %v255
    %v1533 = vunpack.c.l.b16 %v256
    %v1534 = vunpack.c.h.b16 %v256
    %v1535 = vunpack.c.l.b16 %v257
    %v1536 = vunpack.c.h.b16 %v257
    %v1537 = vunpack.c.l.b16 %v258
    %v1538 = vunpack.c.h.b16 %v258
    %v1539 = vunpack.c.l.b16 %v259
    %v1540 = vunpack.c.h.b16 %v259
    %v1541 = vunpack.c.l.b16 %v260
    %v1542 = vunpack.c.h.b16 %v260
    %v1543 = vunpack.c.l.b16 %v261
    %v1544 = vunpack.c.h.b16 %v261
    %v1545 = vunpack.c.l.b16 %v262
    %v1546 = vunpack.c.h.b16 %v262
    %v1547 = vunpack.c.l.b16 %v263
    %v1548 = vunpack.c.h.b16 %v263
    %v1549 = vunpack.c.l.b16 %v264
    %v1550 = vunpack.c.h.b16 %v264
    %v1551 = vunpack.c.l.b16 %v265
    %v1552 = vunpack.c.h.b16 %v265
    %v1553 = vunpack.c.l.b16 %v266
    %v1554 = vunpack.c.h.b16 %v266
    %v1555 = vunpack.c.l.b16 %v267
    %v1556 = vunpack.c.h.b16 %v267
    %v1557 = vunpack.c.l.b16 %v268
    %v1558 = vunpack.c.h.b16 %v268
    %v1559 = vunpack.c.l.b16 %v269
    %v1560 = vunpack.c.h.b16 %v269
    %v1561 = vunpack.c.l.b16 %v270
    %v1562 = vunpack.c.h.b16 %v270
    %v1563 = vunpack.c.l.b16 %v271
    %v1564 = vunpack.c.h.b16 %v271
    %v1565 = vunpack.c.l.b16 %v272
    %v1566 = vunpack.c.h.b16 %v272
    %v1567 = vunpack.c.l.b16 %v273
    %v1568 = vunpack.c.h.b16 %v273
    %v1569 = vunpack.c.l.b16 %v274
    %v1570 = vunpack.c.h.b16 %v274
    %v1571 = vunpack.c.l.b16 %v275
    %v1572 = vunpack.c.h.b16 %v275
    %v1573 = vunpack.c.l.b16 %v276
    %v1574 = vunpack.c.h.b16 %v276
    %v1575 = vunpack.c.l.b16 %v277
    %v1576 = vunpack.c.h.b16 %v277
    %v1577 = vunpack.c.l.b16 %v278
    %v1578 = vunpack.c.h.b16 %v278
    %v1579 = vunpack.c.l.b16 %v279
    %v1580 = vunpack.c.h.b16 %v279
    %v1581 = vunpack.c.l.b16 %v280
    %v1582 = vunpack.c.h.b16 %v280
    %v1583 = vunpack.c.l.b16 %v281
    %v1584 = vunpack.c.h.b16 %v281
    %v1585 = vunpack.c.l.b16 %v282
    %v1586 = vunpack.c.h.b16 %v282
    %v1587 = vunpack.c.l.b16 %v283
    %v1588 = vunpack.c.h.b16 %v283
    %v1589 = vunpack.c.l.b16 %v284
    %v1590 = vunpack.c.h.b16 %v284
    %v1591 = vunpack.c.l.b16 %v285
    %v1592 = vunpack.c.h.b16 %v285
    %v1593 = vunpack.c.l.b16 %v286
    %v1594 = vunpack.c.h.b16 %v286
    %v1595 = vunpack.c.l.b16 %v287
    %v1596 = vunpack.c.h.b16 %v287
    %v1597 = vunpack.c.l.b16 %v288
    %v1598 = vunpack.c.h.b16 %v288
    %v1599 = vunpack.c.l.b16 %v289
    %v1600 = vunpack.c.h.b16 %v289
    %v1601 = vunpack.c.l.b16 %v290
    %v1602 = vunpack.c.h.b16 %v290
    %v1603 = vunpack.c.l.b16 %v291
    %v1604 = vunpack.c.h.b16 %v291
    %v1605 = vunpack.c.l.b16 %v292
    %v1606 = vunpack.c.h.b16 %v292
    %v1607 = vunpack.c.l.b16 %v293
    %v1608 = vunpack.c.h.b16 %v293
    %v1609 = vunpack.c.l.b16 %v294
    %v1610 = vunpack.c.h.b16 %v294
    %v1611 = vunpack.c.l.b16 %v295
    %v1612 = vunpack.c.h.b16 %v295
    %v1613 = vunpack.c.l.b16 %v296
    %v1614 = vunpack.c.h.b16 %v296
    %v1615 = vunpack.c.l.b16 %v297
    %v1616 = vunpack.c.h.b16 %v297
    %v1617 = vunpack.c.l.b16 %v298
    %v1618 = vunpack.c.h.b16 %v298
    %v1619 = vunpack.c.l.b16 %v299
    %v1620 = vunpack.c.h.b16 %v299
    %v1621 = vunpack.c.l.b16 %v300
    %v1622 = vunpack.c.h.b16 %v300
    %v1623 = vunpack.c.l.b16 %v301
    %v1624 = vunpack.c.h.b16 %v301
    %v1625 = vunpack.c.l.b16 %v302
    %v1626 = vunpack.c.h.b16 %v302
    %v1627 = vunpack.c.l.b16 %v303
    %v1628 = vunpack.c.h.b16 %v303
    %v1629 = vunpack.c.l.b16 %v304
    %v1630 = vunpack.c.h.b16 %v304
    %v1631 = vunpack.c.l.b16 %v305
    %v1632 = vunpack.c.h.b16 %v305
    %v1633 = vunpack.c.l.b16 %v306
    %v1634 = vunpack.c.h.b16 %v306
    %v1635 = vunpack.c.l.b16 %v307
    %v1636 = vunpack.c.h.b16 %v307
    %v1637 = vunpack.c.l.b16 %v308
    %v1638 = vunpack.c.h.b16 %v308
    %v1639 = vunpack.c.l.b16 %v309
    %v1640 = vunpack.c.h.b16 %v309
    %v1641 = vunpack.c.l.b16 %v310
    %v1642 = vunpack.c.h.b16 %v310
    %v1643 = vunpack.c.l.b16 %v311
    %v1644 = vunpack.c.h.b16 %v311
    %v1645 = vunpack.c.l.b16 %v312
    %v1646 = vunpack.c.h.b16 %v312
    %v1647 = vunpack.c.l.b16 %v313
    %v1648 = vunpack.c.h.b16 %v313
    %v1649 = vunpack.c.l.b16 %v314
    %v1650 = vunpack.c.h.b16 %v314
    %v1651 = vunpack.c.l.b16 %v315
    %v1652 = vunpack.c.h.b16 %v315
    %v1653 = vunpack.c.l.b16 %v316
    %v1654 = vunpack.c.h.b16 %v316
    %v1655 = vunpack.c.l.b16 %v317
    %v1656 = vunpack.c.h.b16 %v317
    %v1657 = vunpack.c.l.b16 %v318
    %v1658 = vunpack.c.h.b16 %v318
    %v1659 = vunpack.c.l.b16 %v319
    %v1660 = vunpack.c.h.b16 %v319
    %v1661 = vunpack.c.l.b16 %v320
    %v1662 = vunpack.c.h.b16 %v320
    %v1663 = vunpack.c.l.b16 %v321
    %v1664 = vunpack.c.h.b16 %v321
    %v1665 = vunpack.c.l.b16 %v322
    %v1666 = vunpack.c.h.b16 %v322
    %v1667 = vunpack.c.l.b16 %v323
    %v1668 = vunpack.c.h.b16 %v323
    %v1669 = vunpack.c.l.b16 %v324
    %v1670 = vunpack.c.h.b16 %v324
    %v1671 = vunpack.c.l.b16 %v325
    %v1672 = vunpack.c.h.b16 %v325
    %v1673 = vunpack.c.l.b16 %v326
    %v1674 = vunpack.c.h.b16 %v326
    %v1675 = vunpack.c.l.b16 %v327
    %v1676 = vunpack.c.h.b16 %v327
    %v1677 = vunpack.c.l.b16 %v328
    %v1678 = vunpack.c.h.b16 %v328
    %v1679 = vunpack.c.l.b16 %v329
    %v1680 = vunpack.c.h.b16 %v329
    %v1681 = vunpack.c.l.b16 %v330
    %v1682 = vunpack.c.h.b16 %v330
    %v1683 = vunpack.c.l.b16 %v331
    %v1684 = vunpack.c.h.b16 %v331
    %v1685 = vunpack.c.l.b16 %v332
    %v1686 = vunpack.c.h.b16 %v332
    %v1687 = vunpack.c.l.b16 %v333
    %v1688 = vunpack.c.h.b16 %v333
    %v1689 = vunpack.c.l.b16 %v334
    %v1690 = vunpack.c.h.b16 %v334
    %v1691 = vunpack.c.l.b16 %v335
    %v1692 = vunpack.c.h.b16 %v335
    %v1693 = vunpack.c.l.b16 %v336
    %v1694 = vunpack.c.h.b16 %v336
    %v1695 = vunpack.c.l.b16 %v337
    %v1696 = vunpack.c.h.b16 %v337
    %v1697 = vunpack.c.l.b16 %v338
    %v1698 = vunpack.c.h.b16 %v338
    %v1699 = vunpack.c.l.b16 %v339
    %v1700 = vunpack.c.h.b16 %v339
    %v1701 = vunpack.c.l.b16 %v340
    %v1702 = vunpack.c.h.b16 %v340
    %v1703 = vunpack.c.l.b16 %v341
    %v1704 = vunpack.c.h.b16 %v341
    %v1705 = vunpack.c.l.b16 %v342
    %v1706 = vunpack.c.h.b16 %v342
    %v1707 = vunpack.c.l.b16 %v343
    %v1708 = vunpack.c.h.b16 %v343
    %v1709 = vunpack.c.l.b16 %v344
    %v1710 = vunpack.c.h.b16 %v344
    %v1711 = vunpack.c.l.b16 %v345
    %v1712 = vunpack.c.h.b16 %v345
    %v1713 = vunpack.c.l.b16 %v346
    %v1714 = vunpack.c.h.b16 %v346
    %v1715 = vunpack.c.l.b16 %v347
    %v1716 = vunpack.c.h.b16 %v347
    %v1717 = vunpack.c.l.b16 %v348
    %v1718 = vunpack.c.h.b16 %v348
    %v1719 = vunpack.c.l.b16 %v349
    %v1720 = vunpack.c.h.b16 %v349
    %v1721 = vunpack.c.l.b16 %v350
    %v1722 = vunpack.c.h.b16 %v350
    %v1723 = vunpack.c.l.b16 %v351
    %v1724 = vunpack.c.h.b16 %v351
    %v1725 = vunpack.c.l.b16 %v352
    %v1726 = vunpack.c.h.b16 %v352
    %v1727 = vunpack.c.l.b16 %v353
    %v1728 = vunpack.c.h.b16 %v353
    %v1729 = vunpack.c.l.b16 %v354
    %v1730 = vunpack.c.h.b16 %v354
    %v1731 = vunpack.c.l.b16 %v355
    %v1732 = vunpack.c.h.b16 %v355
    %v1733 = vunpack.c.l.b16 %v356
    %v1734 = vunpack.c.h.b16 %v356
    %v1735 = vunpack.c.l.b16 %v357
    %v1736 = vunpack.c.h.b16 %v357
    %v1737 = vunpack.c.l.b16 %v358
    %v1738 = vunpack.c.h.b16 %v358
    %v1739 = vunpack.c.l.b16 %v359
    %v1740 = vunpack.c.h.b16 %v359
    %v1741 = vunpack.c.l.b16 %v360
    %v1742 = vunpack.c.h.b16 %v360
    %v1743 = vunpack.c.l.b16 %v361
    %v1744 = vunpack.c.h.b16 %v361
    %v1745 = vunpack.c.l.b16 %v362
    %v1746 = vunpack.c.h.b16 %v362
    %v1747 = vunpack.c.l.b16 %v363
    %v1748 = vunpack.c.h.b16 %v363
    %v1749 = vunpack.c.l.b16 %v364
    %v1750 = vunpack.c.h.b16 %v364
    %v1751 = vunpack.c.l.b16 %v365
    %v1752 = vunpack.c.h.b16 %v365
    %v1753 = vunpack.c.l.b16 %v366
    %v1754 = vunpack.c.h.b16 %v366
    %v1755 = vunpack.c.l.b16 %v367
    %v1756 = vunpack.c.h.b16 %v367
    %v1757 = vunpack.c.l.b16 %v368
    %v1758 = vunpack.c.h.b16 %v368
    %v1759 = vunpack.c.l.b16 %v369
    %v1760 = vunpack.c.h.b16 %v369
    %v1761 = vunpack.c.l.b16 %v370
    %v1762 = vunpack.c.h.b16 %v370
    %v1763 = vunpack.c.l.b16 %v371
    %v1764 = vunpack.c.h.b16 %v371
    %v1765 = vunpack.c.l.b16 %v372
    %v1766 = vunpack.c.h.b16 %v372
    %v1767 = vunpack.c.l.b16 %v373
    %v1768 = vunpack.c.h.b16 %v373
    %v1769 = vunpack.c.l.b16 %v374
    %v1770 = vunpack.c.h.b16 %v374
    %v1771 = vunpack.c.l.b16 %v375
    %v1772 = vunpack.c.h.b16 %v375
    %v1773 = vunpack.c.l.b16 %v376
    %v1774 = vunpack.c.h.b16 %v376
    %v1775 = vunpack.c.l.b16 %v377
    %v1776 = vunpack.c.h.b16 %v377
    %v1777 = vunpack.c.l.b16 %v378
    %v1778 = vunpack.c.h.b16 %v378
    %v1779 = vunpack.c.l.b16 %v379
    %v1780 = vunpack.c.h.b16 %v379
    %v1781 = vunpack.c.l.b16 %v380
    %v1782 = vunpack.c.h.b16 %v380
    %v1783 = vunpack.c.l.b16 %v381
    %v1784 = vunpack.c.h.b16 %v381
    %v1785 = vunpack.c.l.b16 %v382
    %v1786 = vunpack.c.h.b16 %v382
    %v1787 = vunpack.c.l.b16 %v383
    %v1788 = vunpack.c.h.b16 %v383
    %v1789 = vunpack.c.l.b16 %v384
    %v1790 = vunpack.c.h.b16 %v384
    %v1791 = vunpack.c.l.b16 %v385
    %v1792 = vunpack.c.h.b16 %v385
    %v1793 = vunpack.c.l.b16 %v386
    %v1794 = vunpack.c.h.b16 %v386
    %v1795 = vunpack.c.l.b16 %v387
    %v1796 = vunpack.c.h.b16 %v387
    %v1797 = vunpack.c.l.b16 %v388
    %v1798 = vunpack.c.h.b16 %v388
    %v1799 = vunpack.c.l.b16 %v389
    %v1800 = vunpack.c.h.b16 %v389
    %v1801 = vunpack.c.l.b16 %v390
    %v1802 = vunpack.c.h.b16 %v390
    %v1803 = vunpack.c.l.b16 %v391
    %v1804 = vunpack.c.h.b16 %v391
    %v1805 = vunpack.c.l.b16 %v392
    %v1806 = vunpack.c.h.b16 %v392
    %v1807 = vunpack.c.l.b16 %v393
    %v1808 = vunpack.c.h.b16 %v393
    %v1809 = vunpack.c.l.b16 %v394
    %v1810 = vunpack.c.h.b16 %v394
    %v1811 = vunpack.c.l.b16 %v395
    %v1812 = vunpack.c.h.b16 %v395
    %v1813 = vunpack.c.l.b16 %v396
    %v1814 = vunpack.c.h.b16 %v396
    %v1815 = vunpack.c.l.b16 %v397
    %v1816 = vunpack.c.h.b16 %v397
    %v1817 = vunpack.c.l.b16 %v398
    %v1818 = vunpack.c.h.b16 %v398
    %v1819 = vunpack.c.l.b16 %v399
    %v1820 = vunpack.c.h.b16 %v399
    %v1821 = vunpack.c.l.b16 %v400
    %v1822 = vunpack.c.h.b16 %v400
    %v1823 = vunpack.c.l.b16 %v401
    %v1824 = vunpack.c.h.b16 %v401
    %v1825 = vunpack.c.l.b16 %v402
    %v1826 = vunpack.c.h.b16 %v402
    %v1827 = vunpack.c.l.b16 %v403
    %v1828 = vunpack.c.h.b16 %v403
    %v1829 = vunpack.c.l.b16 %v404
    %v1830 = vunpack.c.h.b16 %v404
    %v1831 = vunpack.c.l.b16 %v405
    %v1832 = vunpack.c.h.b16 %v405
    %v1833 = vunpack.c.l.b16 %v406
    %v1834 = vunpack.c.h.b16 %v406
    %v1835 = vunpack.c.l.b16 %v407
    %v1836 = vunpack.c.h.b16 %v407
    %v1837 = vunpack.c.l.b16 %v408
    %v1838 = vunpack.c.h.b16 %v408
    %v1839 = vunpack.c.l.b16 %v409
    %v1840 = vunpack.c.h.b16 %v409
    %v1841 = vunpack.c.l.b16 %v410
    %v1842 = vunpack.c.h.b16 %v410
    %v1843 = vunpack.c.l.b16 %v411
    %v1844 = vunpack.c.h.b16 %v411
    %v1845 = vunpack.c.l.b16 %v412
    %v1846 = vunpack.c.h.b16 %v412
    %v1847 = vunpack.c.l.b16 %v413
    %v1848 = vunpack.c.h.b16 %v413
    %v1849 = vunpack.c.l.b16 %v414
    %v1850 = vunpack.c.h.b16 %v414
    %v1851 = vunpack.c.l.b16 %v415
    %v1852 = vunpack.c.h.b16 %v415
    %v1853 = vunpack.c.l.b16 %v416
    %v1854 = vunpack.c.h.b16 %v416
    %v1855 = vunpack.c.l.b16 %v417
    %v1856 = vunpack.c.h.b16 %v417
    %v1857 = vunpack.c.l.b16 %v418
    %v1858 = vunpack.c.h.b16 %v418
    %v1859 = vunpack.c.l.b16 %v419
    %v1860 = vunpack.c.h.b16 %v419
    %v1861 = vunpack.c.l.b16 %v420
    %v1862 = vunpack.c.h.b16 %v420
    %v1863 = vunpack.c.l.b16 %v421
    %v1864 = vunpack.c.h.b16 %v421
    %v1865 = vunpack.c.l.b16 %v422
    %v1866 = vunpack.c.h.b16 %v422
    %v1867 = vunpack.c.l.b16 %v423
    %v1868 = vunpack.c.h.b16 %v423
    %v1869 = vunpack.c.l.b16 %v424
    %v1870 = vunpack.c.h.b16 %v424
    %v1871 = vunpack.c.l.b16 %v425
    %v1872 = vunpack.c.h.b16 %v425
    %v1873 = vunpack.c.l.b16 %v426
    %v1874 = vunpack.c.h.b16 %v426
    %v1875 = vunpack.c.l.b16 %v427
    %v1876 = vunpack.c.h.b16 %v427
    %v1877 = vunpack.c.l.b16 %v428
    %v1878 = vunpack.c.h.b16 %v428
    %v1879 = vunpack.c.l.b16 %v429
    %v1880 = vunpack.c.h.b16 %v429
    %v1881 = vunpack.c.l.b16 %v430
    %v1882 = vunpack.c.h.b16 %v430
    %v1883 = vunpack.c.l.b16 %v431
    %v1884 = vunpack.c.h.b16 %v431
    %v1885 = vunpack.c.l.b16 %v432
    %v1886 = vunpack.c.h.b16 %v432
    %v1887 = vunpack.c.l.b16 %v433
    %v1888 = vunpack.c.h.b16 %v433
    %v1889 = vunpack.c.l.b16 %v434
    %v1890 = vunpack.c.h.b16 %v434
    %v1891 = vunpack.c.l.b16 %v435
    %v1892 = vunpack.c.h.b16 %v435
    %v1893 = vunpack.c.l.b16 %v436
    %v1894 = vunpack.c.h.b16 %v436
    %v1895 = vunpack.c.l.b16 %v437
    %v1896 = vunpack.c.h.b16 %v437
    %v1897 = vunpack.c.l.b16 %v438
    %v1898 = vunpack.c.h.b16 %v438
    %v1899 = vunpack.c.l.b16 %v439
    %v1900 = vunpack.c.h.b16 %v439
    %v1901 = vunpack.c.l.b16 %v440
    %v1902 = vunpack.c.h.b16 %v440
    %v1903 = vunpack.c.l.b16 %v441
    %v1904 = vunpack.c.h.b16 %v441
    %v1905 = vunpack.c.l.b16 %v442
    %v1906 = vunpack.c.h.b16 %v442
    %v1907 = vunpack.c.l.b16 %v443
    %v1908 = vunpack.c.h.b16 %v443
    %v1909 = vunpack.c.l.b16 %v444
    %v1910 = vunpack.c.h.b16 %v444
    %v1911 = vunpack.c.l.b16 %v445
    %v1912 = vunpack.c.h.b16 %v445
    %v1913 = vunpack.c.l.b16 %v446
    %v1914 = vunpack.c.h.b16 %v446
    %v1915 = vunpack.c.l.b16 %v447
    %v1916 = vunpack.c.h.b16 %v447
    %v1917 = vunpack.c.l.b16 %v448
    %v1918 = vunpack.c.h.b16 %v448
    %v1919 = vunpack.c.l.b16 %v449
    %v1920 = vunpack.c.h.b16 %v449
    %v1921 = vunpack.c.l.b16 %v450
    %v1922 = vunpack.c.h.b16 %v450
    %v1923 = vunpack.c.l.b16 %v451
    %v1924 = vunpack.c.h.b16 %v451
    %v1925 = vunpack.c.l.b16 %v452
    %v1926 = vunpack.c.h.b16 %v452
    %v1927 = vunpack.c.l.b16 %v453
    %v1928 = vunpack.c.h.b16 %v453
    %v1929 = vunpack.c.l.b16 %v454
    %v1930 = vunpack.c.h.b16 %v454
    %v1931 = vunpack.c.l.b16 %v455
    %v1932 = vunpack.c.h.b16 %v455
    %v1933 = vunpack.c.l.b16 %v456
    %v1934 = vunpack.c.h.b16 %v456
    %v1935 = vunpack.c.l.b16 %v457
    %v1936 = vunpack.c.h.b16 %v457
    %v1937 = vunpack.c.l.b16 %v458
    %v1938 = vunpack.c.h.b16 %v458
    %v1939 = vunpack.c.l.b16 %v459
    %v1940 = vunpack.c.h.b16 %v459
    %v1941 = vunpack.c.l.b16 %v460
    %v1942 = vunpack.c.h.b16 %v460
    %v1943 = vunpack.c.l.b16 %v461
    %v1944 = vunpack.c.h.b16 %v461
    %v1945 = vunpack.c.l.b16 %v462
    %v1946 = vunpack.c.h.b16 %v462
    %v1947 = vunpack.c.l.b16 %v463
    %v1948 = vunpack.c.h.b16 %v463
    %v1949 = vunpack.c.l.b16 %v464
    %v1950 = vunpack.c.h.b16 %v464
    %v1951 = vunpack.c.l.b16 %v465
    %v1952 = vunpack.c.h.b16 %v465
    %v1953 = vunpack.c.l.b16 %v466
    %v1954 = vunpack.c.h.b16 %v466
    %v1955 = vunpack.c.l.b16 %v467
    %v1956 = vunpack.c.h.b16 %v467
    %v1957 = vunpack.c.l.b16 %v468
    %v1958 = vunpack.c.h.b16 %v468
    %v1959 = vunpack.c.l.b16 %v469
    %v1960 = vunpack.c.h.b16 %v469
    %v1961 = vunpack.c.l.b16 %v470
    %v1962 = vunpack.c.h.b16 %v470
    %v1963 = vunpack.c.l.b16 %v471
    %v1964 = vunpack.c.h.b16 %v471
    %v1965 = vunpack.c.l.b16 %v472
    %v1966 = vunpack.c.h.b16 %v472
    %v1967 = vunpack.c.l.b16 %v473
    %v1968 = vunpack.c.h.b16 %v473
    %v1969 = vunpack.c.l.b16 %v474
    %v1970 = vunpack.c.h.b16 %v474
    %v1971 = vunpack.c.l.b16 %v475
    %v1972 = vunpack.c.h.b16 %v475
    %v1973 = vunpack.c.l.b16 %v476
    %v1974 = vunpack.c.h.b16 %v476
    %v1975 = vunpack.c.l.b16 %v477
    %v1976 = vunpack.c.h.b16 %v477
    %v1977 = vunpack.c.l.b16 %v478
    %v1978 = vunpack.c.h.b16 %v478
    %v1979 = vunpack.c.l.b16 %v479
    %v1980 = vunpack.c.h.b16 %v479
    %v1981 = vunpack.c.l.b16 %v480
    %v1982 = vunpack.c.h.b16 %v480
    %v1983 = vunpack.c.l.b16 %v481
    %v1984 = vunpack.c.h.b16 %v481
    %v1985 = vunpack.c.l.b16 %v482
    %v1986 = vunpack.c.h.b16 %v482
    %v1987 = vunpack.c.l.b16 %v483
    %v1988 = vunpack.c.h.b16 %v483
    %v1989 = vunpack.c.l.b16 %v484
    %v1990 = vunpack.c.h.b16 %v484
    %v1991 = vunpack.c.l.b16 %v485
    %v1992 = vunpack.c.h.b16 %v485
    %v1993 = vunpack.c.l.b16 %v486
    %v1994 = vunpack.c.h.b16 %v486
    %v1995 = vunpack.c.l.b16 %v487
    %v1996 = vunpack.c.h.b16 %v487
    %v1997 = vunpack.c.l.b16 %v488
    %v1998 = vunpack.c.h.b16 %v488
    %v1999 = vunpack.c.l.b16 %v489
    %v2000 = vunpack.c.h.b16 %v489
    %v2001 = vunpack.c.l.b16 %v490
    %v2002 = vunpack.c.h.b16 %v490
    %v2003 = vunpack.c.l.b16 %v491
    %v2004 = vunpack.c.h.b16 %v491
    %v2005 = vunpack.c.l.b16 %v492
    %v2006 = vunpack.c.h.b16 %v492
    %v2007 = vunpack.c.l.b16 %v493
    %v2008 = vunpack.c.h.b16 %v493
    %v2009 = vunpack.c.l.b16 %v494
    %v2010 = vunpack.c.h.b16 %v494
    %v2011 = vunpack.c.l.b16 %v495
    %v2012 = vunpack.c.h.b16 %v495
    %v2013 = vunpack.c.l.b16 %v496
    %v2014 = vunpack.c.h.b16 %v496
    %v2015 = vunpack.c.l.b16 %v497
    %v2016 = vunpack.c.h.b16 %v497
    %v2017 = vunpack.c.l.b16 %v498
    %v2018 = vunpack.c.h.b16 %v498
    %v2019 = vunpack.c.l.b16 %v499
    %v2020 = vunpack.c.h.b16 %v499
    %v2021 = vunpack.c.l.b16 %v500
    %v2022 = vunpack.c.h.b16 %v500
    %v2023 = vunpack.c.l.b16 %v501
    %v2024 = vunpack.c.h.b16 %v501
    %v2025 = vunpack.c.l.b16 %v502
    %v2026 = vunpack.c.h.b16 %v502
    %v2027 = vunpack.c.l.b16 %v503
    %v2028 = vunpack.c.h.b16 %v503
    %v2029 = vunpack.c.l.b16 %v504
    %v2030 = vunpack.c.h.b16 %v504
    %v2031 = vunpack.c.l.b16 %v505
    %v2032 = vunpack.c.h.b16 %v505
    %v2033 = vunpack.c.l.b16 %v506
    %v2034 = vunpack.c.h.b16 %v506
    %v2035 = vunpack.c.l.b16 %v507
    %v2036 = vunpack.c.h.b16 %v507
    %v2037 = vunpack.c.l.b16 %v508
    %v2038 = vunpack.c.h.b16 %v508
    %v2039 = vunpack.c.l.b16 %v509
    %v2040 = vunpack.c.h.b16 %v509
    %v2041 = vunpack.c.l.b16 %v510
    %v2042 = vunpack.c.h.b16 %v510
    %v2043 = vunpack.c.l.b16 %v511
    %v2044 = vunpack.c.h.b16 %v511
    %v2045 = vunpack.c.l.b16 %v512
    %v2046 = vunpack.c.h.b16 %v512
    %v2047 = vunpack.c.l.b16 %v513
    %v2048 = vunpack.c.h.b16 %v513
    %v2049 = vunpack.c.l.b16 %v514
    %v2050 = vunpack.c.h.b16 %v514
    %v2051 = vunpack.c.l.b16 %v515
    %v2052 = vunpack.c.h.b16 %v515
    %v2053 = vunpack.c.l.b16 %v516
    %v2054 = vunpack.c.h.b16 %v516
    %v2055 = vunpack.c.l.b16 %v517
    %v2056 = vunpack.c.h.b16 %v517
    %v2057 = vunpack.c.l.b16 %v518
    %v2058 = vunpack.c.h.b16 %v518
    %v2059 = vunpack.c.l.b16 %v519
    %v2060 = vunpack.c.h.b16 %v519
    %v2061 = vunpack.c.l.b16 %v520
    %v2062 = vunpack.c.h.b16 %v520
    %v2063 = vunpack.c.l.b16 %v521
    %v2064 = vunpack.c.h.b16 %v521
    %v2065 = vunpack.c.l.b16 %v522
    %v2066 = vunpack.c.h.b16 %v522
    %v2067 = vunpack.c.l.b16 %v523
    %v2068 = vunpack.c.h.b16 %v523
    %v2069 = vunpack.c.l.b16 %v524
    %v2070 = vunpack.c.h.b16 %v524
    %v2071 = vunpack.c.l.b16 %v525
    %v2072 = vunpack.c.h.b16 %v525
    %v2073 = vunpack.c.l.b16 %v526
    %v2074 = vunpack.c.h.b16 %v526
    %v2075 = vunpack.c.l.b16 %v527
    %v2076 = vunpack.c.h.b16 %v527
    %v2077 = vunpack.c.l.b16 %v528
    %v2078 = vunpack.c.h.b16 %v528
    %v2079 = vunpack.c.l.b16 %v529
    %v2080 = vunpack.c.h.b16 %v529
    %v2081 = vunpack.c.l.b16 %v530
    %v2082 = vunpack.c.h.b16 %v530
    %v2083 = vunpack.c.l.b16 %v531
    %v2084 = vunpack.c.h.b16 %v531
    %v2085 = vunpack.c.l.b16 %v532
    %v2086 = vunpack.c.h.b16 %v532
    %v2087 = vunpack.c.l.b16 %v533
    %v2088 = vunpack.c.h.b16 %v533
    %v2089 = vunpack.c.l.b16 %v534
    %v2090 = vunpack.c.h.b16 %v534
    %v2091 = vunpack.c.l.b16 %v535
    %v2092 = vunpack.c.h.b16 %v535
    %v2093 = vunpack.c.l.b16 %v536
    %v2094 = vunpack.c.h.b16 %v536
    %v2095 = vunpack.c.l.b16 %v537
    %v2096 = vunpack.c.h.b16 %v537
    %v2097 = vunpack.c.l.b16 %v538
    %v2098 = vunpack.c.h.b16 %v538
    %v2099 = vunpack.c.l.b16 %v539
    %v2100 = vunpack.c.h.b16 %v539
    %v2101 = vunpack.c.l.b16 %v540
    %v2102 = vunpack.c.h.b16 %v540
    %v2103 = vunpack.c.l.b16 %v541
    %v2104 = vunpack.c.h.b16 %v541
    %v2105 = vunpack.c.l.b16 %v542
    %v2106 = vunpack.c.h.b16 %v542
    %v2107 = vunpack.c.l.b16 %v543
    %v2108 = vunpack.c.h.b16 %v543
    %v2109 = vunpack.c.l.b16 %v544
    %v2110 = vunpack.c.h.b16 %v544
    %v2111 = vunpack.c.l.b16 %v545
    %v2112 = vunpack.c.h.b16 %v545
    %v2113 = vunpack.c.l.b16 %v546
    %v2114 = vunpack.c.h.b16 %v546
    %v2115 = vunpack.c.l.b16 %v547
    %v2116 = vunpack.c.h.b16 %v547
    %v2117 = vunpack.c.l.b16 %v548
    %v2118 = vunpack.c.h.b16 %v548
    %v2119 = vunpack.c.l.b16 %v549
    %v2120 = vunpack.c.h.b16 %v549
    %v2121 = vunpack.c.l.b16 %v550
    %v2122 = vunpack.c.h.b16 %v550
    %v2123 = vunpack.c.l.b16 %v551
    %v2124 = vunpack.c.h.b16 %v551
    %v2125 = vunpack.c.l.b16 %v552
    %v2126 = vunpack.c.h.b16 %v552
    %v2127 = vunpack.c.l.b16 %v553
    %v2128 = vunpack.c.h.b16 %v553
    %v2129 = vunpack.c.l.b16 %v554
    %v2130 = vunpack.c.h.b16 %v554
    %v2131 = vunpack.c.l.b16 %v555
    %v2132 = vunpack.c.h.b16 %v555
    %v2133 = vunpack.c.l.b16 %v556
    %v2134 = vunpack.c.h.b16 %v556
    %v2135 = vunpack.c.l.b16 %v557
    %v2136 = vunpack.c.h.b16 %v557
    %v2137 = vunpack.c.l.b16 %v558
    %v2138 = vunpack.c.h.b16 %v558
    %v2139 = vunpack.c.l.b16 %v559
    %v2140 = vunpack.c.h.b16 %v559
    %v2141 = vunpack.c.l.b16 %v560
    %v2142 = vunpack.c.h.b16 %v560
    %v2143 = vunpack.c.l.b16 %v561
    %v2144 = vunpack.c.h.b16 %v561
    %v2145 = vunpack.c.l.b16 %v562
    %v2146 = vunpack.c.h.b16 %v562
    %v2147 = vunpack.c.l.b16 %v563
    %v2148 = vunpack.c.h.b16 %v563
    %v2149 = vunpack.c.l.b16 %v564
    %v2150 = vunpack.c.h.b16 %v564
    %v2151 = vunpack.c.l.b16 %v565
    %v2152 = vunpack.c.h.b16 %v565
    %v2153 = vunpack.c.l.b16 %v566
    %v2154 = vunpack.c.h.b16 %v566
    %v2155 = vunpack.c.l.b16 %v567
    %v2156 = vunpack.c.h.b16 %v567
    %v2157 = vunpack.c.l.b16 %v568
    %v2158 = vunpack.c.h.b16 %v568
    %v2159 = vunpack.c.l.b16 %v569
    %v2160 = vunpack.c.h.b16 %v569
    %v2161 = vunpack.c.l.b16 %v570
    %v2162 = vunpack.c.h.b16 %v570
    %v2163 = vunpack.c.l.b16 %v571
    %v2164 = vunpack.c.h.b16 %v571
    %v2165 = vunpack.c.l.b16 %v572
    %v2166 = vunpack.c.h.b16 %v572
    %v2167 = vunpack.c.l.b16 %v573
    %v2168 = vunpack.c.h.b16 %v573
    %v2169 = vunpack.c.l.b16 %v574
    %v2170 = vunpack.c.h.b16 %v574
    %v2171 = vunpack.c.l.b16 %v575
    %v2172 = vunpack.c.h.b16 %v575
    %v2173 = vunpack.c.l.b16 %v576
    %v2174 = vunpack.c.h.b16 %v576
    %v2175 = vunpack.c.l.b16 %v577
    %v2176 = vunpack.c.h.b16 %v577
    %v2177 = vunpack.c.l.b16 %v578
    %v2178 = vunpack.c.h.b16 %v578
    %v2179 = vunpack.c.l.b16 %v579
    %v2180 = vunpack.c.h.b16 %v579
    %v2181 = vunpack.c.l.b16 %v580
    %v2182 = vunpack.c.h.b16 %v580
    %v2183 = vunpack.c.l.b16 %v581
    %v2184 = vunpack.c.h.b16 %v581
    %v2185 = vunpack.c.l.b16 %v582
    %v2186 = vunpack.c.h.b16 %v582
    %v2187 = vunpack.c.l.b16 %v583
    %v2188 = vunpack.c.h.b16 %v583
    %v2189 = vunpack.c.l.b16 %v584
    %v2190 = vunpack.c.h.b16 %v584
    %v2191 = vunpack.c.l.b16 %v585
    %v2192 = vunpack.c.h.b16 %v585
    %v2193 = vunpack.c.l.b16 %v586
    %v2194 = vunpack.c.h.b16 %v586
    %v2195 = vunpack.c.l.b16 %v587
    %v2196 = vunpack.c.h.b16 %v587
    %v2197 = vunpack.c.l.b16 %v588
    %v2198 = vunpack.c.h.b16 %v588
    %v2199 = vunpack.c.l.b16 %v589
    %v2200 = vunpack.c.h.b16 %v589
    %v2201 = vunpack.c.l.b16 %v590
    %v2202 = vunpack.c.h.b16 %v590
    %v2203 = vunpack.c.l.b16 %v591
    %v2204 = vunpack.c.h.b16 %v591
    %v2205 = vunpack.c.l.b16 %v592
    %v2206 = vunpack.c.h.b16 %v592
    %v2207 = vunpack.c.l.b16 %v593
    %v2208 = vunpack.c.h.b16 %v593
    %v2209 = vunpack.c.l.b16 %v594
    %v2210 = vunpack.c.h.b16 %v594
    %v2211 = vunpack.c.l.b16 %v595
    %v2212 = vunpack.c.h.b16 %v595
    %v2213 = vunpack.c.l.b16 %v596
    %v2214 = vunpack.c.h.b16 %v596
    %v2215 = vunpack.c.l.b16 %v597
    %v2216 = vunpack.c.h.b16 %v597
    %v2217 = vunpack.c.l.b16 %v598
    %v2218 = vunpack.c.h.b16 %v598
    %v2219 = vunpack.c.l.b16 %v599
    %v2220 = vunpack.c.h.b16 %v599
    %v2221 = vunpack.c.l.b16 %v600
    %v2222 = vunpack.c.h.b16 %v600
    %v2223 = vunpack.c.l.b16 %v601
    %v2224 = vunpack.c.h.b16 %v601
    %v2225 = vunpack.c.l.b16 %v602
    %v2226 = vunpack.c.h.b16 %v602
    %v2227 = vunpack.c.l.b16 %v603
    %v2228 = vunpack.c.h.b16 %v603
    %v2229 = vunpack.c.l.b16 %v604
    %v2230 = vunpack.c.h.b16 %v604
    %v2231 = vunpack.c.l.b16 %v605
    %v2232 = vunpack.c.h.b16 %v605
    %v2233 = vunpack.c.l.b16 %v606
    %v2234 = vunpack.c.h.b16 %v606
    %v2235 = vunpack.c.l.b16 %v607
    %v2236 = vunpack.c.h.b16 %v607
    %v2237 = vunpack.c.l.b16 %v608
    %v2238 = vunpack.c.h.b16 %v608
    %v2239 = vunpack.c.l.b16 %v609
    %v2240 = vunpack.c.h.b16 %v609
    %v2241 = vunpack.c.l.b16 %v610
    %v2242 = vunpack.c.h.b16 %v610
    %v2243 = vunpack.c.l.b16 %v611
    %v2244 = vunpack.c.h.b16 %v611
    %v2245 = vunpack.c.l.b16 %v612
    %v2246 = vunpack.c.h.b16 %v612
    %v2247 = vunpack.c.l.b16 %v613
    %v2248 = vunpack.c.h.b16 %v613
    %v2249 = vunpack.c.l.b16 %v614
    %v2250 = vunpack.c.h.b16 %v614
    %v2251 = vunpack.c.l.b16 %v615
    %v2252 = vunpack.c.h.b16 %v615
    %v2253 = vunpack.c.l.b16 %v616
    %v2254 = vunpack.c.h.b16 %v616
    %v2255 = vunpack.c.l.b16 %v617
    %v2256 = vunpack.c.h.b16 %v617
    %v2257 = vunpack.c.l.b16 %v618
    %v2258 = vunpack.c.h.b16 %v618
    %v2259 = vunpack.c.l.b16 %v619
    %v2260 = vunpack.c.h.b16 %v619
    %v2261 = vunpack.c.l.b16 %v620
    %v2262 = vunpack.c.h.b16 %v620
    %v2263 = vunpack.c.l.b16 %v621
    %v2264 = vunpack.c.h.b16 %v621
    %v2265 = vunpack.c.l.b16 %v622
    %v2266 = vunpack.c.h.b16 %v622
    %v2267 = vunpack.c.l.b16 %v623
    %v2268 = vunpack.c.h.b16 %v623
    %v2269 = vunpack.c.l.b16 %v624
    %v2270 = vunpack.c.h.b16 %v624
    %v2271 = vunpack.c.l.b16 %v625
    %v2272 = vunpack.c.h.b16 %v625
    %v2273 = vunpack.c.l.b16 %v626
    %v2274 = vunpack.c.h.b16 %v626
    %v2275 = vunpack.c.l.b16 %v627
    %v2276 = vunpack.c.h.b16 %v627
    %v2277 = vunpack.c.l.b16 %v628
    %v2278 = vunpack.c.h.b16 %v628
    %v2279 = vunpack.c.l.b16 %v629
    %v2280 = vunpack.c.h.b16 %v629
    %v2281 = vunpack.c.l.b16 %v630
    %v2282 = vunpack.c.h.b16 %v630
    %v2283 = vunpack.c.l.b16 %v631
    %v2284 = vunpack.c.h.b16 %v631
    %v2285 = vunpack.c.l.b16 %v632
    %v2286 = vunpack.c.h.b16 %v632
    %v2287 = vunpack.c.l.b16 %v633
    %v2288 = vunpack.c.h.b16 %v633
    %v2289 = vunpack.c.l.b16 %v634
    %v2290 = vunpack.c.h.b16 %v634
    %v2291 = vunpack.c.l.b16 %v635
    %v2292 = vunpack.c.h.b16 %v635
    %v2293 = vunpack.c.l.b16 %v636
    %v2294 = vunpack.c.h.b16 %v636
    %v2295 = vunpack.c.l.b16 %v637
    %v2296 = vunpack.c.h.b16 %v637
    %v2297 = vunpack.c.l.b16 %v638
    %v2298 = vunpack.c.h.b16 %v638
    %v2299 = vunpack.c.l.b16 %v639
    %v2300 = vunpack.c.h.b16 %v639
    %v2301 = vunpack.c.l.b16 %v640
    %v2302 = vunpack.c.h.b16 %v640
    %v2303 = vunpack.c.l.b16 %v641
    %v2304 = vunpack.c.h.b16 %v641
    %v2305 = vunpack.c.l.b16 %v642
    %v2306 = vunpack.c.h.b16 %v642
    %v2307 = vunpack.c.l.b16 %v643
    %v2308 = vunpack.c.h.b16 %v643
    %v2309 = vunpack.c.l.b16 %v644
    %v2310 = vunpack.c.h.b16 %v644
    %v2311 = vunpack.c.l.b16 %v645
    %v2312 = vunpack.c.h.b16 %v645
    %v2313 = vunpack.c.l.b16 %v646
    %v2314 = vunpack.c.h.b16 %v646
    %v2315 = vunpack.c.l.b16 %v647
    %v2316 = vunpack.c.h.b16 %v647
    %v2317 = vunpack.c.l.b16 %v648
    %v2318 = vunpack.c.h.b16 %v648
    %v2319 = vunpack.c.l.b16 %v649
    %v2320 = vunpack.c.h.b16 %v649
    %v2321 = vunpack.c.l.b16 %v650
    %v2322 = vunpack.c.h.b16 %v650
    %v2323 = vunpack.c.l.b16 %v651
    %v2324 = vunpack.c.h.b16 %v651
    %v2325 = vunpack.c.l.b16 %v652
    %v2326 = vunpack.c.h.b16 %v652
    %v2327 = vunpack.c.l.b16 %v653
    %v2328 = vunpack.c.h.b16 %v653
    %v2329 = vunpack.c.l.b16 %v654
    %v2330 = vunpack.c.h.b16 %v654
    %v2331 = vunpack.c.l.b16 %v655
    %v2332 = vunpack.c.h.b16 %v655
    %v2333 = vunpack.c.l.b16 %v656
    %v2334 = vunpack.c.h.b16 %v656
    %v2335 = vunpack.c.l.b16 %v657
    %v2336 = vunpack.c.h.b16 %v657
    %v2337 = vunpack.c.l.b16 %v658
    %v2338 = vunpack.c.h.b16 %v658
    %v2339 = vunpack.c.l.b16 %v659
    %v2340 = vunpack.c.h.b16 %v659
    %v2341 = vunpack.c.l.b16 %v660
    %v2342 = vunpack.c.h.b16 %v660
    %v2343 = vunpack.c.l.b16 %v661
    %v2344 = vunpack.c.h.b16 %v661
    %v2345 = vunpack.c.l.b16 %v662
    %v2346 = vunpack.c.h.b16 %v662
    %v2347 = vunpack.c.l.b16 %v663
    %v2348 = vunpack.c.h.b16 %v663
    %v2349 = vunpack.c.l.b16 %v664
    %v2350 = vunpack.c.h.b16 %v664
    %v2351 = vunpack.c.l.b16 %v665
    %v2352 = vunpack.c.h.b16 %v665
    %v2353 = vunpack.c.l.b16 %v666
    %v2354 = vunpack.c.h.b16 %v666
    %v2355 = vunpack.c.l.b16 %v667
    %v2356 = vunpack.c.h.b16 %v667
    %v2357 = vunpack.c.l.b16 %v668
    %v2358 = vunpack.c.h.b16 %v668
    %v2359 = vunpack.c.l.b16 %v669
    %v2360 = vunpack.c.h.b16 %v669
    %v2361 = vunpack.c.l.b16 %v670
    %v2362 = vunpack.c.h.b16 %v670
    %v2363 = vunpack.c.l.b16 %v671
    %v2364 = vunpack.c.h.b16 %v671
    %v2365 = vunpack.c.l.b16 %v672
    %v2366 = vunpack.c.h.b16 %v672
    %v2367 = vunpack.c.l.b16 %v673
    %v2368 = vunpack.c.h.b16 %v673
    %v2369 = vunpack.c.l.b16 %v674
    %v2370 = vunpack.c.h.b16 %v674
    %v2371 = vunpack.c.l.b16 %v675
    %v2372 = vunpack.c.h.b16 %v675
    %v2373 = vunpack.c.l.b16 %v676
    %v2374 = vunpack.c.h.b16 %v676
    %v2375 = vunpack.c.l.b16 %v677
    %v2376 = vunpack.c.h.b16 %v677
    %v2377 = vunpack.c.l.b16 %v678
    %v2378 = vunpack.c.h.b16 %v678
    %v2379 = vunpack.c.l.b16 %v679
    %v2380 = vunpack.c.h.b16 %v679
    %v2381 = vunpack.c.l.b16 %v680
    %v2382 = vunpack.c.h.b16 %v680
    %v2383 = vunpack.c.l.b16 %v681
    %v2384 = vunpack.c.h.b16 %v681
    %v2385 = vunpack.c.l.b16 %v682
    %v2386 = vunpack.c.h.b16 %v682
    %v2387 = vunpack.c.l.b16 %v683
    %v2388 = vunpack.c.h.b16 %v683
    %v2389 = vunpack.c.l.b16 %v684
    %v2390 = vunpack.c.h.b16 %v684
    %v2391 = vunpack.c.l.b16 %v685
    %v2392 = vunpack.c.h.b16 %v685
    %v2393 = vunpack.c.l.b16 %v686
    %v2394 = vunpack.c.h.b16 %v686
    %v2395 = vunpack.c.l.b16 %v687
    %v2396 = vunpack.c.h.b16 %v687
    %v2397 = vunpack.c.l.b16 %v688
    %v2398 = vunpack.c.h.b16 %v688
    %v2399 = vunpack.c.l.b16 %v689
    %v2400 = vunpack.c.h.b16 %v689
    %v2401 = vunpack.c.l.b16 %v690
    %v2402 = vunpack.c.h.b16 %v690
    %v2403 = vunpack.c.l.b16 %v691
    %v2404 = vunpack.c.h.b16 %v691
    %v2405 = vunpack.c.l.b16 %v692
    %v2406 = vunpack.c.h.b16 %v692
    %v2407 = vunpack.c.l.b16 %v693
    %v2408 = vunpack.c.h.b16 %v693
    %v2409 = vunpack.c.l.b16 %v694
    %v2410 = vunpack.c.h.b16 %v694
    %v2411 = vunpack.c.l.b16 %v695
    %v2412 = vunpack.c.h.b16 %v695
    %v2413 = vunpack.c.l.b16 %v696
    %v2414 = vunpack.c.h.b16 %v696
    %v2415 = vunpack.c.l.b16 %v697
    %v2416 = vunpack.c.h.b16 %v697
    %v2417 = vunpack.c.l.b16 %v698
    %v2418 = vunpack.c.h.b16 %v698
    %v2419 = vunpack.c.l.b16 %v699
    %v2420 = vunpack.c.h.b16 %v699
    %v2421 = vunpack.c.l.b16 %v700
    %v2422 = vunpack.c.h.b16 %v700
    %v2423 = vunpack.c.l.b16 %v701
    %v2424 = vunpack.c.h.b16 %v701
    %v2425 = vunpack.c.l.b16 %v702
    %v2426 = vunpack.c.h.b16 %v702
    %v2427 = vunpack.c.l.b16 %v703
    %v2428 = vunpack.c.h.b16 %v703
    %v2429 = vunpack.c.l.b16 %v704
    %v2430 = vunpack.c.h.b16 %v704
    %v2431 = vunpack.c.l.b16 %v705
    %v2432 = vunpack.c.h.b16 %v705
    %v2433 = vunpack.c.l.b16 %v706
    %v2434 = vunpack.c.h.b16 %v706
    %v2435 = vunpack.c.l.b16 %v707
    %v2436 = vunpack.c.h.b16 %v707
    %v2437 = vunpack.c.l.b16 %v708
    %v2438 = vunpack.c.h.b16 %v708
    %v2439 = vunpack.c.l.b16 %v709
    %v2440 = vunpack.c.h.b16 %v709
    %v2441 = vunpack.c.l.b16 %v710
    %v2442 = vunpack.c.h.b16 %v710
    %v2443 = vunpack.c.l.b16 %v711
    %v2444 = vunpack.c.h.b16 %v711
    %v2445 = vunpack.c.l.b16 %v712
    %v2446 = vunpack.c.h.b16 %v712
    %v2447 = vunpack.c.l.b16 %v713
    %v2448 = vunpack.c.h.b16 %v713
    %v2449 = vunpack.c.l.b16 %v714
    %v2450 = vunpack.c.h.b16 %v714
    %v2451 = vunpack.c.l.b16 %v715
    %v2452 = vunpack.c.h.b16 %v715
    %v2453 = vunpack.c.l.b16 %v716
    %v2454 = vunpack.c.h.b16 %v716
    %v2455 = vunpack.c.l.b16 %v717
    %v2456 = vunpack.c.h.b16 %v717
    %v2457 = vunpack.c.l.b16 %v718
    %v2458 = vunpack.c.h.b16 %v718
    %v2459 = vpack.c.b16 %v1309, %v1307
    %v2460 = vpack.c.b16 %v1310, %v1308
    %v2461 = vpack.c.b16 %v1313, %v1311
    %v2462 = vpack.c.b16 %v1314, %v1312
    %v2463 = vpack.c.b16 %v1317, %v1315
    %v2464 = vpack.c.b16 %v1318, %v1316
    %v2465 = vpack.c.b16 %v1321, %v1319
    %v2466 = vpack.c.b16 %v1322, %v1320
    %v2467 = vpack.c.b16 %v1325, %v1323
    %v2468 = vpack.c.b16 %v1326, %v1324
    %v2469 = vpack.c.b16 %v1329, %v1327
    %v2470 = vpack.c.b16 %v1330, %v1328
    %v2471 = vpack.c.b16 %v1333, %v1331
    %v2472 = vpack.c.b16 %v1334, %v1332
    %v2473 = vpack.c.b16 %v1337, %v1335
    %v2474 = vpack.c.b16 %v1338, %v1336
    %v2475 = vpack.c.b16 %v1341, %v1339
    %v2476 = vpack.c.b16 %v1342, %v1340
    %v2477 = vpack.c.b16 %v1345, %v1343
    %v2478 = vpack.c.b16 %v1346, %v1344
    %v2479 = vpack.c.b16 %v1349, %v1347
    %v2480 = vpack.c.b16 %v1350, %v1348
    %v2481 = vpack.c.b16 %v1353, %v1351
    %v2482 = vpack.c.b16 %v1354, %v1352
    %v2483 = vpack.c.b16 %v1357, %v1355
    %v2484 = vpack.c.b16 %v1358, %v1356
    %v2485 = vpack.c.b16 %v1361, %v1359
    %v2486 = vpack.c.b16 %v1362, %v1360
    %v2487 = vpack.c.b16 %v1365, %v1363
    %v2488 = vpack.c.b16 %v1366, %v1364
    %v2489 = vpack.c.b16 %v1369, %v1367
    %v2490 = vpack.c.b16 %v1370, %v1368
    %v2491 = vpack.c.b16 %v1373, %v1371
    %v2492 = vpack.c.b16 %v1374, %v1372
    %v2493 = vpack.c.b16 %v1377, %v1375
    %v2494 = vpack.c.b16 %v1378, %v1376
    %v2495 = vpack.c.b16 %v1381, %v1379
    %v2496 = vpack.c.b16 %v1382, %v1380
    %v2497 = vpack.c.b16 %v1385, %v1383
    %v2498 = vpack.c.b16 %v1386, %v1384
    %v2499 = vpack.c.b16 %v1389, %v1387
    %v2500 = vpack.c.b16 %v1390, %v1388
    %v2501 = vpack.c.b16 %v1393, %v1391
    %v2502 = vpack.c.b16 %v1394, %v1392
    %v2503 = vpack.c.b16 %v1397, %v1395
    %v2504 = vpack.c.b16 %v1398, %v1396
    %v2505 = vpack.c.b16 %v1401, %v1399
    %v2506 = vpack.c.b16 %v1402, %v1400
    %v2507 = vpack.c.b16 %v1405, %v1403
    %v2508 = vpack.c.b16 %v1406, %v1404
    %v2509 = vpack.c.b16 %v1409, %v1407
    %v2510 = vpack.c.b16 %v1410, %v1408
    %v2511 = vpack.c.b16 %v1413, %v1411
    %v2512 = vpack.c.b16 %v1414, %v1412
    %v2513 = vpack.c.b16 %v1417, %v1415
    %v2514 = vpack.c.b16 %v1418, %v1416
    %v2515 = vpack.c.b16 %v1421, %v1419
    %v2516 = vpack.c.b16 %v1422, %v1420
    %v2517 = vpack.c.b16 %v1425, %v1423
    %v2518 = vpack.c.b16 %v1426, %v1424
    %v2519 = vpack.c.b16 %v1429, %v1427
    %v2520 = vpack.c.b16 %v1430, %v1428
    %v2521 = vpack.c.b16 %v1433, %v1431
    %v2522 = vpack.c.b16 %v1434, %v1432
    %v2523 = vpack.c.b16 %v1437, %v1435
    %v2524 = vpack.c.b16 %v1438, %v1436
    %v2525 = vpack.c.b16 %v1441, %v1439
    %v2526 = vpack.c.b16 %v1442, %v1440
    %v2527 = vpack.c.b16 %v1445, %v1443
    %v2528 = vpack.c.b16 %v1446, %v1444
    %v2529 = vpack.c.b16 %v1449, %v1447
    %v2530 = vpack.c.b16 %v1450, %v1448
    %v2531 = vpack.c.b16 %v1453, %v1451
    %v2532 = vpack.c.b16 %v1454, %v1452
    %v2533 = vpack.c.b16 %v1457, %v1455
    %v2534 = vpack.c.b16 %v1458, %v1456
    %v2535 = vpack.c.b16 %v1461, %v1459
    %v2536 = vpack.c.b16 %v1462, %v1460
    %v2537 = vpack.c.b16 %v1465, %v1463
    %v2538 = vpack.c.b16 %v1466, %v1464
    %v2539 = vpack.c.b16 %v1469, %v1467
    %v2540 = vpack.c.b16 %v1470, %v1468
    %v2541 = vpack.c.b16 %v1473, %v1471
    %v2542 = vpack.c.b16 %v1474, %v1472
    %v2543 = vpack.c.b16 %v1477, %v1475
    %v2544 = vpack.c.b16 %v1478, %v1476
    %v2545 = vpack.c.b16 %v1481, %v1479
    %v2546 = vpack.c.b16 %v1482, %v1480
    %v2547 = vpack.c.b16 %v1485, %v1483
    %v2548 = vpack.c.b16 %v1486, %v1484
    %v2549 = vpack.c.b16 %v1489, %v1487
    %v2550 = vpack.c.b16 %v1490, %v1488
    %v2551 = vpack.c.b16 %v1493, %v1491
    %v2552 = vpack.c.b16 %v1494, %v1492
    %v2553 = vpack.c.b16 %v1497, %v1495
    %v2554 = vpack.c.b16 %v1498, %v1496
    %v2555 = vpack.c.b16 %v1501, %v1499
    %v2556 = vpack.c.b16 %v1502, %v1500
    %v2557 = vpack.c.b16 %v1505, %v1503
    %v2558 = vpack.c.b16 %v1506, %v1504
    %v2559 = vpack.c.b16 %v1509, %v1507
    %v2560 = vpack.c.b16 %v1510, %v1508
    %v2561 = vpack.c.b16 %v1513, %v1511
    %v2562 = vpack.c.b16 %v1514, %v1512
    %v2563 = vpack.c.b16 %v1517, %v1515
    %v2564 = vpack.c.b16 %v1518, %v1516
    %v2565 = vpack.c.b16 %v1521, %v1519
    %v2566 = vpack.c.b16 %v1522, %v1520
    %v2567 = vpack.c.b16 %v1525, %v1523
    %v2568 = vpack.c.b16 %v1526, %v1524
    %v2569 = vpack.c.b16 %v1529, %v1527
    %v2570 = vpack.c.b16 %v1530, %v1528
    %v2571 = vpack.c.b16 %v1533, %v1531
    %v2572 = vpack.c.b16 %v1534, %v1532
    %v2573 = vpack.c.b16 %v1537, %v1535
    %v2574 = vpack.c.b16 %v1538, %v1536
    %v2575 = vpack.c.b16 %v1541, %v1539
    %v2576 = vpack.c.b16 %v1542, %v1540
    %v2577 = vpack.c.b16 %v1545, %v1543
    %v2578 = vpack.c.b16 %v1546, %v1544
    %v2579 = vpack.c.b16 %v1549, %v1547
    %v2580 = vpack.c.b16 %v1550, %v1548
    %v2581 = vpack.c.b16 %v1553, %v1551
    %v2582 = vpack.c.b16 %v1554, %v1552
    %v2583 = vpack.c.b16 %v1557, %v1555
    %v2584 = vpack.c.b16 %v1558, %v1556
    %v2585 = vpack.c.b16 %v1561, %v1559
    %v2586 = vpack.c.b16 %v1562, %v1560
    %v2587 = vpack.c.b16 %v1565, %v1563
    %v2588 = vpack.c.b16 %v1566, %v1564
    %v2589 = vpack.c.b16 %v1569, %v1567
    %v2590 = vpack.c.b16 %v1570, %v1568
    %v2591 = vpack.c.b16 %v1573, %v1571
    %v2592 = vpack.c.b16 %v1574, %v1572
    %v2593 = vpack.c.b16 %v1577, %v1575
    %v2594 = vpack.c.b16 %v1578, %v1576
    %v2595 = vpack.c.b16 %v1581, %v1579
    %v2596 = vpack.c.b16 %v1582, %v1580
    %v2597 = vpack.c.b16 %v1585, %v1583
    %v2598 = vpack.c.b16 %v1586, %v1584
    %v2599 = vpack.c.b16 %v1589, %v1587
    %v2600 = vpack.c.b16 %v1590, %v1588
    %v2601 = vpack.c.b16 %v1593, %v1591
    %v2602 = vpack.c.b16 %v1594, %v1592
    %v2603 = vpack.c.b16 %v1597, %v1595
    %v2604 = vpack.c.b16 %v1598, %v1596
    %v2605 = vpack.c.b16 %v1601, %v1599
    %v2606 = vpack.c.b16 %v1602, %v1600
    %v2607 = vpack.c.b16 %v1605, %v1603
    %v2608 = vpack.c.b16 %v1606, %v1604
    %v2609 = vpack.c.b16 %v1609, %v1607
    %v2610 = vpack.c.b16 %v1610, %v1608
    %v2611 = vpack.c.b16 %v1613, %v1611
    %v2612 = vpack.c.b16 %v1614, %v1612
    %v2613 = vpack.c.b16 %v1617, %v1615
    %v2614 = vpack.c.b16 %v1618, %v1616
    %v2615 = vpack.c.b16 %v1621, %v1619
    %v2616 = vpack.c.b16 %v1622, %v1620
    %v2617 = vpack.c.b16 %v1625, %v1623
    %v2618 = vpack.c.b16 %v1626, %v1624
    %v2619 = vpack.c.b16 %v1629, %v1627
    %v2620 = vpack.c.b16 %v1630, %v1628
    %v2621 = vpack.c.b16 %v1633, %v1631
    %v2622 = vpack.c.b16 %v1634, %v1632
    %v2623 = vpack.c.b16 %v1637, %v1635
    %v2624 = vpack.c.b16 %v1638, %v1636
    %v2625 = vpack.c.b16 %v1641, %v1639
    %v2626 = vpack.c.b16 %v1642, %v1640
    %v2627 = vpack.c.b16 %v1645, %v1643
    %v2628 = vpack.c.b16 %v1646, %v1644
    %v2629 = vpack.c.b16 %v1649, %v1647
    %v2630 = vpack.c.b16 %v1650, %v1648
    %v2631 = vpack.c.b16 %v1653, %v1651
    %v2632 = vpack.c.b16 %v1654, %v1652
    %v2633 = vpack.c.b16 %v1657, %v1655
    %v2634 = vpack.c.b16 %v1658, %v1656
    %v2635 = vpack.c.b16 %v1661, %v1659
    %v2636 = vpack.c.b16 %v1662, %v1660
    %v2637 = vpack.c.b16 %v1665, %v1663
    %v2638 = vpack.c.b16 %v1666, %v1664
    %v2639 = vpack.c.b16 %v1669, %v1667
    %v2640 = vpack.c.b16 %v1670, %v1668
    %v2641 = vpack.c.b16 %v1673, %v1671
    %v2642 = vpack.c.b16 %v1674, %v1672
    %v2643 = vpack.c.b16 %v1677, %v1675
    %v2644 = vpack.c.b16 %v1678, %v1676
    %v2645 = vpack.c.b16 %v1681, %v1679
    %v2646 = vpack.c.b16 %v1682, %v1680
    %v2647 = vpack.c.b16 %v1685, %v1683
    %v2648 = vpack.c.b16 %v1686, %v1684
    %v2649 = vpack.c.b16 %v1689, %v1687
    %v2650 = vpack.c.b16 %v1690, %v1688
    %v2651 = vpack.c.b16 %v1693, %v1691
    %v2652 = vpack.c.b16 %v1694, %v1692
    %v2653 = vpack.c.b16 %v1697, %v1695
    %v2654 = vpack.c.b16 %v1698, %v1696
    %v2655 = vpack.c.b16 %v1701, %v1699
    %v2656 = vpack.c.b16 %v1702, %v1700
    %v2657 = vpack.c.b16 %v1705, %v1703
    %v2658 = vpack.c.b16 %v1706, %v1704
    %v2659 = vpack.c.b16 %v1709, %v1707
    %v2660 = vpack.c.b16 %v1710, %v1708
    %v2661 = vpack.c.b16 %v1713, %v1711
    %v2662 = vpack.c.b16 %v1714, %v1712
    %v2663 = vpack.c.b16 %v1717, %v1715
    %v2664 = vpack.c.b16 %v1718, %v1716
    %v2665 = vpack.c.b16 %v1721, %v1719
    %v2666 = vpack.c.b16 %v1722, %v1720
    %v2667 = vpack.c.b16 %v1725, %v1723
    %v2668 = vpack.c.b16 %v1726, %v1724
    %v2669 = vpack.c.b16 %v1729, %v1727
    %v2670 = vpack.c.b16 %v1730, %v1728
    %v2671 = vpack.c.b16 %v1733, %v1731
    %v2672 = vpack.c.b16 %v1734, %v1732
    %v2673 = vpack.c.b16 %v1737, %v1735
    %v2674 = vpack.c.b16 %v1738, %v1736
    %v2675 = vpack.c.b16 %v1741, %v1739
    %v2676 = vpack.c.b16 %v1742, %v1740
    %v2677 = vpack.c.b16 %v1745, %v1743
    %v2678 = vpack.c.b16 %v1746, %v1744
    %v2679 = vpack.c.b16 %v1749, %v1747
    %v2680 = vpack.c.b16 %v1750, %v1748
    %v2681 = vpack.c.b16 %v1753, %v1751
    %v2682 = vpack.c.b16 %v1754, %v1752
    %v2683 = vpack.c.b16 %v1757, %v1755
    %v2684 = vpack.c.b16 %v1758, %v1756
    %v2685 = vpack.c.b16 %v1761, %v1759
    %v2686 = vpack.c.b16 %v1762, %v1760
    %v2687 = vpack.c.b16 %v1765, %v1763
    %v2688 = vpack.c.b16 %v1766, %v1764
    %v2689 = vpack.c.b16 %v1769, %v1767
    %v2690 = vpack.c.b16 %v1770, %v1768
    %v2691 = vpack.c.b16 %v1773, %v1771
    %v2692 = vpack.c.b16 %v1774, %v1772
    %v2693 = vpack.c.b16 %v1777, %v1775
    %v2694 = vpack.c.b16 %v1778, %v1776
    %v2695 = vpack.c.b16 %v1781, %v1779
    %v2696 = vpack.c.b16 %v1782, %v1780
    %v2697 = vpack.c.b16 %v1785, %v1783
    %v2698 = vpack.c.b16 %v1786, %v1784
    %v2699 = vpack.c.b16 %v1789, %v1787
    %v2700 = vpack.c.b16 %v1790, %v1788
    %v2701 = vpack.c.b16 %v1793, %v1791
    %v2702 = vpack.c.b16 %v1794, %v1792
    %v2703 = vpack.c.b16 %v1797, %v1795
    %v2704 = vpack.c.b16 %v1798, %v1796
    %v2705 = vpack.c.b16 %v1801, %v1799
    %v2706 = vpack.c.b16 %v1802, %v1800
    %v2707 = vpack.c.b16 %v1805, %v1803
    %v2708 = vpack.c.b16 %v1806, %v1804
    %v2709 = vpack.c.b16 %v1809, %v1807
    %v2710 = vpack.c.b16 %v1810, %v1808
    %v2711 = vpack.c.b16 %v1813, %v1811
    %v2712 = vpack.c.b16 %v1814, %v1812
    %v2713 = vpack.c.b16 %v1817, %v1815
    %v2714 = vpack.c.b16 %v1818, %v1816
    %v2715 = vpack.c.b16 %v1821, %v1819
    %v2716 = vpack.c.b16 %v1822, %v1820
    %v2717 = vpack.c.b16 %v1825, %v1823
    %v2718 = vpack.c.b16 %v1826, %v1824
    %v2719 = vpack.c.b16 %v1829, %v1827
    %v2720 = vpack.c.b16 %v1830, %v1828
    %v2721 = vpack.c.b16 %v1833, %v1831
    %v2722 = vpack.c.b16 %v1834, %v1832
    %v2723 = vpack.c.b16 %v1837, %v1835
    %v2724 = vpack.c.b16 %v1838, %v1836
    %v2725 = vpack.c.b16 %v1841, %v1839
    %v2726 = vpack.c.b16 %v1842, %v1840
    %v2727 = vpack.c.b16 %v1845, %v1843
    %v2728 = vpack.c.b16 %v1846, %v1844
    %v2729 = vpack.c.b16 %v1849, %v1847
    %v2730 = vpack.c.b16 %v1850, %v1848
    %v2731 = vpack.c.b16 %v1853, %v1851
    %v2732 = vpack.c.b16 %v1854, %v1852
    %v2733 = vpack.c.b16 %v1857, %v1855
    %v2734 = vpack.c.b16 %v1858, %v1856
    %v2735 = vpack.c.b16 %v1861, %v1859
    %v2736 = vpack.c.b16 %v1862, %v1860
    %v2737 = vpack.c.b16 %v1865, %v1863
    %v2738 = vpack.c.b16 %v1866, %v1864
    %v2739 = vpack.c.b16 %v1869, %v1867
    %v2740 = vpack.c.b16 %v1870, %v1868
    %v2741 = vpack.c.b16 %v1873, %v1871
    %v2742 = vpack.c.b16 %v1874, %v1872
    %v2743 = vpack.c.b16 %v1877, %v1875
    %v2744 = vpack.c.b16 %v1878, %v1876
    %v2745 = vpack.c.b16 %v1881, %v1879
    %v2746 = vpack.c.b16 %v1882, %v1880
    %v2747 = vpack.c.b16 %v1885, %v1883
    %v2748 = vpack.c.b16 %v1886, %v1884
    %v2749 = vpack.c.b16 %v1889, %v1887
    %v2750 = vpack.c.b16 %v1890, %v1888
    %v2751 = vpack.c.b16 %v1893, %v1891
    %v2752 = vpack.c.b16 %v1894, %v1892
    %v2753 = vpack.c.b16 %v1897, %v1895
    %v2754 = vpack.c.b16 %v1898, %v1896
    %v2755 = vpack.c.b16 %v1901, %v1899
    %v2756 = vpack.c.b16 %v1902, %v1900
    %v2757 = vpack.c.b16 %v1905, %v1903
    %v2758 = vpack.c.b16 %v1906, %v1904
    %v2759 = vpack.c.b16 %v1909, %v1907
    %v2760 = vpack.c.b16 %v1910, %v1908
    %v2761 = vpack.c.b16 %v1913, %v1911
    %v2762 = vpack.c.b16 %v1914, %v1912
    %v2763 = vpack.c.b16 %v1917, %v1915
    %v2764 = vpack.c.b16 %v1918, %v1916
    %v2765 = vpack.c.b16 %v1921, %v1919
    %v2766 = vpack.c.b16 %v1922, %v1920
    %v2767 = vpack.c.b16 %v1925, %v1923
    %v2768 = vpack.c.b16 %v1926, %v1924
    %v2769 = vpack.c.b16 %v1929, %v1927
    %v2770 = vpack.c.b16 %v1930, %v1928
    %v2771 = vpack.c.b16 %v1933, %v1931
    %v2772 = vpack.c.b16 %v1934, %v1932
    %v2773 = vpack.c.b16 %v1937, %v1935
    %v2774 = vpack.c.b16 %v1938, %v1936
    %v2775 = vpack.c.b16 %v1941, %v1939
    %v2776 = vpack.c.b16 %v1942, %v1940
    %v2777 = vpack.c.b16 %v1945, %v1943
    %v2778 = vpack.c.b16 %v1946, %v1944
    %v2779 = vpack.c.b16 %v1949, %v1947
    %v2780 = vpack.c.b16 %v1950, %v1948
    %v2781 = vpack.c.b16 %v1953, %v1951
    %v2782 = vpack.c.b16 %v1954, %v1952
    %v2783 = vpack.c.b16 %v1957, %v1955
    %v2784 = vpack.c.b16 %v1958, %v1956
    %v2785 = vpack.c.b16 %v1961, %v1959
    %v2786 = vpack.c.b16 %v1962, %v1960
    %v2787 = vpack.c.b16 %v1965, %v1963
    %v2788 = vpack.c.b16 %v1966, %v1964
    %v2789 = vpack.c.b16 %v1969, %v1967
    %v2790 = vpack.c.b16 %v1970, %v1968
    %v2791 = vpack.c.b16 %v1973, %v1971
    %v2792 = vpack.c.b16 %v1974, %v1972
    %v2793 = vpack.c.b16 %v1977, %v1975
    %v2794 = vpack.c.b16 %v1978, %v1976
    %v2795 = vpack.c.b16 %v1981, %v1979
    %v2796 = vpack.c.b16 %v1982, %v1980
    %v2797 = vpack.c.b16 %v1985, %v1983
    %v2798 = vpack.c.b16 %v1986, %v1984
    %v2799 = vpack.c.b16 %v1989, %v1987
    %v2800 = vpack.c.b16 %v1990, %v1988
    %v2801 = vpack.c.b16 %v1993, %v1991
    %v2802 = vpack.c.b16 %v1994, %v1992
    %v2803 = vpack.c.b16 %v1997, %v1995
    %v2804 = vpack.c.b16 %v1998, %v1996
    %v2805 = vpack.c.b16 %v2001, %v1999
    %v2806 = vpack.c.b16 %v2002, %v2000
    %v2807 = vpack.c.b16 %v2005, %v2003
    %v2808 = vpack.c.b16 %v2006, %v2004
    %v2809 = vpack.c.b16 %v2009, %v2007
    %v2810 = vpack.c.b16 %v2010, %v2008
    %v2811 = vpack.c.b16 %v2013, %v2011
    %v2812 = vpack.c.b16 %v2014, %v2012
    %v2813 = vpack.c.b16 %v2017, %v2015
    %v2814 = vpack.c.b16 %v2018, %v2016
    %v2815 = vpack.c.b16 %v2021, %v2019
    %v2816 = vpack.c.b16 %v2022, %v2020
    %v2817 = vpack.c.b16 %v2025, %v2023
    %v2818 = vpack.c.b16 %v2026, %v2024
    %v2819 = vpack.c.b16 %v2029, %v2027
    %v2820 = vpack.c.b16 %v2030, %v2028
    %v2821 = vpack.c.b16 %v2033, %v2031
    %v2822 = vpack.c.b16 %v2034, %v2032
    %v2823 = vpack.c.b16 %v2037, %v2035
    %v2824 = vpack.c.b16 %v2038, %v2036
    %v2825 = vpack.c.b16 %v2041, %v2039
    %v2826 = vpack.c.b16 %v2042, %v2040
    %v2827 = vpack.c.b16 %v2045, %v2043
    %v2828 = vpack.c.b16 %v2046, %v2044
    %v2829 = vpack.c.b16 %v2049, %v2047
    %v2830 = vpack.c.b16 %v2050, %v2048
    %v2831 = vpack.c.b16 %v2053, %v2051
    %v2832 = vpack.c.b16 %v2054, %v2052
    %v2833 = vpack.c.b16 %v2057, %v2055
    %v2834 = vpack.c.b16 %v2058, %v2056
    %v2835 = vpack.c.b16 %v2061, %v2059
    %v2836 = vpack.c.b16 %v2062, %v2060
    %v2837 = vpack.c.b16 %v2065, %v2063
    %v2838 = vpack.c.b16 %v2066, %v2064
    %v2839 = vpack.c.b16 %v2069, %v2067
    %v2840 = vpack.c.b16 %v2070, %v2068
    %v2841 = vpack.c.b16 %v2073, %v2071
    %v2842 = vpack.c.b16 %v2074, %v2072
    %v2843 = vpack.c.b16 %v2077, %v2075
    %v2844 = vpack.c.b16 %v2078, %v2076
    %v2845 = vpack.c.b16 %v2081, %v2079
    %v2846 = vpack.c.b16 %v2082, %v2080
    %v2847 = vpack.c.b16 %v2085, %v2083
    %v2848 = vpack.c.b16 %v2086, %v2084
    %v2849 = vpack.c.b16 %v2089, %v2087
    %v2850 = vpack.c.b16 %v2090, %v2088
    %v2851 = vpack.c.b16 %v2093, %v2091
    %v2852 = vpack.c.b16 %v2094, %v2092
    %v2853 = vpack.c.b16 %v2097, %v2095
    %v2854 = vpack.c.b16 %v2098, %v2096
    %v2855 = vpack.c.b16 %v2101, %v2099
    %v2856 = vpack.c.b16 %v2102, %v2100
    %v2857 = vpack.c.b16 %v2105, %v2103
    %v2858 = vpack.c.b16 %v2106, %v2104
    %v2859 = vpack.c.b16 %v2109, %v2107
    %v2860 = vpack.c.b16 %v2110, %v2108
    %v2861 = vpack.c.b16 %v2113, %v2111
    %v2862 = vpack.c.b16 %v2114, %v2112
    %v2863 = vpack.c.b16 %v2117, %v2115
    %v2864 = vpack.c.b16 %v2118, %v2116
    %v2865 = vpack.c.b16 %v2121, %v2119
    %v2866 = vpack.c.b16 %v2122, %v2120
    %v2867 = vpack.c.b16 %v2125, %v2123
    %v2868 = vpack.c.b16 %v2126, %v2124
    %v2869 = vpack.c.b16 %v2129, %v2127
    %v2870 = vpack.c.b16 %v2130, %v2128
    %v2871 = vpack.c.b16 %v2133, %v2131
    %v2872 = vpack.c.b16 %v2134, %v2132
    %v2873 = vpack.c.b16 %v2137, %v2135
    %v2874 = vpack.c.b16 %v2138, %v2136
    %v2875 = vpack.c.b16 %v2141, %v2139
    %v2876 = vpack.c.b16 %v2142, %v2140
    %v2877 = vpack.c.b16 %v2145, %v2143
    %v2878 = vpack.c.b16 %v2146, %v2144
    %v2879 = vpack.c.b16 %v2149, %v2147
    %v2880 = vpack.c.b16 %v2150, %v2148
    %v2881 = vpack.c.b16 %v2153, %v2151
    %v2882 = vpack.c.b16 %v2154, %v2152
    %v2883 = vpack.c.b16 %v2157, %v2155
    %v2884 = vpack.c.b16 %v2158, %v2156
    %v2885 = vpack.c.b16 %v2161, %v2159
    %v2886 = vpack.c.b16 %v2162, %v2160
    %v2887 = vpack.c.b16 %v2165, %v2163
    %v2888 = vpack.c.b16 %v2166, %v2164
    %v2889 = vpack.c.b16 %v2169, %v2167
    %v2890 = vpack.c.b16 %v2170, %v2168
    %v2891 = vpack.c.b16 %v2173, %v2171
    %v2892 = vpack.c.b16 %v2174, %v2172
    %v2893 = vpack.c.b16 %v2177, %v2175
    %v2894 = vpack.c.b16 %v2178, %v2176
    %v2895 = vpack.c.b16 %v2181, %v2179
    %v2896 = vpack.c.b16 %v2182, %v2180
    %v2897 = vpack.c.b16 %v2185, %v2183
    %v2898 = vpack.c.b16 %v2186, %v2184
    %v2899 = vpack.c.b16 %v2189, %v2187
    %v2900 = vpack.c.b16 %v2190, %v2188
    %v2901 = vpack.c.b16 %v2193, %v2191
    %v2902 = vpack.c.b16 %v2194, %v2192
    %v2903 = vpack.c.b16 %v2197, %v2195
    %v2904 = vpack.c.b16 %v2198, %v2196
    %v2905 = vpack.c.b16 %v2201, %v2199
    %v2906 = vpack.c.b16 %v2202, %v2200
    %v2907 = vpack.c.b16 %v2205, %v2203
    %v2908 = vpack.c.b16 %v2206, %v2204
    %v2909 = vpack.c.b16 %v2209, %v2207
    %v2910 = vpack.c.b16 %v2210, %v2208
    %v2911 = vpack.c.b16 %v2213, %v2211
    %v2912 = vpack.c.b16 %v2214, %v2212
    %v2913 = vpack.c.b16 %v2217, %v2215
    %v2914 = vpack.c.b16 %v2218, %v2216
    %v2915 = vpack.c.b16 %v2221, %v2219
    %v2916 = vpack.c.b16 %v2222, %v2220
    %v2917 = vpack.c.b16 %v2225, %v2223
    %v2918 = vpack.c.b16 %v2226, %v2224
    %v2919 = vpack.c.b16 %v2229, %v2227
    %v2920 = vpack.c.b16 %v2230, %v2228
    %v2921 = vpack.c.b16 %v2233, %v2231
    %v2922 = vpack.c.b16 %v2234, %v2232
    %v2923 = vpack.c.b16 %v2237, %v2235
    %v2924 = vpack.c.b16 %v2238, %v2236
    %v2925 = vpack.c.b16 %v2241, %v2239
    %v2926 = vpack.c.b16 %v2242, %v2240
    %v2927 = vpack.c.b16 %v2245, %v2243
    %v2928 = vpack.c.b16 %v2246, %v2244
    %v2929 = vpack.c.b16 %v2249, %v2247
    %v2930 = vpack.c.b16 %v2250, %v2248
    %v2931 = vpack.c.b16 %v2253, %v2251
    %v2932 = vpack.c.b16 %v2254, %v2252
    %v2933 = vpack.c.b16 %v2257, %v2255
    %v2934 = vpack.c.b16 %v2258, %v2256
    %v2935 = vpack.c.b16 %v2261, %v2259
    %v2936 = vpack.c.b16 %v2262, %v2260
    %v2937 = vpack.c.b16 %v2265, %v2263
    %v2938 = vpack.c.b16 %v2266, %v2264
    %v2939 = vpack.c.b16 %v2269, %v2267
    %v2940 = vpack.c.b16 %v2270, %v2268
    %v2941 = vpack.c.b16 %v2273, %v2271
    %v2942 = vpack.c.b16 %v2274, %v2272
    %v2943 = vpack.c.b16 %v2277, %v2275
    %v2944 = vpack.c.b16 %v2278, %v2276
    %v2945 = vpack.c.b16 %v2281, %v2279
    %v2946 = vpack.c.b16 %v2282, %v2280
    %v2947 = vpack.c.b16 %v2285, %v2283
    %v2948 = vpack.c.b16 %v2286, %v2284
    %v2949 = vpack.c.b16 %v2289, %v2287
    %v2950 = vpack.c.b16 %v2290, %v2288
    %v2951 = vpack.c.b16 %v2293, %v2291
    %v2952 = vpack.c.b16 %v2294, %v2292
    %v2953 = vpack.c.b16 %v2297, %v2295
    %v2954 = vpack.c.b16 %v2298, %v2296
    %v2955 = vpack.c.b16 %v2301, %v2299
    %v2956 = vpack.c.b16 %v2302, %v2300
    %v2957 = vpack.c.b16 %v2305, %v2303
    %v2958 = vpack.c.b16 %v2306, %v2304
    %v2959 = vpack.c.b16 %v2309, %v2307
    %v2960 = vpack.c.b16 %v2310, %v2308
    %v2961 = vpack.c.b16 %v2313, %v2311
    %v2962 = vpack.c.b16 %v2314, %v2312
    %v2963 = vpack.c.b16 %v2317, %v2315
    %v2964 = vpack.c.b16 %v2318, %v2316
    %v2965 = vpack.c.b16 %v2321, %v2319
    %v2966 = vpack.c.b16 %v2322, %v2320
    %v2967 = vpack.c.b16 %v2325, %v2323
    %v2968 = vpack.c.b16 %v2326, %v2324
    %v2969 = vpack.c.b16 %v2329, %v2327
    %v2970 = vpack.c.b16 %v2330, %v2328
    %v2971 = vpack.c.b16 %v2333, %v2331
    %v2972 = vpack.c.b16 %v2334, %v2332
    %v2973 = vpack.c.b16 %v2337, %v2335
    %v2974 = vpack.c.b16 %v2338, %v2336
    %v2975 = vpack.c.b16 %v2341, %v2339
    %v2976 = vpack.c.b16 %v2342, %v2340
    %v2977 = vpack.c.b16 %v2345, %v2343
    %v2978 = vpack.c.b16 %v2346, %v2344
    %v2979 = vpack.c.b16 %v2349, %v2347
    %v2980 = vpack.c.b16 %v2350, %v2348
    %v2981 = vpack.c.b16 %v2353, %v2351
    %v2982 = vpack.c.b16 %v2354, %v2352
    %v2983 = vpack.c.b16 %v2357, %v2355
    %v2984 = vpack.c.b16 %v2358, %v2356
    %v2985 = vpack.c.b16 %v2361, %v2359
    %v2986 = vpack.c.b16 %v2362, %v2360
    %v2987 = vpack.c.b16 %v2365, %v2363
    %v2988 = vpack.c.b16 %v2366, %v2364
    %v2989 = vpack.c.b16 %v2369, %v2367
    %v2990 = vpack.c.b16 %v2370, %v2368
    %v2991 = vpack.c.b16 %v2373, %v2371
    %v2992 = vpack.c.b16 %v2374, %v2372
    %v2993 = vpack.c.b16 %v2377, %v2375
    %v2994 = vpack.c.b16 %v2378, %v2376
    %v2995 = vpack.c.b16 %v2381, %v2379
    %v2996 = vpack.c.b16 %v2382, %v2380
    %v2997 = vpack.c.b16 %v2385, %v2383
    %v2998 = vpack.c.b16 %v2386, %v2384
    %v2999 = vpack.c.b16 %v2389, %v2387
    %v3000 = vpack.c.b16 %v2390, %v2388
    %v3001 = vpack.c.b16 %v2393, %v2391
    %v3002 = vpack.c.b16 %v2394, %v2392
    %v3003 = vpack.c.b16 %v2397, %v2395
    %v3004 = vpack.c.b16 %v2398, %v2396
    %v3005 = vpack.c.b16 %v2401, %v2399
    %v3006 = vpack.c.b16 %v2402, %v2400
    %v3007 = vpack.c.b16 %v2405, %v2403
    %v3008 = vpack.c.b16 %v2406, %v2404
    %v3009 = vpack.c.b16 %v2409, %v2407
    %v3010 = vpack.c.b16 %v2410, %v2408
    %v3011 = vpack.c.b16 %v2413, %v2411
    %v3012 = vpack.c.b16 %v2414, %v2412
    %v3013 = vpack.c.b16 %v2417, %v2415
    %v3014 = vpack.c.b16 %v2418, %v2416
    %v3015 = vpack.c.b16 %v2421, %v2419
    %v3016 = vpack.c.b16 %v2422, %v2420
    %v3017 = vpack.c.b16 %v2425, %v2423
    %v3018 = vpack.c.b16 %v2426, %v2424
    %v3019 = vpack.c.b16 %v2429, %v2427
    %v3020 = vpack.c.b16 %v2430, %v2428
    %v3021 = vpack.c.b16 %v2433, %v2431
    %v3022 = vpack.c.b16 %v2434, %v2432
    %v3023 = vpack.c.b16 %v2437, %v2435
    %v3024 = vpack.c.b16 %v2438, %v2436
    %v3025 = vpack.c.b16 %v2441, %v2439
    %v3026 = vpack.c.b16 %v2442, %v2440
    %v3027 = vpack.c.b16 %v2445, %v2443
    %v3028 = vpack.c.b16 %v2446, %v2444
    %v3029 = vpack.c.b16 %v2449, %v2447
    %v3030 = vpack.c.b16 %v2450, %v2448
    %v3031 = vpack.c.b16 %v2453, %v2451
    %v3032 = vpack.c.b16 %v2454, %v2452
    %v3033 = vpack.c.b16 %v2457, %v2455
    %v3034 = vpack.c.b16 %v2458, %v2456
    %3611 = vmatprep.subr.bf16.mxu0 %v2474
    %3612 = vmatpush1.bf16.msra.mxu0 %v2473
    %3613 = vmatprep.subr.bf16.mxu0 %v2472
    %3614 = vmatpush1.bf16.msra.mxu0 %v2471
    %3615 = vmatprep.subr.bf16.mxu0 %v2470
    %3616 = vmatpush1.bf16.msra.mxu0 %v2469
    %3617 = vmatprep.subr.bf16.mxu0 %v2468
    %3618 = vmatpush1.bf16.msra.mxu0 %v2467
    %3619 = vmatprep.subr.bf16.mxu0 %v2466
    %3620 = vmatpush1.bf16.msra.mxu0 %v2465
    %3621 = vmatprep.subr.bf16.mxu0 %v2464
    %3622 = vmatpush1.bf16.msra.mxu0 %v2463
    %3623 = vmatprep.subr.bf16.mxu0 %v2462
    %3624 = vmatpush1.bf16.msra.mxu0 %v2461
    %3625 = vmatprep.subr.bf16.mxu0 %v2460
    %3626 = vmatpush1.bf16.msra.mxu0 %v2459
    %3627 = vmatprep.subr.bf16.mxu0 %v2490
    %3628 = vmatpush2.bf16.msra.mxu0 %v2489
    %3629 = vmatprep.subr.bf16.mxu0 %v2488
    %3630 = vmatpush2.bf16.msra.mxu0 %v2487
    %3631 = vmatprep.subr.bf16.mxu0 %v2486
    %3632 = vmatpush2.bf16.msra.mxu0 %v2485
    %3633 = vmatprep.subr.bf16.mxu0 %v2484
    %3634 = vmatpush2.bf16.msra.mxu0 %v2483
    %3635 = vmatprep.subr.bf16.mxu0 %v2482
    %3636 = vmatpush2.bf16.msra.mxu0 %v2481
    %3637 = vmatprep.subr.bf16.mxu0 %v2480
    %3638 = vmatpush2.bf16.msra.mxu0 %v2479
    %3639 = vmatprep.subr.bf16.mxu0 %v2478
    %3640 = vmatpush2.bf16.msra.mxu0 %v2477
    %3641 = vmatprep.subr.bf16.mxu0 %v2476
    %3642 = vmatpush2.bf16.msra.mxu0 %v2475
    %3643 = vmatprep.mubr.bf16.mxu0 %v108
    %3644 = vmatmul.mubr.bf16.gmra.mxu0 %v107
    %v3645 = vpop.f32.mrf.mxu0
    %v3646 = vadd.f32 %v724, %v3645
    %v3647 = vpop.f32.mrf.mxu0
    %v3648 = vadd.f32 %v728, %v3647
    %v3649 = vpop.f32.mrf.mxu0
    %v3650 = vpop.f32.mrf.mxu0
    %3651 = vdwg.mxu0
    %3652 = vmatprep.subr.bf16.mxu0 %v2506
    %3653 = vmatpush1.bf16.msra.mxu0 %v2505
    %3654 = vmatprep.subr.bf16.mxu0 %v2504
    %3655 = vmatpush1.bf16.msra.mxu0 %v2503
    %3656 = vmatprep.subr.bf16.mxu0 %v2502
    %3657 = vmatpush1.bf16.msra.mxu0 %v2501
    %3658 = vmatprep.subr.bf16.mxu0 %v2500
    %3659 = vmatpush1.bf16.msra.mxu0 %v2499
    %3660 = vmatprep.subr.bf16.mxu0 %v2498
    %3661 = vmatpush1.bf16.msra.mxu0 %v2497
    %3662 = vmatprep.subr.bf16.mxu0 %v2496
    %3663 = vmatpush1.bf16.msra.mxu0 %v2495
    %3664 = vmatprep.subr.bf16.mxu0 %v2494
    %3665 = vmatpush1.bf16.msra.mxu0 %v2493
    %3666 = vmatprep.subr.bf16.mxu0 %v2492
    %3667 = vmatpush1.bf16.msra.mxu0 %v2491
    %3668 = vmatprep.subr.bf16.mxu0 %v2522
    %3669 = vmatpush2.bf16.msra.mxu0 %v2521
    %3670 = vmatprep.subr.bf16.mxu0 %v2520
    %3671 = vmatpush2.bf16.msra.mxu0 %v2519
    %3672 = vmatprep.subr.bf16.mxu0 %v2518
    %3673 = vmatpush2.bf16.msra.mxu0 %v2517
    %3674 = vmatprep.subr.bf16.mxu0 %v2516
    %3675 = vmatpush2.bf16.msra.mxu0 %v2515
    %3676 = vmatprep.subr.bf16.mxu0 %v2514
    %3677 = vmatpush2.bf16.msra.mxu0 %v2513
    %3678 = vmatprep.subr.bf16.mxu0 %v2512
    %3679 = vmatpush2.bf16.msra.mxu0 %v2511
    %3680 = vmatprep.subr.bf16.mxu0 %v2510
    %3681 = vmatpush2.bf16.msra.mxu0 %v2509
    %3682 = vmatprep.subr.bf16.mxu0 %v2508
    %3683 = vmatpush2.bf16.msra.mxu0 %v2507
    %3684 = vmatprep.mubr.bf16.mxu0 %v110
    %3685 = vmatmul.mubr.bf16.gmra.mxu0 %v109
    %v3686 = vpop.f32.mrf.mxu0
    %v3687 = vadd.f32 %v3646, %v3686
    %v3688 = vpop.f32.mrf.mxu0
    %v3689 = vadd.f32 %v3648, %v3688
    %v3690 = vpop.f32.mrf.mxu0
    %v3691 = vpop.f32.mrf.mxu0
    %3692 = vdwg.mxu0
    %3693 = vmatprep.subr.bf16.mxu0 %v2538
    %3694 = vmatpush1.bf16.msra.mxu0 %v2537
    %3695 = vmatprep.subr.bf16.mxu0 %v2536
    %3696 = vmatpush1.bf16.msra.mxu0 %v2535
    %3697 = vmatprep.subr.bf16.mxu0 %v2534
    %3698 = vmatpush1.bf16.msra.mxu0 %v2533
    %3699 = vmatprep.subr.bf16.mxu0 %v2532
    %3700 = vmatpush1.bf16.msra.mxu0 %v2531
    %3701 = vmatprep.subr.bf16.mxu0 %v2530
    %3702 = vmatpush1.bf16.msra.mxu0 %v2529
    %3703 = vmatprep.subr.bf16.mxu0 %v2528
    %3704 = vmatpush1.bf16.msra.mxu0 %v2527
    %3705 = vmatprep.subr.bf16.mxu0 %v2526
    %3706 = vmatpush1.bf16.msra.mxu0 %v2525
    %3707 = vmatprep.subr.bf16.mxu0 %v2524
    %3708 = vmatpush1.bf16.msra.mxu0 %v2523
    %3709 = vmatprep.subr.bf16.mxu0 %v2554
    %3710 = vmatpush2.bf16.msra.mxu0 %v2553
    %3711 = vmatprep.subr.bf16.mxu0 %v2552
    %3712 = vmatpush2.bf16.msra.mxu0 %v2551
    %3713 = vmatprep.subr.bf16.mxu0 %v2550
    %3714 = vmatpush2.bf16.msra.mxu0 %v2549
    %3715 = vmatprep.subr.bf16.mxu0 %v2548
    %3716 = vmatpush2.bf16.msra.mxu0 %v2547
    %3717 = vmatprep.subr.bf16.mxu0 %v2546
    %3718 = vmatpush2.bf16.msra.mxu0 %v2545
    %3719 = vmatprep.subr.bf16.mxu0 %v2544
    %3720 = vmatpush2.bf16.msra.mxu0 %v2543
    %3721 = vmatprep.subr.bf16.mxu0 %v2542
    %3722 = vmatpush2.bf16.msra.mxu0 %v2541
    %3723 = vmatprep.subr.bf16.mxu0 %v2540
    %3724 = vmatpush2.bf16.msra.mxu0 %v2539
    %3725 = vmatprep.mubr.bf16.mxu0 %v112
    %3726 = vmatmul.mubr.bf16.gmra.mxu0 %v111
    %v3727 = vpop.f32.mrf.mxu0
    %v3728 = vadd.f32 %v3687, %v3727
    %v3729 = vpop.f32.mrf.mxu0
    %v3730 = vadd.f32 %v3689, %v3729
    %v3731 = vpop.f32.mrf.mxu0
    %v3732 = vpop.f32.mrf.mxu0
    %3733 = vdwg.mxu0
    %3734 = vmatprep.subr.bf16.mxu0 %v2570
    %3735 = vmatpush1.bf16.msra.mxu0 %v2569
    %3736 = vmatprep.subr.bf16.mxu0 %v2568
    %3737 = vmatpush1.bf16.msra.mxu0 %v2567
    %3738 = vmatprep.subr.bf16.mxu0 %v2566
    %3739 = vmatpush1.bf16.msra.mxu0 %v2565
    %3740 = vmatprep.subr.bf16.mxu0 %v2564
    %3741 = vmatpush1.bf16.msra.mxu0 %v2563
    %3742 = vmatprep.subr.bf16.mxu0 %v2562
    %3743 = vmatpush1.bf16.msra.mxu0 %v2561
    %3744 = vmatprep.subr.bf16.mxu0 %v2560
    %3745 = vmatpush1.bf16.msra.mxu0 %v2559
    %3746 = vmatprep.subr.bf16.mxu0 %v2558
    %3747 = vmatpush1.bf16.msra.mxu0 %v2557
    %3748 = vmatprep.subr.bf16.mxu0 %v2556
    %3749 = vmatpush1.bf16.msra.mxu0 %v2555
    %3750 = vmatprep.subr.bf16.mxu0 %v2586
    %3751 = vmatpush2.bf16.msra.mxu0 %v2585
    %3752 = vmatprep.subr.bf16.mxu0 %v2584
    %3753 = vmatpush2.bf16.msra.mxu0 %v2583
    %3754 = vmatprep.subr.bf16.mxu0 %v2582
    %3755 = vmatpush2.bf16.msra.mxu0 %v2581
    %3756 = vmatprep.subr.bf16.mxu0 %v2580
    %3757 = vmatpush2.bf16.msra.mxu0 %v2579
    %3758 = vmatprep.subr.bf16.mxu0 %v2578
    %3759 = vmatpush2.bf16.msra.mxu0 %v2577
    %3760 = vmatprep.subr.bf16.mxu0 %v2576
    %3761 = vmatpush2.bf16.msra.mxu0 %v2575
    %3762 = vmatprep.subr.bf16.mxu0 %v2574
    %3763 = vmatpush2.bf16.msra.mxu0 %v2573
    %3764 = vmatprep.subr.bf16.mxu0 %v2572
    %3765 = vmatpush2.bf16.msra.mxu0 %v2571
    %3766 = vmatprep.mubr.bf16.mxu0 %v114
    %3767 = vmatmul.mubr.bf16.gmra.mxu0 %v113
    %v3768 = vpop.f32.mrf.mxu0
    %v3769 = vadd.f32 %v3728, %v3768
    %v3770 = vpop.f32.mrf.mxu0
    %v3771 = vadd.f32 %v3730, %v3770
    %v3772 = vpop.f32.mrf.mxu0
    %v3773 = vpop.f32.mrf.mxu0
    %3774 = vdwg.mxu0
    %3775 = vmatprep.subr.bf16.mxu0 %v2602
    %3776 = vmatpush1.bf16.msra.mxu0 %v2601
    %3777 = vmatprep.subr.bf16.mxu0 %v2600
    %3778 = vmatpush1.bf16.msra.mxu0 %v2599
    %3779 = vmatprep.subr.bf16.mxu0 %v2598
    %3780 = vmatpush1.bf16.msra.mxu0 %v2597
    %3781 = vmatprep.subr.bf16.mxu0 %v2596
    %3782 = vmatpush1.bf16.msra.mxu0 %v2595
    %3783 = vmatprep.subr.bf16.mxu0 %v2594
    %3784 = vmatpush1.bf16.msra.mxu0 %v2593
    %3785 = vmatprep.subr.bf16.mxu0 %v2592
    %3786 = vmatpush1.bf16.msra.mxu0 %v2591
    %3787 = vmatprep.subr.bf16.mxu0 %v2590
    %3788 = vmatpush1.bf16.msra.mxu0 %v2589
    %3789 = vmatprep.subr.bf16.mxu0 %v2588
    %3790 = vmatpush1.bf16.msra.mxu0 %v2587
    %3791 = vmatprep.subr.bf16.mxu0 %v2618
    %3792 = vmatpush2.bf16.msra.mxu0 %v2617
    %3793 = vmatprep.subr.bf16.mxu0 %v2616
    %3794 = vmatpush2.bf16.msra.mxu0 %v2615
    %3795 = vmatprep.subr.bf16.mxu0 %v2614
    %3796 = vmatpush2.bf16.msra.mxu0 %v2613
    %3797 = vmatprep.subr.bf16.mxu0 %v2612
    %3798 = vmatpush2.bf16.msra.mxu0 %v2611
    %3799 = vmatprep.subr.bf16.mxu0 %v2610
    %3800 = vmatpush2.bf16.msra.mxu0 %v2609
    %3801 = vmatprep.subr.bf16.mxu0 %v2608
    %3802 = vmatpush2.bf16.msra.mxu0 %v2607
    %3803 = vmatprep.subr.bf16.mxu0 %v2606
    %3804 = vmatpush2.bf16.msra.mxu0 %v2605
    %3805 = vmatprep.subr.bf16.mxu0 %v2604
    %3806 = vmatpush2.bf16.msra.mxu0 %v2603
    %3807 = vmatprep.mubr.bf16.mxu0 %v116
    %3808 = vmatmul.mubr.bf16.gmra.mxu0 %v115
    %v3809 = vpop.f32.mrf.mxu0
    %v3810 = vadd.f32 %v3769, %v3809
    %v3811 = vpop.f32.mrf.mxu0
    %v3812 = vadd.f32 %v3771, %v3811
    %v3813 = vpop.f32.mrf.mxu0
    %v3814 = vpop.f32.mrf.mxu0
    %3815 = vdwg.mxu0
    %3816 = vmatprep.subr.bf16.mxu0 %v2634
    %3817 = vmatpush1.bf16.msra.mxu0 %v2633
    %3818 = vmatprep.subr.bf16.mxu0 %v2632
    %3819 = vmatpush1.bf16.msra.mxu0 %v2631
    %3820 = vmatprep.subr.bf16.mxu0 %v2630
    %3821 = vmatpush1.bf16.msra.mxu0 %v2629
    %3822 = vmatprep.subr.bf16.mxu0 %v2628
    %3823 = vmatpush1.bf16.msra.mxu0 %v2627
    %3824 = vmatprep.subr.bf16.mxu0 %v2626
    %3825 = vmatpush1.bf16.msra.mxu0 %v2625
    %3826 = vmatprep.subr.bf16.mxu0 %v2624
    %3827 = vmatpush1.bf16.msra.mxu0 %v2623
    %3828 = vmatprep.subr.bf16.mxu0 %v2622
    %3829 = vmatpush1.bf16.msra.mxu0 %v2621
    %3830 = vmatprep.subr.bf16.mxu0 %v2620
    %3831 = vmatpush1.bf16.msra.mxu0 %v2619
    %3832 = vmatprep.subr.bf16.mxu0 %v2650
    %3833 = vmatpush2.bf16.msra.mxu0 %v2649
    %3834 = vmatprep.subr.bf16.mxu0 %v2648
    %3835 = vmatpush2.bf16.msra.mxu0 %v2647
    %3836 = vmatprep.subr.bf16.mxu0 %v2646
    %3837 = vmatpush2.bf16.msra.mxu0 %v2645
    %3838 = vmatprep.subr.bf16.mxu0 %v2644
    %3839 = vmatpush2.bf16.msra.mxu0 %v2643
    %3840 = vmatprep.subr.bf16.mxu0 %v2642
    %3841 = vmatpush2.bf16.msra.mxu0 %v2641
    %3842 = vmatprep.subr.bf16.mxu0 %v2640
    %3843 = vmatpush2.bf16.msra.mxu0 %v2639
    %3844 = vmatprep.subr.bf16.mxu0 %v2638
    %3845 = vmatpush2.bf16.msra.mxu0 %v2637
    %3846 = vmatprep.subr.bf16.mxu0 %v2636
    %3847 = vmatpush2.bf16.msra.mxu0 %v2635
    %3848 = vmatprep.mubr.bf16.mxu0 %v118
    %3849 = vmatmul.mubr.bf16.gmra.mxu0 %v117
    %v3850 = vpop.f32.mrf.mxu0
    %v3851 = vadd.f32 %v3810, %v3850
    %v3852 = vpop.f32.mrf.mxu0
    %v3853 = vadd.f32 %v3812, %v3852
    %v3854 = vpop.f32.mrf.mxu0
    %v3855 = vpop.f32.mrf.mxu0
    %3856 = vdwg.mxu0
    %3857 = vmatprep.subr.bf16.mxu0 %v2666
    %3858 = vmatpush1.bf16.msra.mxu0 %v2665
    %3859 = vmatprep.subr.bf16.mxu0 %v2664
    %3860 = vmatpush1.bf16.msra.mxu0 %v2663
    %3861 = vmatprep.subr.bf16.mxu0 %v2662
    %3862 = vmatpush1.bf16.msra.mxu0 %v2661
    %3863 = vmatprep.subr.bf16.mxu0 %v2660
    %3864 = vmatpush1.bf16.msra.mxu0 %v2659
    %3865 = vmatprep.subr.bf16.mxu0 %v2658
    %3866 = vmatpush1.bf16.msra.mxu0 %v2657
    %3867 = vmatprep.subr.bf16.mxu0 %v2656
    %3868 = vmatpush1.bf16.msra.mxu0 %v2655
    %3869 = vmatprep.subr.bf16.mxu0 %v2654
    %3870 = vmatpush1.bf16.msra.mxu0 %v2653
    %3871 = vmatprep.subr.bf16.mxu0 %v2652
    %3872 = vmatpush1.bf16.msra.mxu0 %v2651
    %3873 = vmatprep.subr.bf16.mxu0 %v2682
    %3874 = vmatpush2.bf16.msra.mxu0 %v2681
    %3875 = vmatprep.subr.bf16.mxu0 %v2680
    %3876 = vmatpush2.bf16.msra.mxu0 %v2679
    %3877 = vmatprep.subr.bf16.mxu0 %v2678
    %3878 = vmatpush2.bf16.msra.mxu0 %v2677
    %3879 = vmatprep.subr.bf16.mxu0 %v2676
    %3880 = vmatpush2.bf16.msra.mxu0 %v2675
    %3881 = vmatprep.subr.bf16.mxu0 %v2674
    %3882 = vmatpush2.bf16.msra.mxu0 %v2673
    %3883 = vmatprep.subr.bf16.mxu0 %v2672
    %3884 = vmatpush2.bf16.msra.mxu0 %v2671
    %3885 = vmatprep.subr.bf16.mxu0 %v2670
    %3886 = vmatpush2.bf16.msra.mxu0 %v2669
    %3887 = vmatprep.subr.bf16.mxu0 %v2668
    %3888 = vmatpush2.bf16.msra.mxu0 %v2667
    %3889 = vmatprep.mubr.bf16.mxu0 %v120
    %3890 = vmatmul.mubr.bf16.gmra.mxu0 %v119
    %v3891 = vpop.f32.mrf.mxu0
    %v3892 = vadd.f32 %v3851, %v3891
    %v3893 = vpop.f32.mrf.mxu0
    %v3894 = vadd.f32 %v3853, %v3893
    %v3895 = vpop.f32.mrf.mxu0
    %v3896 = vpop.f32.mrf.mxu0
    %3897 = vdwg.mxu0
    %3898 = vmatprep.subr.bf16.mxu0 %v2698
    %3899 = vmatpush1.bf16.msra.mxu0 %v2697
    %3900 = vmatprep.subr.bf16.mxu0 %v2696
    %3901 = vmatpush1.bf16.msra.mxu0 %v2695
    %3902 = vmatprep.subr.bf16.mxu0 %v2694
    %3903 = vmatpush1.bf16.msra.mxu0 %v2693
    %3904 = vmatprep.subr.bf16.mxu0 %v2692
    %3905 = vmatpush1.bf16.msra.mxu0 %v2691
    %3906 = vmatprep.subr.bf16.mxu0 %v2690
    %3907 = vmatpush1.bf16.msra.mxu0 %v2689
    %3908 = vmatprep.subr.bf16.mxu0 %v2688
    %3909 = vmatpush1.bf16.msra.mxu0 %v2687
    %3910 = vmatprep.subr.bf16.mxu0 %v2686
    %3911 = vmatpush1.bf16.msra.mxu0 %v2685
    %3912 = vmatprep.subr.bf16.mxu0 %v2684
    %3913 = vmatpush1.bf16.msra.mxu0 %v2683
    %3914 = vmatprep.subr.bf16.mxu0 %v2714
    %3915 = vmatpush2.bf16.msra.mxu0 %v2713
    %3916 = vmatprep.subr.bf16.mxu0 %v2712
    %3917 = vmatpush2.bf16.msra.mxu0 %v2711
    %3918 = vmatprep.subr.bf16.mxu0 %v2710
    %3919 = vmatpush2.bf16.msra.mxu0 %v2709
    %3920 = vmatprep.subr.bf16.mxu0 %v2708
    %3921 = vmatpush2.bf16.msra.mxu0 %v2707
    %3922 = vmatprep.subr.bf16.mxu0 %v2706
    %3923 = vmatpush2.bf16.msra.mxu0 %v2705
    %3924 = vmatprep.subr.bf16.mxu0 %v2704
    %3925 = vmatpush2.bf16.msra.mxu0 %v2703
    %3926 = vmatprep.subr.bf16.mxu0 %v2702
    %3927 = vmatpush2.bf16.msra.mxu0 %v2701
    %3928 = vmatprep.subr.bf16.mxu0 %v2700
    %3929 = vmatpush2.bf16.msra.mxu0 %v2699
    %3930 = vmatprep.mubr.bf16.mxu0 %v122
    %3931 = vmatmul.mubr.bf16.gmra.mxu0 %v121
    %v3932 = vpop.f32.mrf.mxu0
    %v3933 = vadd.f32 %v3892, %v3932
    %v3934 = vpop.f32.mrf.mxu0
    %v3935 = vadd.f32 %v3894, %v3934
    %v3936 = vpop.f32.mrf.mxu0
    %v3937 = vpop.f32.mrf.mxu0
    %3938 = vdwg.mxu0
    %3939 = vmatprep.subr.bf16.mxu0 %v2730
    %3940 = vmatpush1.bf16.msra.mxu0 %v2729
    %3941 = vmatprep.subr.bf16.mxu0 %v2728
    %3942 = vmatpush1.bf16.msra.mxu0 %v2727
    %3943 = vmatprep.subr.bf16.mxu0 %v2726
    %3944 = vmatpush1.bf16.msra.mxu0 %v2725
    %3945 = vmatprep.subr.bf16.mxu0 %v2724
    %3946 = vmatpush1.bf16.msra.mxu0 %v2723
    %3947 = vmatprep.subr.bf16.mxu0 %v2722
    %3948 = vmatpush1.bf16.msra.mxu0 %v2721
    %3949 = vmatprep.subr.bf16.mxu0 %v2720
    %3950 = vmatpush1.bf16.msra.mxu0 %v2719
    %3951 = vmatprep.subr.bf16.mxu0 %v2718
    %3952 = vmatpush1.bf16.msra.mxu0 %v2717
    %3953 = vmatprep.subr.bf16.mxu0 %v2716
    %3954 = vmatpush1.bf16.msra.mxu0 %v2715
    %3955 = vmatprep.subr.bf16.mxu0 %v2746
    %3956 = vmatpush2.bf16.msra.mxu0 %v2745
    %3957 = vmatprep.subr.bf16.mxu0 %v2744
    %3958 = vmatpush2.bf16.msra.mxu0 %v2743
    %3959 = vmatprep.subr.bf16.mxu0 %v2742
    %3960 = vmatpush2.bf16.msra.mxu0 %v2741
    %3961 = vmatprep.subr.bf16.mxu0 %v2740
    %3962 = vmatpush2.bf16.msra.mxu0 %v2739
    %3963 = vmatprep.subr.bf16.mxu0 %v2738
    %3964 = vmatpush2.bf16.msra.mxu0 %v2737
    %3965 = vmatprep.subr.bf16.mxu0 %v2736
    %3966 = vmatpush2.bf16.msra.mxu0 %v2735
    %3967 = vmatprep.subr.bf16.mxu0 %v2734
    %3968 = vmatpush2.bf16.msra.mxu0 %v2733
    %3969 = vmatprep.subr.bf16.mxu0 %v2732
    %3970 = vmatpush2.bf16.msra.mxu0 %v2731
    %3971 = vmatprep.mubr.bf16.mxu0 %v124
    %3972 = vmatmul.mubr.bf16.gmra.mxu0 %v123
    %v3973 = vpop.f32.mrf.mxu0
    %v3974 = vadd.f32 %v3933, %v3973
    %v3975 = vpop.f32.mrf.mxu0
    %v3976 = vadd.f32 %v3935, %v3975
    %v3977 = vpop.f32.mrf.mxu0
    %v3978 = vpop.f32.mrf.mxu0
    %3979 = vdwg.mxu0
    %3980 = vmatprep.subr.bf16.mxu0 %v2762
    %3981 = vmatpush1.bf16.msra.mxu0 %v2761
    %3982 = vmatprep.subr.bf16.mxu0 %v2760
    %3983 = vmatpush1.bf16.msra.mxu0 %v2759
    %3984 = vmatprep.subr.bf16.mxu0 %v2758
    %3985 = vmatpush1.bf16.msra.mxu0 %v2757
    %3986 = vmatprep.subr.bf16.mxu0 %v2756
    %3987 = vmatpush1.bf16.msra.mxu0 %v2755
    %3988 = vmatprep.subr.bf16.mxu0 %v2754
    %3989 = vmatpush1.bf16.msra.mxu0 %v2753
    %3990 = vmatprep.subr.bf16.mxu0 %v2752
    %3991 = vmatpush1.bf16.msra.mxu0 %v2751
    %3992 = vmatprep.subr.bf16.mxu0 %v2750
    %3993 = vmatpush1.bf16.msra.mxu0 %v2749
    %3994 = vmatprep.subr.bf16.mxu0 %v2748
    %3995 = vmatpush1.bf16.msra.mxu0 %v2747
    %3996 = vmatprep.subr.bf16.mxu0 %v2778
    %3997 = vmatpush2.bf16.msra.mxu0 %v2777
    %3998 = vmatprep.subr.bf16.mxu0 %v2776
    %3999 = vmatpush2.bf16.msra.mxu0 %v2775
    %4000 = vmatprep.subr.bf16.mxu0 %v2774
    %4001 = vmatpush2.bf16.msra.mxu0 %v2773
    %4002 = vmatprep.subr.bf16.mxu0 %v2772
    %4003 = vmatpush2.bf16.msra.mxu0 %v2771
    %4004 = vmatprep.subr.bf16.mxu0 %v2770
    %4005 = vmatpush2.bf16.msra.mxu0 %v2769
    %4006 = vmatprep.subr.bf16.mxu0 %v2768
    %4007 = vmatpush2.bf16.msra.mxu0 %v2767
    %4008 = vmatprep.subr.bf16.mxu0 %v2766
    %4009 = vmatpush2.bf16.msra.mxu0 %v2765
    %4010 = vmatprep.subr.bf16.mxu0 %v2764
    %4011 = vmatpush2.bf16.msra.mxu0 %v2763
    %4012 = vmatprep.mubr.bf16.mxu0 %v126
    %4013 = vmatmul.mubr.bf16.gmra.mxu0 %v125
    %v4014 = vpop.f32.mrf.mxu0
    %v4015 = vadd.f32 %v3974, %v4014
    %v4016 = vpop.f32.mrf.mxu0
    %v4017 = vadd.f32 %v3976, %v4016
    %v4018 = vpop.f32.mrf.mxu0
    %v4019 = vpop.f32.mrf.mxu0
    %4020 = vdwg.mxu0
    %4021 = vmatprep.subr.bf16.mxu0 %v2794
    %4022 = vmatpush1.bf16.msra.mxu0 %v2793
    %4023 = vmatprep.subr.bf16.mxu0 %v2792
    %4024 = vmatpush1.bf16.msra.mxu0 %v2791
    %4025 = vmatprep.subr.bf16.mxu0 %v2790
    %4026 = vmatpush1.bf16.msra.mxu0 %v2789
    %4027 = vmatprep.subr.bf16.mxu0 %v2788
    %4028 = vmatpush1.bf16.msra.mxu0 %v2787
    %4029 = vmatprep.subr.bf16.mxu0 %v2786
    %4030 = vmatpush1.bf16.msra.mxu0 %v2785
    %4031 = vmatprep.subr.bf16.mxu0 %v2784
    %4032 = vmatpush1.bf16.msra.mxu0 %v2783
    %4033 = vmatprep.subr.bf16.mxu0 %v2782
    %4034 = vmatpush1.bf16.msra.mxu0 %v2781
    %4035 = vmatprep.subr.bf16.mxu0 %v2780
    %4036 = vmatpush1.bf16.msra.mxu0 %v2779
    %4037 = vmatprep.subr.bf16.mxu0 %v2810
    %4038 = vmatpush2.bf16.msra.mxu0 %v2809
    %4039 = vmatprep.subr.bf16.mxu0 %v2808
    %4040 = vmatpush2.bf16.msra.mxu0 %v2807
    %4041 = vmatprep.subr.bf16.mxu0 %v2806
    %4042 = vmatpush2.bf16.msra.mxu0 %v2805
    %4043 = vmatprep.subr.bf16.mxu0 %v2804
    %4044 = vmatpush2.bf16.msra.mxu0 %v2803
    %4045 = vmatprep.subr.bf16.mxu0 %v2802
    %4046 = vmatpush2.bf16.msra.mxu0 %v2801
    %4047 = vmatprep.subr.bf16.mxu0 %v2800
    %4048 = vmatpush2.bf16.msra.mxu0 %v2799
    %4049 = vmatprep.subr.bf16.mxu0 %v2798
    %4050 = vmatpush2.bf16.msra.mxu0 %v2797
    %4051 = vmatprep.subr.bf16.mxu0 %v2796
    %4052 = vmatpush2.bf16.msra.mxu0 %v2795
    %4053 = vmatprep.mubr.bf16.mxu0 %v128
    %4054 = vmatmul.mubr.bf16.gmra.mxu0 %v127
    %v4055 = vpop.f32.mrf.mxu0
    %v4056 = vadd.f32 %v4015, %v4055
    %v4057 = vpop.f32.mrf.mxu0
    %v4058 = vadd.f32 %v4017, %v4057
    %v4059 = vpop.f32.mrf.mxu0
    %v4060 = vpop.f32.mrf.mxu0
    %4061 = vdwg.mxu0
    %4062 = vmatprep.subr.bf16.mxu0 %v2826
    %4063 = vmatpush1.bf16.msra.mxu0 %v2825
    %4064 = vmatprep.subr.bf16.mxu0 %v2824
    %4065 = vmatpush1.bf16.msra.mxu0 %v2823
    %4066 = vmatprep.subr.bf16.mxu0 %v2822
    %4067 = vmatpush1.bf16.msra.mxu0 %v2821
    %4068 = vmatprep.subr.bf16.mxu0 %v2820
    %4069 = vmatpush1.bf16.msra.mxu0 %v2819
    %4070 = vmatprep.subr.bf16.mxu0 %v2818
    %4071 = vmatpush1.bf16.msra.mxu0 %v2817
    %4072 = vmatprep.subr.bf16.mxu0 %v2816
    %4073 = vmatpush1.bf16.msra.mxu0 %v2815
    %4074 = vmatprep.subr.bf16.mxu0 %v2814
    %4075 = vmatpush1.bf16.msra.mxu0 %v2813
    %4076 = vmatprep.subr.bf16.mxu0 %v2812
    %4077 = vmatpush1.bf16.msra.mxu0 %v2811
    %4078 = vmatprep.subr.bf16.mxu0 %v2842
    %4079 = vmatpush2.bf16.msra.mxu0 %v2841
    %4080 = vmatprep.subr.bf16.mxu0 %v2840
    %4081 = vmatpush2.bf16.msra.mxu0 %v2839
    %4082 = vmatprep.subr.bf16.mxu0 %v2838
    %4083 = vmatpush2.bf16.msra.mxu0 %v2837
    %4084 = vmatprep.subr.bf16.mxu0 %v2836
    %4085 = vmatpush2.bf16.msra.mxu0 %v2835
    %4086 = vmatprep.subr.bf16.mxu0 %v2834
    %4087 = vmatpush2.bf16.msra.mxu0 %v2833
    %4088 = vmatprep.subr.bf16.mxu0 %v2832
    %4089 = vmatpush2.bf16.msra.mxu0 %v2831
    %4090 = vmatprep.subr.bf16.mxu0 %v2830
    %4091 = vmatpush2.bf16.msra.mxu0 %v2829
    %4092 = vmatprep.subr.bf16.mxu0 %v2828
    %4093 = vmatpush2.bf16.msra.mxu0 %v2827
    %4094 = vmatprep.mubr.bf16.mxu0 %v130
    %4095 = vmatmul.mubr.bf16.gmra.mxu0 %v129
    %v4096 = vpop.f32.mrf.mxu0
    %v4097 = vadd.f32 %v4056, %v4096
    %v4098 = vpop.f32.mrf.mxu0
    %v4099 = vadd.f32 %v4058, %v4098
    %v4100 = vpop.f32.mrf.mxu0
    %v4101 = vpop.f32.mrf.mxu0
    %4102 = vdwg.mxu0
    %4103 = vmatprep.subr.bf16.mxu0 %v2858
    %4104 = vmatpush1.bf16.msra.mxu0 %v2857
    %4105 = vmatprep.subr.bf16.mxu0 %v2856
    %4106 = vmatpush1.bf16.msra.mxu0 %v2855
    %4107 = vmatprep.subr.bf16.mxu0 %v2854
    %4108 = vmatpush1.bf16.msra.mxu0 %v2853
    %4109 = vmatprep.subr.bf16.mxu0 %v2852
    %4110 = vmatpush1.bf16.msra.mxu0 %v2851
    %4111 = vmatprep.subr.bf16.mxu0 %v2850
    %4112 = vmatpush1.bf16.msra.mxu0 %v2849
    %4113 = vmatprep.subr.bf16.mxu0 %v2848
    %4114 = vmatpush1.bf16.msra.mxu0 %v2847
    %4115 = vmatprep.subr.bf16.mxu0 %v2846
    %4116 = vmatpush1.bf16.msra.mxu0 %v2845
    %4117 = vmatprep.subr.bf16.mxu0 %v2844
    %4118 = vmatpush1.bf16.msra.mxu0 %v2843
    %4119 = vmatprep.subr.bf16.mxu0 %v2874
    %4120 = vmatpush2.bf16.msra.mxu0 %v2873
    %4121 = vmatprep.subr.bf16.mxu0 %v2872
    %4122 = vmatpush2.bf16.msra.mxu0 %v2871
    %4123 = vmatprep.subr.bf16.mxu0 %v2870
    %4124 = vmatpush2.bf16.msra.mxu0 %v2869
    %4125 = vmatprep.subr.bf16.mxu0 %v2868
    %4126 = vmatpush2.bf16.msra.mxu0 %v2867
    %4127 = vmatprep.subr.bf16.mxu0 %v2866
    %4128 = vmatpush2.bf16.msra.mxu0 %v2865
    %4129 = vmatprep.subr.bf16.mxu0 %v2864
    %4130 = vmatpush2.bf16.msra.mxu0 %v2863
    %4131 = vmatprep.subr.bf16.mxu0 %v2862
    %4132 = vmatpush2.bf16.msra.mxu0 %v2861
    %4133 = vmatprep.subr.bf16.mxu0 %v2860
    %4134 = vmatpush2.bf16.msra.mxu0 %v2859
    %4135 = vmatprep.mubr.bf16.mxu0 %v132
    %4136 = vmatmul.mubr.bf16.gmra.mxu0 %v131
    %v4137 = vpop.f32.mrf.mxu0
    %v4138 = vadd.f32 %v4097, %v4137
    %v4139 = vpop.f32.mrf.mxu0
    %v4140 = vadd.f32 %v4099, %v4139
    %v4141 = vpop.f32.mrf.mxu0
    %v4142 = vpop.f32.mrf.mxu0
    %4143 = vdwg.mxu0
    %4144 = vmatprep.subr.bf16.mxu0 %v2890
    %4145 = vmatpush1.bf16.msra.mxu0 %v2889
    %4146 = vmatprep.subr.bf16.mxu0 %v2888
    %4147 = vmatpush1.bf16.msra.mxu0 %v2887
    %4148 = vmatprep.subr.bf16.mxu0 %v2886
    %4149 = vmatpush1.bf16.msra.mxu0 %v2885
    %4150 = vmatprep.subr.bf16.mxu0 %v2884
    %4151 = vmatpush1.bf16.msra.mxu0 %v2883
    %4152 = vmatprep.subr.bf16.mxu0 %v2882
    %4153 = vmatpush1.bf16.msra.mxu0 %v2881
    %4154 = vmatprep.subr.bf16.mxu0 %v2880
    %4155 = vmatpush1.bf16.msra.mxu0 %v2879
    %4156 = vmatprep.subr.bf16.mxu0 %v2878
    %4157 = vmatpush1.bf16.msra.mxu0 %v2877
    %4158 = vmatprep.subr.bf16.mxu0 %v2876
    %4159 = vmatpush1.bf16.msra.mxu0 %v2875
    %4160 = vmatprep.subr.bf16.mxu0 %v2906
    %4161 = vmatpush2.bf16.msra.mxu0 %v2905
    %4162 = vmatprep.subr.bf16.mxu0 %v2904
    %4163 = vmatpush2.bf16.msra.mxu0 %v2903
    %4164 = vmatprep.subr.bf16.mxu0 %v2902
    %4165 = vmatpush2.bf16.msra.mxu0 %v2901
    %4166 = vmatprep.subr.bf16.mxu0 %v2900
    %4167 = vmatpush2.bf16.msra.mxu0 %v2899
    %4168 = vmatprep.subr.bf16.mxu0 %v2898
    %4169 = vmatpush2.bf16.msra.mxu0 %v2897
    %4170 = vmatprep.subr.bf16.mxu0 %v2896
    %4171 = vmatpush2.bf16.msra.mxu0 %v2895
    %4172 = vmatprep.subr.bf16.mxu0 %v2894
    %4173 = vmatpush2.bf16.msra.mxu0 %v2893
    %4174 = vmatprep.subr.bf16.mxu0 %v2892
    %4175 = vmatpush2.bf16.msra.mxu0 %v2891
    %4176 = vmatprep.mubr.bf16.mxu0 %v134
    %4177 = vmatmul.mubr.bf16.gmra.mxu0 %v133
    %v4178 = vpop.f32.mrf.mxu0
    %v4179 = vadd.f32 %v4138, %v4178
    %v4180 = vpop.f32.mrf.mxu0
    %v4181 = vadd.f32 %v4140, %v4180
    %v4182 = vpop.f32.mrf.mxu0
    %v4183 = vpop.f32.mrf.mxu0
    %4184 = vdwg.mxu0
    %4185 = vmatprep.subr.bf16.mxu0 %v2922
    %4186 = vmatpush1.bf16.msra.mxu0 %v2921
    %4187 = vmatprep.subr.bf16.mxu0 %v2920
    %4188 = vmatpush1.bf16.msra.mxu0 %v2919
    %4189 = vmatprep.subr.bf16.mxu0 %v2918
    %4190 = vmatpush1.bf16.msra.mxu0 %v2917
    %4191 = vmatprep.subr.bf16.mxu0 %v2916
    %4192 = vmatpush1.bf16.msra.mxu0 %v2915
    %4193 = vmatprep.subr.bf16.mxu0 %v2914
    %4194 = vmatpush1.bf16.msra.mxu0 %v2913
    %4195 = vmatprep.subr.bf16.mxu0 %v2912
    %4196 = vmatpush1.bf16.msra.mxu0 %v2911
    %4197 = vmatprep.subr.bf16.mxu0 %v2910
    %4198 = vmatpush1.bf16.msra.mxu0 %v2909
    %4199 = vmatprep.subr.bf16.mxu0 %v2908
    %4200 = vmatpush1.bf16.msra.mxu0 %v2907
    %4201 = vmatprep.subr.bf16.mxu0 %v2938
    %4202 = vmatpush2.bf16.msra.mxu0 %v2937
    %4203 = vmatprep.subr.bf16.mxu0 %v2936
    %4204 = vmatpush2.bf16.msra.mxu0 %v2935
    %4205 = vmatprep.subr.bf16.mxu0 %v2934
    %4206 = vmatpush2.bf16.msra.mxu0 %v2933
    %4207 = vmatprep.subr.bf16.mxu0 %v2932
    %4208 = vmatpush2.bf16.msra.mxu0 %v2931
    %4209 = vmatprep.subr.bf16.mxu0 %v2930
    %4210 = vmatpush2.bf16.msra.mxu0 %v2929
    %4211 = vmatprep.subr.bf16.mxu0 %v2928
    %4212 = vmatpush2.bf16.msra.mxu0 %v2927
    %4213 = vmatprep.subr.bf16.mxu0 %v2926
    %4214 = vmatpush2.bf16.msra.mxu0 %v2925
    %4215 = vmatprep.subr.bf16.mxu0 %v2924
    %4216 = vmatpush2.bf16.msra.mxu0 %v2923
    %4217 = vmatprep.mubr.bf16.mxu0 %v136
    %4218 = vmatmul.mubr.bf16.gmra.mxu0 %v135
    %v4219 = vpop.f32.mrf.mxu0
    %v4220 = vadd.f32 %v4179, %v4219
    %v4221 = vpop.f32.mrf.mxu0
    %v4222 = vadd.f32 %v4181, %v4221
    %v4223 = vpop.f32.mrf.mxu0
    %v4224 = vpop.f32.mrf.mxu0
    %4225 = vdwg.mxu0
    %4226 = vmatprep.subr.bf16.mxu0 %v2954
    %4227 = vmatpush1.bf16.msra.mxu0 %v2953
    %4228 = vmatprep.subr.bf16.mxu0 %v2952
    %4229 = vmatpush1.bf16.msra.mxu0 %v2951
    %4230 = vmatprep.subr.bf16.mxu0 %v2950
    %4231 = vmatpush1.bf16.msra.mxu0 %v2949
    %4232 = vmatprep.subr.bf16.mxu0 %v2948
    %4233 = vmatpush1.bf16.msra.mxu0 %v2947
    %4234 = vmatprep.subr.bf16.mxu0 %v2946
    %4235 = vmatpush1.bf16.msra.mxu0 %v2945
    %4236 = vmatprep.subr.bf16.mxu0 %v2944
    %4237 = vmatpush1.bf16.msra.mxu0 %v2943
    %4238 = vmatprep.subr.bf16.mxu0 %v2942
    %4239 = vmatpush1.bf16.msra.mxu0 %v2941
    %4240 = vmatprep.subr.bf16.mxu0 %v2940
    %4241 = vmatpush1.bf16.msra.mxu0 %v2939
    %4242 = vmatprep.subr.bf16.mxu0 %v2970
    %4243 = vmatpush2.bf16.msra.mxu0 %v2969
    %4244 = vmatprep.subr.bf16.mxu0 %v2968
    %4245 = vmatpush2.bf16.msra.mxu0 %v2967
    %4246 = vmatprep.subr.bf16.mxu0 %v2966
    %4247 = vmatpush2.bf16.msra.mxu0 %v2965
    %4248 = vmatprep.subr.bf16.mxu0 %v2964
    %4249 = vmatpush2.bf16.msra.mxu0 %v2963
    %4250 = vmatprep.subr.bf16.mxu0 %v2962
    %4251 = vmatpush2.bf16.msra.mxu0 %v2961
    %4252 = vmatprep.subr.bf16.mxu0 %v2960
    %4253 = vmatpush2.bf16.msra.mxu0 %v2959
    %4254 = vmatprep.subr.bf16.mxu0 %v2958
    %4255 = vmatpush2.bf16.msra.mxu0 %v2957
    %4256 = vmatprep.subr.bf16.mxu0 %v2956
    %4257 = vmatpush2.bf16.msra.mxu0 %v2955
    %4258 = vmatprep.mubr.bf16.mxu0 %v138
    %4259 = vmatmul.mubr.bf16.gmra.mxu0 %v137
    %v4260 = vpop.f32.mrf.mxu0
    %v4261 = vadd.f32 %v4220, %v4260
    %v4262 = vpop.f32.mrf.mxu0
    %v4263 = vadd.f32 %v4222, %v4262
    %v4264 = vpop.f32.mrf.mxu0
    %v4265 = vpop.f32.mrf.mxu0
    %4266 = vdwg.mxu0
    %4267 = vmatprep.subr.bf16.mxu0 %v2986
    %4268 = vmatpush1.bf16.msra.mxu0 %v2985
    %4269 = vmatprep.subr.bf16.mxu0 %v2984
    %4270 = vmatpush1.bf16.msra.mxu0 %v2983
    %4271 = vmatprep.subr.bf16.mxu0 %v2982
    %4272 = vmatpush1.bf16.msra.mxu0 %v2981
    %4273 = vmatprep.subr.bf16.mxu0 %v2980
    %4274 = vmatpush1.bf16.msra.mxu0 %v2979
    %4275 = vmatprep.subr.bf16.mxu0 %v2978
    %4276 = vmatpush1.bf16.msra.mxu0 %v2977
    %4277 = vmatprep.subr.bf16.mxu0 %v2976
    %4278 = vmatpush1.bf16.msra.mxu0 %v2975
    %4279 = vmatprep.subr.bf16.mxu0 %v2974
    %4280 = vmatpush1.bf16.msra.mxu0 %v2973
    %4281 = vmatprep.subr.bf16.mxu0 %v2972
    %4282 = vmatpush1.bf16.msra.mxu0 %v2971
    %4283 = vmatprep.subr.bf16.mxu0 %v3002
    %4284 = vmatpush2.bf16.msra.mxu0 %v3001
    %4285 = vmatprep.subr.bf16.mxu0 %v3000
    %4286 = vmatpush2.bf16.msra.mxu0 %v2999
    %4287 = vmatprep.subr.bf16.mxu0 %v2998
    %4288 = vmatpush2.bf16.msra.mxu0 %v2997
    %4289 = vmatprep.subr.bf16.mxu0 %v2996
    %4290 = vmatpush2.bf16.msra.mxu0 %v2995
    %4291 = vmatprep.subr.bf16.mxu0 %v2994
    %4292 = vmatpush2.bf16.msra.mxu0 %v2993
    %4293 = vmatprep.subr.bf16.mxu0 %v2992
    %4294 = vmatpush2.bf16.msra.mxu0 %v2991
    %4295 = vmatprep.subr.bf16.mxu0 %v2990
    %4296 = vmatpush2.bf16.msra.mxu0 %v2989
    %4297 = vmatprep.subr.bf16.mxu0 %v2988
    %4298 = vmatpush2.bf16.msra.mxu0 %v2987
    %4299 = vmatprep.mubr.bf16.mxu0 %v140
    %4300 = vmatmul.mubr.bf16.gmra.mxu0 %v139
    %v4301 = vpop.f32.mrf.mxu0
    %v4302 = vadd.f32 %v4261, %v4301
    %v4303 = vpop.f32.mrf.mxu0
    %v4304 = vadd.f32 %v4263, %v4303
    %v4305 = vpop.f32.mrf.mxu0
    %v4306 = vpop.f32.mrf.mxu0
    %4307 = vdwg.mxu0
    %4308 = vmatprep.subr.bf16.mxu0 %v3018
    %4309 = vmatpush1.bf16.msra.mxu0 %v3017
    %4310 = vmatprep.subr.bf16.mxu0 %v3016
    %4311 = vmatpush1.bf16.msra.mxu0 %v3015
    %4312 = vmatprep.subr.bf16.mxu0 %v3014
    %4313 = vmatpush1.bf16.msra.mxu0 %v3013
    %4314 = vmatprep.subr.bf16.mxu0 %v3012
    %4315 = vmatpush1.bf16.msra.mxu0 %v3011
    %4316 = vmatprep.subr.bf16.mxu0 %v3010
    %4317 = vmatpush1.bf16.msra.mxu0 %v3009
    %4318 = vmatprep.subr.bf16.mxu0 %v3008
    %4319 = vmatpush1.bf16.msra.mxu0 %v3007
    %4320 = vmatprep.subr.bf16.mxu0 %v3006
    %4321 = vmatpush1.bf16.msra.mxu0 %v3005
    %4322 = vmatprep.subr.bf16.mxu0 %v3004
    %4323 = vmatpush1.bf16.msra.mxu0 %v3003
    %4324 = vmatprep.subr.bf16.mxu0 %v3034
    %4325 = vmatpush2.bf16.msra.mxu0 %v3033
    %4326 = vmatprep.subr.bf16.mxu0 %v3032
    %4327 = vmatpush2.bf16.msra.mxu0 %v3031
    %4328 = vmatprep.subr.bf16.mxu0 %v3030
    %4329 = vmatpush2.bf16.msra.mxu0 %v3029
    %4330 = vmatprep.subr.bf16.mxu0 %v3028
    %4331 = vmatpush2.bf16.msra.mxu0 %v3027
    %4332 = vmatprep.subr.bf16.mxu0 %v3026
    %4333 = vmatpush2.bf16.msra.mxu0 %v3025
    %4334 = vmatprep.subr.bf16.mxu0 %v3024
    %4335 = vmatpush2.bf16.msra.mxu0 %v3023
    %4336 = vmatprep.subr.bf16.mxu0 %v3022
    %4337 = vmatpush2.bf16.msra.mxu0 %v3021
    %4338 = vmatprep.subr.bf16.mxu0 %v3020
    %4339 = vmatpush2.bf16.msra.mxu0 %v3019
    %4340 = vmatprep.mubr.bf16.mxu0 %v142
    %4341 = vmatmul.mubr.bf16.gmra.mxu0 %v141
    %v4342 = vpop.f32.mrf.mxu0
    %v4343 = vadd.f32 %v4302, %v4342
    %v4344 = vpop.f32.mrf.mxu0
    %v4345 = vadd.f32 %v4304, %v4344
    %v4346 = vpop.f32.mrf.mxu0
    %v4347 = vpop.f32.mrf.mxu0
    %4348 = vdwg.mxu0
    %v4349 = vmax.f32 %v4343, 0.0
    %v4350 = vmax.f32 %v4345, 0.0
    %v4351 = vpack.c.bf16 %v4349, %v4349
    %v4352 = vpack.c.bf16 %v4350, %v4350
    %v4353 = vld [vmem:[%s3] sm:$0xf]
    %v4354 = vld [vmem:[%s3 + $0x4] sm:$0xf]
    %v4355 = vld [vmem:[%s3 + $0x8] sm:$0xf]
    %v4356 = vld [vmem:[%s3 + $0xc] sm:$0xf]
    %v4357 = vld [vmem:[%s3 + $0x10] sm:$0xf]
    %v4358 = vld [vmem:[%s3 + $0x14] sm:$0xf]
    %v4359 = vld [vmem:[%s3 + $0x18] sm:$0xf]
    %v4360 = vld [vmem:[%s3 + $0x1c] sm:$0xf]
    %v4361 = vld [vmem:[%s3 + $0x20] sm:$0xf]
    %v4362 = vld [vmem:[%s3 + $0x24] sm:$0xf]
    %v4363 = vld [vmem:[%s3 + $0x28] sm:$0xf]
    %v4364 = vld [vmem:[%s3 + $0x2c] sm:$0xf]
    %v4365 = vld [vmem:[%s3 + $0x30] sm:$0xf]
    %v4366 = vld [vmem:[%s3 + $0x34] sm:$0xf]
    %v4367 = vld [vmem:[%s3 + $0x38] sm:$0xf]
    %v4368 = vld [vmem:[%s3 + $0x3c] sm:$0xf]
    %v4369 = vld [vmem:[%s3 + $0x40] sm:$0xf]
    %v4370 = vld [vmem:[%s3 + $0x44] sm:$0xf]
    %v4371 = vld [vmem:[%s3 + $0x48] sm:$0xf]
    %v4372 = vld [vmem:[%s3 + $0x4c] sm:$0xf]
    %v4373 = vld [vmem:[%s3 + $0x50] sm:$0xf]
    %v4374 = vld [vmem:[%s3 + $0x54] sm:$0xf]
    %v4375 = vld [vmem:[%s3 + $0x58] sm:$0xf]
    %v4376 = vld [vmem:[%s3 + $0x5c] sm:$0xf]
    %v4377 = vld [vmem:[%s3 + $0x60] sm:$0xf]
    %v4378 = vld [vmem:[%s3 + $0x64] sm:$0xf]
    %v4379 = vld [vmem:[%s3 + $0x68] sm:$0xf]
    %v4380 = vld [vmem:[%s3 + $0x6c] sm:$0xf]
    %v4381 = vld [vmem:[%s3 + $0x70] sm:$0xf]
    %v4382 = vld [vmem:[%s3 + $0x74] sm:$0xf]
    %v4383 = vld [vmem:[%s3 + $0x78] sm:$0xf]
    %v4384 = vld [vmem:[%s3 + $0x7c] sm:$0xf]
    %v4385 = vld [vmem:[#allocation8] sm:$0x1]
    %v4387 = vlaneseq
    %v4388 = vshrl.u32 %v4387, 7
    %v4389 = vsub.s32 0, %v4388
    %v4390 = vrot.slane %v4385, %v4389
    %v4424 = vunpack.c.l.b16 %v4353
    %v4425 = vunpack.c.l.b16 %v4354
    %v4426 = vunpack.c.l.b16 %v4355
    %v4427 = vunpack.c.l.b16 %v4356
    %v4428 = vunpack.c.l.b16 %v4357
    %v4429 = vunpack.c.l.b16 %v4358
    %v4430 = vunpack.c.l.b16 %v4359
    %v4431 = vunpack.c.l.b16 %v4360
    %v4432 = vunpack.c.l.b16 %v4361
    %v4433 = vunpack.c.l.b16 %v4362
    %v4434 = vunpack.c.l.b16 %v4363
    %v4435 = vunpack.c.l.b16 %v4364
    %v4436 = vunpack.c.l.b16 %v4365
    %v4437 = vunpack.c.l.b16 %v4366
    %v4438 = vunpack.c.l.b16 %v4367
    %v4439 = vunpack.c.l.b16 %v4368
    %v4440 = vunpack.c.l.b16 %v4369
    %v4441 = vunpack.c.l.b16 %v4370
    %v4442 = vunpack.c.l.b16 %v4371
    %v4443 = vunpack.c.l.b16 %v4372
    %v4444 = vunpack.c.l.b16 %v4373
    %v4445 = vunpack.c.l.b16 %v4374
    %v4446 = vunpack.c.l.b16 %v4375
    %v4447 = vunpack.c.l.b16 %v4376
    %v4448 = vunpack.c.l.b16 %v4377
    %v4449 = vunpack.c.l.b16 %v4378
    %v4450 = vunpack.c.l.b16 %v4379
    %v4451 = vunpack.c.l.b16 %v4380
    %v4452 = vunpack.c.l.b16 %v4381
    %v4453 = vunpack.c.l.b16 %v4382
    %v4454 = vunpack.c.l.b16 %v4383
    %v4455 = vunpack.c.l.b16 %v4384
    %v4456 = vpack.c.b16 %v4425, %v4424
    %v4457 = vpack.c.b16 %v4427, %v4426
    %v4458 = vpack.c.b16 %v4429, %v4428
    %v4459 = vpack.c.b16 %v4431, %v4430
    %v4460 = vpack.c.b16 %v4433, %v4432
    %v4461 = vpack.c.b16 %v4435, %v4434
    %v4462 = vpack.c.b16 %v4437, %v4436
    %v4463 = vpack.c.b16 %v4439, %v4438
    %v4464 = vpack.c.b16 %v4441, %v4440
    %v4465 = vpack.c.b16 %v4443, %v4442
    %v4466 = vpack.c.b16 %v4445, %v4444
    %v4467 = vpack.c.b16 %v4447, %v4446
    %v4468 = vpack.c.b16 %v4449, %v4448
    %v4469 = vpack.c.b16 %v4451, %v4450
    %v4470 = vpack.c.b16 %v4453, %v4452
    %v4471 = vpack.c.b16 %v4455, %v4454
    %4488 = vmatprep.subr.bf16.mxu0 0
    %4489 = vmatpush1.bf16.msra.mxu0 %v4463
    %4490 = vmatprep.subr.bf16.mxu0 0
    %4491 = vmatpush1.bf16.msra.mxu0 %v4462
    %4492 = vmatprep.subr.bf16.mxu0 0
    %4493 = vmatpush1.bf16.msra.mxu0 %v4461
    %4494 = vmatprep.subr.bf16.mxu0 0
    %4495 = vmatpush1.bf16.msra.mxu0 %v4460
    %4496 = vmatprep.subr.bf16.mxu0 0
    %4497 = vmatpush1.bf16.msra.mxu0 %v4459
    %4498 = vmatprep.subr.bf16.mxu0 0
    %4499 = vmatpush1.bf16.msra.mxu0 %v4458
    %4500 = vmatprep.subr.bf16.mxu0 0
    %4501 = vmatpush1.bf16.msra.mxu0 %v4457
    %4502 = vmatprep.subr.bf16.mxu0 0
    %4503 = vmatpush1.bf16.msra.mxu0 %v4456
    %4504 = vmatprep.subr.bf16.mxu0 0
    %4505 = vmatpush2.bf16.msra.mxu0 %v4471
    %4506 = vmatprep.subr.bf16.mxu0 0
    %4507 = vmatpush2.bf16.msra.mxu0 %v4470
    %4508 = vmatprep.subr.bf16.mxu0 0
    %4509 = vmatpush2.bf16.msra.mxu0 %v4469
    %4510 = vmatprep.subr.bf16.mxu0 0
    %4511 = vmatpush2.bf16.msra.mxu0 %v4468
    %4512 = vmatprep.subr.bf16.mxu0 0
    %4513 = vmatpush2.bf16.msra.mxu0 %v4467
    %4514 = vmatprep.subr.bf16.mxu0 0
    %4515 = vmatpush2.bf16.msra.mxu0 %v4466
    %4516 = vmatprep.subr.bf16.mxu0 0
    %4517 = vmatpush2.bf16.msra.mxu0 %v4465
    %4518 = vmatprep.subr.bf16.mxu0 0
    %4519 = vmatpush2.bf16.msra.mxu0 %v4464
    %4520 = vmatprep.mubr.bf16.mxu0 %v4352
    %4521 = vmatmul.mubr.bf16.gmra.mxu0 %v4351
    %v4522 = vpop.f32.mrf.mxu0
    %v4523 = vadd.f32 %v4390, %v4522
    %v4524 = vpop.f32.mrf.mxu0
    %v4525 = vpop.f32.mrf.mxu0
    %v4526 = vpop.f32.mrf.mxu0
    %4527 = vdwg.mxu0
    %v4528 = vsub.f32 0.0, %v4523
    %v4529 = vmul.f32 %v4528, 1.442695
    %v4530 = vpow.pop %v4529
    %v4531 = vadd.f32 %v4530, 1.0
    %v4532 = vrcp.pop %v4531
    %vm4533 = vcmask 72704
    %4534 = vst.msk [vmem:[#allocation10] sm:$0xff] %vm4533, %v4532
    // Predicated region
    $region38: #{domain_adaptation_forward.1} parent=1 // pred_check
      _
    $region39: #{domain_adaptation_forward.1} parent=1 // pred_check_branch
      %4536 = sbr.rel (0) target = $region41
    $region40: #{domain_adaptation_forward.1} parent=1 // pred_region
      %s4538 = ssub.s32 128, 128
      %4539 = vsyncadd [#allocation4], %s4538
      %s4541 = sshll.u32 [#allocation10], 4
      %s4542 = int_to_ptr.vmem [resolvable:$true] %s4541
      %4544 = dma.vmem_to_hbm [thread:$0]  %s4542, 128, %s5, [#allocation4]
    $region41: #{domain_adaptation_forward.1} parent=1 // pred_fallthru
      _
    // Predicated region
    $region42: #{domain_adaptation_forward.1} parent=1 // pred_check
      _
    $region43: #{domain_adaptation_forward.1} parent=1 // pred_check_branch
      %4546 = sbr.rel (0) target = $region45
    $region44: #{domain_adaptation_forward.1} parent=1 // pred_region
      %4547 = dma.done [#allocation4], 128
    $region45: #{domain_adaptation_forward.1} parent=1 // pred_fallthru
      _
    %4548 = vsyncpa [#allocation3], 1
    %4549 = vsyncpa [#allocation6], 1
    %4550 = vsyncpa [#allocation9], 1
    %4551 = vsyncpa [#allocation4], 1

</llo_original>
